<compile_context>
chip_gen: v7x
topology: tpu7x:2x2x1
jax: 0.10.0
libtpu: 0.0.40
codegen_flags: <defaults>
</compile_context>

<pallas_src>
import jax
import jax.numpy as jnp
from jax.experimental import pallas as pl
from jax.experimental.pallas import tpu as pltpu


def policy_forward_kernel(x_ref, h0_ref, wih_ref, whh_ref, bias_ref,
                          wd_ref, bd_ref, mean_ref, hid_ref):
    L, Bp, H = h0_ref.shape
    TB = x_ref.shape[0]
    T = TB // Bp
    H3 = 3 * H

    xs = x_ref[...]                                   # (T*Bp, H) layer input
    for layer in range(L):
        b2 = bias_ref[layer]                          # (2, 3H)

        # Hoisted, fused input projection: ONE matmul per layer over the whole
        # sequence, folded input-side biases added as a single (1, 3H) row.
        # Off the sequential critical path.
        gi = (jnp.dot(xs, wih_ref[layer],
                      preferred_element_type=jnp.float32)
              + b2[0:1, :])                           # (T*Bp, 3H)

        # Per-layer recurrent weights / bias broadcast hoisted out of the loop.
        whh = whh_ref[layer]                          # (H, 3H) fused r|z|n
        b_hn = jnp.broadcast_to(b2[1:2, :], (Bp, H3)) # zeros in r/z lanes

        h = h0_ref[layer]                             # (Bp, H)
        hs = []
        for t in range(T):
            row = t * Bp                              # static, sublane-aligned
            gi_t = gi[row:row + Bp, :]                # (Bp, 3H) value slice
            # Single fused recurrent dot per step; r/z/n via static lane
            # slices of the 96-lane result (XLU slot, free under MXU).
            gh = jnp.dot(h, whh,
                         preferred_element_type=jnp.float32) + b_hn
            r = jax.nn.sigmoid(gi_t[:, 0:H] + gh[:, 0:H])
            z = jax.nn.sigmoid(gi_t[:, H:2 * H] + gh[:, H:2 * H])
            n = jnp.tanh(gi_t[:, 2 * H:] + r * gh[:, 2 * H:])
            h = (1.0 - z) * n + z * h
            hs.append(h)
        hid_ref[layer] = h                            # final hidden, layer l
        xs = jnp.concatenate(hs, axis=0)              # (T*Bp, H) next input

    # Lane-dense dense head: one matmul + one unmasked 128-lane store.
    logit = (jnp.dot(xs, wd_ref[...],
                     preferred_element_type=jnp.float32) + bd_ref[...])
    mean_ref[...] = (jax.nn.sigmoid(logit) - 0.5) * 0.2


def policy_forward(x, h0, params):
    """x: (T, B, S) float32, h0: (L, B, H) float32. Returns the 4-tuple."""
    T, B, S = x.shape
    L, _, H = h0.shape
    A = params["w_dense"].shape[0]

    Bp = max(8, ((B + 7) // 8) * 8)      # pad batch to the f32 sublane tile
    AP = 128                             # lane-dense head output width

    # Pad batch rows and zero-pad input features to H so layer 0 uses the same
    # (L, H, 3H) weight stack as the other layers.
    x_p = jnp.pad(x, ((0, 0), (0, Bp - B), (0, H - S))).reshape(T * Bp, H)
    h0_p = jnp.pad(h0, ((0, 0), (0, Bp - B), (0, 0)))

    wih_l, whh_l, bias_l = [], [], []
    for l in range(L):
        wi = params[f"weight_ih_l{l}"]                  # (3H, S) or (3H, H)
        if wi.shape[1] < H:
            wi = jnp.pad(wi, ((0, 0), (0, H - wi.shape[1])))
        wh = params[f"weight_hh_l{l}"]                  # (3H, H)
        bi = params[f"bias_ih_l{l}"]                    # (3H,)
        bh = params[f"bias_hh_l{l}"]                    # (3H,)
        wih_l.append(wi.T)                              # (H, 3H), cols r|z|n
        whh_l.append(wh.T)                              # (H, 3H), cols r|z|n
        # Row 0: input-side folded biases [bi_r+bh_r | bi_z+bh_z | bi_n]
        # Row 1: recurrent-side n bias     [0 | 0 | bh_n]
        b_in = jnp.concatenate([bi[0:H] + bh[0:H],
                                bi[H:2 * H] + bh[H:2 * H],
                                bi[2 * H:]])
        b_hn = jnp.concatenate([jnp.zeros((2 * H,), jnp.float32), bh[2 * H:]])
        bias_l.append(jnp.stack([b_in, b_hn]))          # (2, 3H)

    wih = jnp.stack(wih_l)                              # (L, H, 3H)
    whh = jnp.stack(whh_l)                              # (L, H, 3H)
    bias = jnp.stack(bias_l)                            # (L, 2, 3H)
    wd = jnp.pad(params["w_dense"].T, ((0, 0), (0, AP - A)))   # (H, 128)
    bd = jnp.pad(params["b_dense"], (0, AP - A)).reshape(1, AP)

    vmem = pl.BlockSpec(memory_space=pltpu.MemorySpace.VMEM)
    out_shape = (
        jax.ShapeDtypeStruct((T * Bp, AP), jnp.float32),  # action_mean (flat)
        jax.ShapeDtypeStruct((L, Bp, H), jnp.float32),    # hidden
    )
    mean_flat, hidden_p = pl.pallas_call(
        policy_forward_kernel,
        out_shape=out_shape,
        in_specs=[vmem] * 7,
        out_specs=(vmem, vmem),
    )(x_p, h0_p, wih, whh, bias, wd, bd)

    action_mean = mean_flat.reshape(T, Bp, AP)[:, :B, :A]
    hidden = hidden_p[:, :B, :]
    # log_std/std depend only on a parameter -> plain XLA outside the kernel.
    action_log_std = jnp.broadcast_to(
        params["action_log_std"].reshape(1, 1, A), (T, B, A))
    action_std = jnp.exp(action_log_std)
    return action_mean, action_log_std, action_std, hidden


def policy_forward_ref(x, h0, params):
    """Pure-JAX reference (mirrors PyTorch nn.GRU + Linear) for validation."""
    T, B, S = x.shape
    L, _, H = h0.shape
    seq = x
    finals = []
    for l in range(L):
        wih = params[f"weight_ih_l{l}"]
        whh = params[f"weight_hh_l{l}"]
        bih = params[f"bias_ih_l{l}"]
        bhh = params[f"bias_hh_l{l}"]
        h = h0[l]
        outs = []
        for t in range(T):
            gi = seq[t] @ wih.T + bih
            gh = h @ whh.T + bhh
            r = jax.nn.sigmoid(gi[:, :H] + gh[:, :H])
            z = jax.nn.sigmoid(gi[:, H:2 * H] + gh[:, H:2 * H])
            n = jnp.tanh(gi[:, 2 * H:] + r * gh[:, 2 * H:])
            h = (1.0 - z) * n + z * h
            outs.append(h)
        seq = jnp.stack(outs)
        finals.append(h)
    hidden = jnp.stack(finals)
    logits = jnp.einsum("tbh,ah->tba", seq, params["w_dense"]) + params["b_dense"]
    mean = (jax.nn.sigmoid(logits) - 0.5) / 5.0
    log_std = jnp.broadcast_to(params["action_log_std"][None], mean.shape)
    return mean, log_std, jnp.exp(log_std), hidden


def init_params(key, state_dim, hidden_dim, action_size, num_layers, log_std=0.0):
    """Deterministic synthetic init mimicking PyTorch uniform(-1/sqrt(H), 1/sqrt(H))."""
    params = {}
    bound = 1.0 / float(hidden_dim) ** 0.5
    ks = jax.random.split(key, 4 * num_layers + 2)
    for l in range(num_layers):
        in_dim = state_dim if l == 0 else hidden_dim
        params[f"weight_ih_l{l}"] = jax.random.uniform(
            ks[4 * l + 0], (3 * hidden_dim, in_dim), jnp.float32, -bound, bound)
        params[f"weight_hh_l{l}"] = jax.random.uniform(
            ks[4 * l + 1], (3 * hidden_dim, hidden_dim), jnp.float32, -bound, bound)
        params[f"bias_ih_l{l}"] = jax.random.uniform(
            ks[4 * l + 2], (3 * hidden_dim,), jnp.float32, -bound, bound)
        params[f"bias_hh_l{l}"] = jax.random.uniform(
            ks[4 * l + 3], (3 * hidden_dim,), jnp.float32, -bound, bound)
    params["w_dense"] = jax.random.uniform(
        ks[-2], (action_size, hidden_dim), jnp.float32, -bound, bound)
    params["b_dense"] = jax.random.uniform(
        ks[-1], (action_size,), jnp.float32, -bound, bound)
    params["action_log_std"] = jnp.ones((1, action_size), jnp.float32) * log_std
    return params


if __name__ == "__main__":
    # Small shapes implied by the module: state_dim=4, hidden_dim=32,
    # action_size=4, num_layers=3, seq=8, batch=2.
    T, B, S, H, A, L = 8, 2, 4, 32, 4, 3

    key = jax.random.PRNGKey(0)
    kx, kp = jax.random.split(key)
    x = jax.random.normal(kx, (T, B, S), jnp.float32)
    h0 = jnp.zeros((L, B, H), jnp.float32)          # Policy.init_hidden(batch)
    params = init_params(kp, S, H, A, L, log_std=0.0)

    mean, log_std, std, hidden = jax.block_until_ready(policy_forward(x, h0, params))

    # Validate against a pure-JAX reference of the PyTorch forward.
    r_mean, r_log_std, r_std, r_hidden = policy_forward_ref(x, h0, params)
    assert jnp.allclose(mean, r_mean, atol=1e-4, rtol=1e-4)
    assert jnp.allclose(log_std, r_log_std, atol=1e-5)
    assert jnp.allclose(std, r_std, atol=1e-5)
    assert jnp.allclose(hidden, r_hidden, atol=1e-4, rtol=1e-4)

    print("KERNEL_OK")
</pallas_src>

<mosaic_0001>
module attributes {stable_mosaic.version = 11 : i64} {
  func.func @policy_forward_kernel(%arg0: memref<64x32xf32, #tpu.memory_space<vmem>>, %arg1: memref<3x8x32xf32, #tpu.memory_space<vmem>>, %arg2: memref<3x32x96xf32, #tpu.memory_space<vmem>>, %arg3: memref<3x32x96xf32, #tpu.memory_space<vmem>>, %arg4: memref<3x2x96xf32, #tpu.memory_space<vmem>>, %arg5: memref<32x128xf32, #tpu.memory_space<vmem>>, %arg6: memref<1x128xf32, #tpu.memory_space<vmem>>, %arg7: memref<64x128xf32, #tpu.memory_space<vmem>>, %arg8: memref<3x8x32xf32, #tpu.memory_space<vmem>>) attributes {dimension_semantics = [], scalar_prefetch = 0 : i64, scratch_operands = 0 : i64, tpu.core_type = #tpu.core_type<tc>} {
    %c0 = arith.constant 0 : index
    %c0_0 = arith.constant 0 : index
    %0 = vector.load %arg0[%c0, %c0_0] : memref<64x32xf32, #tpu.memory_space<vmem>>, vector<64x32xf32>
    %c0_1 = arith.constant 0 : index
    %c0_2 = arith.constant 0 : index
    %c0_3 = arith.constant 0 : index
    %1 = vector.load %arg4[%c0_1, %c0_2, %c0_3] : memref<3x2x96xf32, #tpu.memory_space<vmem>>, vector<1x2x96xf32>
    %2 = vector.shape_cast %1 : vector<1x2x96xf32> to vector<2x96xf32>
    %c0_4 = arith.constant 0 : index
    %c0_5 = arith.constant 0 : index
    %c0_6 = arith.constant 0 : index
    %3 = vector.load %arg2[%c0_4, %c0_5, %c0_6] : memref<3x32x96xf32, #tpu.memory_space<vmem>>, vector<1x32x96xf32>
    %4 = vector.shape_cast %3 : vector<1x32x96xf32> to vector<32x96xf32>
    %cst = arith.constant dense<0.000000e+00> : vector<64x96xf32>
    %5 = tpu.matmul %0, %4, %cst {dimension_numbers = #tpu.dot_dimension_numbers<[1], [0], [0], [1], [0, 0, 1, 1], [], []>} : vector<64x32xf32>, vector<32x96xf32>, vector<64x96xf32> -> vector<64x96xf32>
    %6 = vector.extract_strided_slice %2 {offsets = [0, 0], sizes = [1, 96], strides = [1, 1]} : vector<2x96xf32> to vector<1x96xf32>
    %7 = vector.broadcast %6 : vector<1x96xf32> to vector<64x96xf32>
    %8 = arith.addf %5, %7 : vector<64x96xf32>
    %c0_7 = arith.constant 0 : index
    %c0_8 = arith.constant 0 : index
    %c0_9 = arith.constant 0 : index
    %9 = vector.load %arg3[%c0_7, %c0_8, %c0_9] : memref<3x32x96xf32, #tpu.memory_space<vmem>>, vector<1x32x96xf32>
    %10 = vector.shape_cast %9 : vector<1x32x96xf32> to vector<32x96xf32>
    %11 = vector.extract_strided_slice %2 {offsets = [1, 0], sizes = [1, 96], strides = [1, 1]} : vector<2x96xf32> to vector<1x96xf32>
    %12 = vector.shape_cast %11 : vector<1x96xf32> to vector<1x96xf32>
    %13 = vector.broadcast %12 : vector<1x96xf32> to vector<8x96xf32>
    %c0_10 = arith.constant 0 : index
    %c0_11 = arith.constant 0 : index
    %c0_12 = arith.constant 0 : index
    %14 = vector.load %arg1[%c0_10, %c0_11, %c0_12] : memref<3x8x32xf32, #tpu.memory_space<vmem>>, vector<1x8x32xf32>
    %15 = vector.shape_cast %14 : vector<1x8x32xf32> to vector<8x32xf32>
    %16 = vector.extract_strided_slice %8 {offsets = [0, 0], sizes = [8, 96], strides = [1, 1]} : vector<64x96xf32> to vector<8x96xf32>
    %cst_13 = arith.constant dense<0.000000e+00> : vector<8x96xf32>
    %17 = tpu.matmul %15, %10, %cst_13 {dimension_numbers = #tpu.dot_dimension_numbers<[1], [0], [0], [1], [0, 0, 1, 1], [], []>} : vector<8x32xf32>, vector<32x96xf32>, vector<8x96xf32> -> vector<8x96xf32>
    %18 = arith.addf %17, %13 : vector<8x96xf32>
    %19 = vector.extract_strided_slice %16 {offsets = [0, 0], sizes = [8, 32], strides = [1, 1]} : vector<8x96xf32> to vector<8x32xf32>
    %20 = vector.extract_strided_slice %18 {offsets = [0, 0], sizes = [8, 32], strides = [1, 1]} : vector<8x96xf32> to vector<8x32xf32>
    %21 = arith.addf %19, %20 : vector<8x32xf32>
    %22 = arith.negf %21 : vector<8x32xf32>
    %23 = math.exp %22 : vector<8x32xf32>
    %cst_14 = arith.constant 1.000000e+00 : f32
    %24 = vector.broadcast %cst_14 : f32 to vector<8x32xf32>
    %25 = arith.addf %24, %23 : vector<8x32xf32>
    %26 = arith.divf %24, %25 : vector<8x32xf32>
    %27 = vector.extract_strided_slice %16 {offsets = [0, 32], sizes = [8, 32], strides = [1, 1]} : vector<8x96xf32> to vector<8x32xf32>
    %28 = vector.extract_strided_slice %18 {offsets = [0, 32], sizes = [8, 32], strides = [1, 1]} : vector<8x96xf32> to vector<8x32xf32>
    %29 = arith.addf %27, %28 : vector<8x32xf32>
    %30 = arith.negf %29 : vector<8x32xf32>
    %31 = math.exp %30 : vector<8x32xf32>
    %cst_15 = arith.constant 1.000000e+00 : f32
    %32 = vector.broadcast %cst_15 : f32 to vector<8x32xf32>
    %33 = arith.addf %32, %31 : vector<8x32xf32>
    %34 = arith.divf %32, %33 : vector<8x32xf32>
    %35 = vector.extract_strided_slice %16 {offsets = [0, 64], sizes = [8, 32], strides = [1, 1]} : vector<8x96xf32> to vector<8x32xf32>
    %36 = vector.extract_strided_slice %18 {offsets = [0, 64], sizes = [8, 32], strides = [1, 1]} : vector<8x96xf32> to vector<8x32xf32>
    %37 = arith.mulf %26, %36 : vector<8x32xf32>
    %38 = arith.addf %35, %37 : vector<8x32xf32>
    %39 = math.tanh %38 : vector<8x32xf32>
    %cst_16 = arith.constant 1.000000e+00 : f32
    %40 = vector.broadcast %cst_16 : f32 to vector<8x32xf32>
    %41 = arith.subf %40, %34 : vector<8x32xf32>
    %42 = arith.mulf %41, %39 : vector<8x32xf32>
    %43 = arith.mulf %34, %15 : vector<8x32xf32>
    %44 = arith.addf %42, %43 : vector<8x32xf32>
    %45 = vector.extract_strided_slice %8 {offsets = [8, 0], sizes = [8, 96], strides = [1, 1]} : vector<64x96xf32> to vector<8x96xf32>
    %cst_17 = arith.constant dense<0.000000e+00> : vector<8x96xf32>
    %46 = tpu.matmul %44, %10, %cst_17 {dimension_numbers = #tpu.dot_dimension_numbers<[1], [0], [0], [1], [0, 0, 1, 1], [], []>} : vector<8x32xf32>, vector<32x96xf32>, vector<8x96xf32> -> vector<8x96xf32>
    %47 = arith.addf %46, %13 : vector<8x96xf32>
    %48 = vector.extract_strided_slice %45 {offsets = [0, 0], sizes = [8, 32], strides = [1, 1]} : vector<8x96xf32> to vector<8x32xf32>
    %49 = vector.extract_strided_slice %47 {offsets = [0, 0], sizes = [8, 32], strides = [1, 1]} : vector<8x96xf32> to vector<8x32xf32>
    %50 = arith.addf %48, %49 : vector<8x32xf32>
    %51 = arith.negf %50 : vector<8x32xf32>
    %52 = math.exp %51 : vector<8x32xf32>
    %cst_18 = arith.constant 1.000000e+00 : f32
    %53 = vector.broadcast %cst_18 : f32 to vector<8x32xf32>
    %54 = arith.addf %53, %52 : vector<8x32xf32>
    %55 = arith.divf %53, %54 : vector<8x32xf32>
    %56 = vector.extract_strided_slice %45 {offsets = [0, 32], sizes = [8, 32], strides = [1, 1]} : vector<8x96xf32> to vector<8x32xf32>
    %57 = vector.extract_strided_slice %47 {offsets = [0, 32], sizes = [8, 32], strides = [1, 1]} : vector<8x96xf32> to vector<8x32xf32>
    %58 = arith.addf %56, %57 : vector<8x32xf32>
    %59 = arith.negf %58 : vector<8x32xf32>
    %60 = math.exp %59 : vector<8x32xf32>
    %cst_19 = arith.constant 1.000000e+00 : f32
    %61 = vector.broadcast %cst_19 : f32 to vector<8x32xf32>
    %62 = arith.addf %61, %60 : vector<8x32xf32>
    %63 = arith.divf %61, %62 : vector<8x32xf32>
    %64 = vector.extract_strided_slice %45 {offsets = [0, 64], sizes = [8, 32], strides = [1, 1]} : vector<8x96xf32> to vector<8x32xf32>
    %65 = vector.extract_strided_slice %47 {offsets = [0, 64], sizes = [8, 32], strides = [1, 1]} : vector<8x96xf32> to vector<8x32xf32>
    %66 = arith.mulf %55, %65 : vector<8x32xf32>
    %67 = arith.addf %64, %66 : vector<8x32xf32>
    %68 = math.tanh %67 : vector<8x32xf32>
    %cst_20 = arith.constant 1.000000e+00 : f32
    %69 = vector.broadcast %cst_20 : f32 to vector<8x32xf32>
    %70 = arith.subf %69, %63 : vector<8x32xf32>
    %71 = arith.mulf %70, %68 : vector<8x32xf32>
    %72 = arith.mulf %63, %44 : vector<8x32xf32>
    %73 = arith.addf %71, %72 : vector<8x32xf32>
    %74 = vector.extract_strided_slice %8 {offsets = [16, 0], sizes = [8, 96], strides = [1, 1]} : vector<64x96xf32> to vector<8x96xf32>
    %cst_21 = arith.constant dense<0.000000e+00> : vector<8x96xf32>
    %75 = tpu.matmul %73, %10, %cst_21 {dimension_numbers = #tpu.dot_dimension_numbers<[1], [0], [0], [1], [0, 0, 1, 1], [], []>} : vector<8x32xf32>, vector<32x96xf32>, vector<8x96xf32> -> vector<8x96xf32>
    %76 = arith.addf %75, %13 : vector<8x96xf32>
    %77 = vector.extract_strided_slice %74 {offsets = [0, 0], sizes = [8, 32], strides = [1, 1]} : vector<8x96xf32> to vector<8x32xf32>
    %78 = vector.extract_strided_slice %76 {offsets = [0, 0], sizes = [8, 32], strides = [1, 1]} : vector<8x96xf32> to vector<8x32xf32>
    %79 = arith.addf %77, %78 : vector<8x32xf32>
    %80 = arith.negf %79 : vector<8x32xf32>
    %81 = math.exp %80 : vector<8x32xf32>
    %cst_22 = arith.constant 1.000000e+00 : f32
    %82 = vector.broadcast %cst_22 : f32 to vector<8x32xf32>
    %83 = arith.addf %82, %81 : vector<8x32xf32>
    %84 = arith.divf %82, %83 : vector<8x32xf32>
    %85 = vector.extract_strided_slice %74 {offsets = [0, 32], sizes = [8, 32], strides = [1, 1]} : vector<8x96xf32> to vector<8x32xf32>
    %86 = vector.extract_strided_slice %76 {offsets = [0, 32], sizes = [8, 32], strides = [1, 1]} : vector<8x96xf32> to vector<8x32xf32>
    %87 = arith.addf %85, %86 : vector<8x32xf32>
    %88 = arith.negf %87 : vector<8x32xf32>
    %89 = math.exp %88 : vector<8x32xf32>
    %cst_23 = arith.constant 1.000000e+00 : f32
    %90 = vector.broadcast %cst_23 : f32 to vector<8x32xf32>
    %91 = arith.addf %90, %89 : vector<8x32xf32>
    %92 = arith.divf %90, %91 : vector<8x32xf32>
    %93 = vector.extract_strided_slice %74 {offsets = [0, 64], sizes = [8, 32], strides = [1, 1]} : vector<8x96xf32> to vector<8x32xf32>
    %94 = vector.extract_strided_slice %76 {offsets = [0, 64], sizes = [8, 32], strides = [1, 1]} : vector<8x96xf32> to vector<8x32xf32>
    %95 = arith.mulf %84, %94 : vector<8x32xf32>
    %96 = arith.addf %93, %95 : vector<8x32xf32>
    %97 = math.tanh %96 : vector<8x32xf32>
    %cst_24 = arith.constant 1.000000e+00 : f32
    %98 = vector.broadcast %cst_24 : f32 to vector<8x32xf32>
    %99 = arith.subf %98, %92 : vector<8x32xf32>
    %100 = arith.mulf %99, %97 : vector<8x32xf32>
    %101 = arith.mulf %92, %73 : vector<8x32xf32>
    %102 = arith.addf %100, %101 : vector<8x32xf32>
    %103 = vector.extract_strided_slice %8 {offsets = [24, 0], sizes = [8, 96], strides = [1, 1]} : vector<64x96xf32> to vector<8x96xf32>
    %cst_25 = arith.constant dense<0.000000e+00> : vector<8x96xf32>
    %104 = tpu.matmul %102, %10, %cst_25 {dimension_numbers = #tpu.dot_dimension_numbers<[1], [0], [0], [1], [0, 0, 1, 1], [], []>} : vector<8x32xf32>, vector<32x96xf32>, vector<8x96xf32> -> vector<8x96xf32>
    %105 = arith.addf %104, %13 : vector<8x96xf32>
    %106 = vector.extract_strided_slice %103 {offsets = [0, 0], sizes = [8, 32], strides = [1, 1]} : vector<8x96xf32> to vector<8x32xf32>
    %107 = vector.extract_strided_slice %105 {offsets = [0, 0], sizes = [8, 32], strides = [1, 1]} : vector<8x96xf32> to vector<8x32xf32>
    %108 = arith.addf %106, %107 : vector<8x32xf32>
    %109 = arith.negf %108 : vector<8x32xf32>
    %110 = math.exp %109 : vector<8x32xf32>
    %cst_26 = arith.constant 1.000000e+00 : f32
    %111 = vector.broadcast %cst_26 : f32 to vector<8x32xf32>
    %112 = arith.addf %111, %110 : vector<8x32xf32>
    %113 = arith.divf %111, %112 : vector<8x32xf32>
    %114 = vector.extract_strided_slice %103 {offsets = [0, 32], sizes = [8, 32], strides = [1, 1]} : vector<8x96xf32> to vector<8x32xf32>
    %115 = vector.extract_strided_slice %105 {offsets = [0, 32], sizes = [8, 32], strides = [1, 1]} : vector<8x96xf32> to vector<8x32xf32>
    %116 = arith.addf %114, %115 : vector<8x32xf32>
    %117 = arith.negf %116 : vector<8x32xf32>
    %118 = math.exp %117 : vector<8x32xf32>
    %cst_27 = arith.constant 1.000000e+00 : f32
    %119 = vector.broadcast %cst_27 : f32 to vector<8x32xf32>
    %120 = arith.addf %119, %118 : vector<8x32xf32>
    %121 = arith.divf %119, %120 : vector<8x32xf32>
    %122 = vector.extract_strided_slice %103 {offsets = [0, 64], sizes = [8, 32], strides = [1, 1]} : vector<8x96xf32> to vector<8x32xf32>
    %123 = vector.extract_strided_slice %105 {offsets = [0, 64], sizes = [8, 32], strides = [1, 1]} : vector<8x96xf32> to vector<8x32xf32>
    %124 = arith.mulf %113, %123 : vector<8x32xf32>
    %125 = arith.addf %122, %124 : vector<8x32xf32>
    %126 = math.tanh %125 : vector<8x32xf32>
    %cst_28 = arith.constant 1.000000e+00 : f32
    %127 = vector.broadcast %cst_28 : f32 to vector<8x32xf32>
    %128 = arith.subf %127, %121 : vector<8x32xf32>
    %129 = arith.mulf %128, %126 : vector<8x32xf32>
    %130 = arith.mulf %121, %102 : vector<8x32xf32>
    %131 = arith.addf %129, %130 : vector<8x32xf32>
    %132 = vector.extract_strided_slice %8 {offsets = [32, 0], sizes = [8, 96], strides = [1, 1]} : vector<64x96xf32> to vector<8x96xf32>
    %cst_29 = arith.constant dense<0.000000e+00> : vector<8x96xf32>
    %133 = tpu.matmul %131, %10, %cst_29 {dimension_numbers = #tpu.dot_dimension_numbers<[1], [0], [0], [1], [0, 0, 1, 1], [], []>} : vector<8x32xf32>, vector<32x96xf32>, vector<8x96xf32> -> vector<8x96xf32>
    %134 = arith.addf %133, %13 : vector<8x96xf32>
    %135 = vector.extract_strided_slice %132 {offsets = [0, 0], sizes = [8, 32], strides = [1, 1]} : vector<8x96xf32> to vector<8x32xf32>
    %136 = vector.extract_strided_slice %134 {offsets = [0, 0], sizes = [8, 32], strides = [1, 1]} : vector<8x96xf32> to vector<8x32xf32>
    %137 = arith.addf %135, %136 : vector<8x32xf32>
    %138 = arith.negf %137 : vector<8x32xf32>
    %139 = math.exp %138 : vector<8x32xf32>
    %cst_30 = arith.constant 1.000000e+00 : f32
    %140 = vector.broadcast %cst_30 : f32 to vector<8x32xf32>
    %141 = arith.addf %140, %139 : vector<8x32xf32>
    %142 = arith.divf %140, %141 : vector<8x32xf32>
    %143 = vector.extract_strided_slice %132 {offsets = [0, 32], sizes = [8, 32], strides = [1, 1]} : vector<8x96xf32> to vector<8x32xf32>
    %144 = vector.extract_strided_slice %134 {offsets = [0, 32], sizes = [8, 32], strides = [1, 1]} : vector<8x96xf32> to vector<8x32xf32>
    %145 = arith.addf %143, %144 : vector<8x32xf32>
    %146 = arith.negf %145 : vector<8x32xf32>
    %147 = math.exp %146 : vector<8x32xf32>
    %cst_31 = arith.constant 1.000000e+00 : f32
    %148 = vector.broadcast %cst_31 : f32 to vector<8x32xf32>
    %149 = arith.addf %148, %147 : vector<8x32xf32>
    %150 = arith.divf %148, %149 : vector<8x32xf32>
    %151 = vector.extract_strided_slice %132 {offsets = [0, 64], sizes = [8, 32], strides = [1, 1]} : vector<8x96xf32> to vector<8x32xf32>
    %152 = vector.extract_strided_slice %134 {offsets = [0, 64], sizes = [8, 32], strides = [1, 1]} : vector<8x96xf32> to vector<8x32xf32>
    %153 = arith.mulf %142, %152 : vector<8x32xf32>
    %154 = arith.addf %151, %153 : vector<8x32xf32>
    %155 = math.tanh %154 : vector<8x32xf32>
    %cst_32 = arith.constant 1.000000e+00 : f32
    %156 = vector.broadcast %cst_32 : f32 to vector<8x32xf32>
    %157 = arith.subf %156, %150 : vector<8x32xf32>
    %158 = arith.mulf %157, %155 : vector<8x32xf32>
    %159 = arith.mulf %150, %131 : vector<8x32xf32>
    %160 = arith.addf %158, %159 : vector<8x32xf32>
    %161 = vector.extract_strided_slice %8 {offsets = [40, 0], sizes = [8, 96], strides = [1, 1]} : vector<64x96xf32> to vector<8x96xf32>
    %cst_33 = arith.constant dense<0.000000e+00> : vector<8x96xf32>
    %162 = tpu.matmul %160, %10, %cst_33 {dimension_numbers = #tpu.dot_dimension_numbers<[1], [0], [0], [1], [0, 0, 1, 1], [], []>} : vector<8x32xf32>, vector<32x96xf32>, vector<8x96xf32> -> vector<8x96xf32>
    %163 = arith.addf %162, %13 : vector<8x96xf32>
    %164 = vector.extract_strided_slice %161 {offsets = [0, 0], sizes = [8, 32], strides = [1, 1]} : vector<8x96xf32> to vector<8x32xf32>
    %165 = vector.extract_strided_slice %163 {offsets = [0, 0], sizes = [8, 32], strides = [1, 1]} : vector<8x96xf32> to vector<8x32xf32>
    %166 = arith.addf %164, %165 : vector<8x32xf32>
    %167 = arith.negf %166 : vector<8x32xf32>
    %168 = math.exp %167 : vector<8x32xf32>
    %cst_34 = arith.constant 1.000000e+00 : f32
    %169 = vector.broadcast %cst_34 : f32 to vector<8x32xf32>
    %170 = arith.addf %169, %168 : vector<8x32xf32>
    %171 = arith.divf %169, %170 : vector<8x32xf32>
    %172 = vector.extract_strided_slice %161 {offsets = [0, 32], sizes = [8, 32], strides = [1, 1]} : vector<8x96xf32> to vector<8x32xf32>
    %173 = vector.extract_strided_slice %163 {offsets = [0, 32], sizes = [8, 32], strides = [1, 1]} : vector<8x96xf32> to vector<8x32xf32>
    %174 = arith.addf %172, %173 : vector<8x32xf32>
    %175 = arith.negf %174 : vector<8x32xf32>
    %176 = math.exp %175 : vector<8x32xf32>
    %cst_35 = arith.constant 1.000000e+00 : f32
    %177 = vector.broadcast %cst_35 : f32 to vector<8x32xf32>
    %178 = arith.addf %177, %176 : vector<8x32xf32>
    %179 = arith.divf %177, %178 : vector<8x32xf32>
    %180 = vector.extract_strided_slice %161 {offsets = [0, 64], sizes = [8, 32], strides = [1, 1]} : vector<8x96xf32> to vector<8x32xf32>
    %181 = vector.extract_strided_slice %163 {offsets = [0, 64], sizes = [8, 32], strides = [1, 1]} : vector<8x96xf32> to vector<8x32xf32>
    %182 = arith.mulf %171, %181 : vector<8x32xf32>
    %183 = arith.addf %180, %182 : vector<8x32xf32>
    %184 = math.tanh %183 : vector<8x32xf32>
    %cst_36 = arith.constant 1.000000e+00 : f32
    %185 = vector.broadcast %cst_36 : f32 to vector<8x32xf32>
    %186 = arith.subf %185, %179 : vector<8x32xf32>
    %187 = arith.mulf %186, %184 : vector<8x32xf32>
    %188 = arith.mulf %179, %160 : vector<8x32xf32>
    %189 = arith.addf %187, %188 : vector<8x32xf32>
    %190 = vector.extract_strided_slice %8 {offsets = [48, 0], sizes = [8, 96], strides = [1, 1]} : vector<64x96xf32> to vector<8x96xf32>
    %cst_37 = arith.constant dense<0.000000e+00> : vector<8x96xf32>
    %191 = tpu.matmul %189, %10, %cst_37 {dimension_numbers = #tpu.dot_dimension_numbers<[1], [0], [0], [1], [0, 0, 1, 1], [], []>} : vector<8x32xf32>, vector<32x96xf32>, vector<8x96xf32> -> vector<8x96xf32>
    %192 = arith.addf %191, %13 : vector<8x96xf32>
    %193 = vector.extract_strided_slice %190 {offsets = [0, 0], sizes = [8, 32], strides = [1, 1]} : vector<8x96xf32> to vector<8x32xf32>
    %194 = vector.extract_strided_slice %192 {offsets = [0, 0], sizes = [8, 32], strides = [1, 1]} : vector<8x96xf32> to vector<8x32xf32>
    %195 = arith.addf %193, %194 : vector<8x32xf32>
    %196 = arith.negf %195 : vector<8x32xf32>
    %197 = math.exp %196 : vector<8x32xf32>
    %cst_38 = arith.constant 1.000000e+00 : f32
    %198 = vector.broadcast %cst_38 : f32 to vector<8x32xf32>
    %199 = arith.addf %198, %197 : vector<8x32xf32>
    %200 = arith.divf %198, %199 : vector<8x32xf32>
    %201 = vector.extract_strided_slice %190 {offsets = [0, 32], sizes = [8, 32], strides = [1, 1]} : vector<8x96xf32> to vector<8x32xf32>
    %202 = vector.extract_strided_slice %192 {offsets = [0, 32], sizes = [8, 32], strides = [1, 1]} : vector<8x96xf32> to vector<8x32xf32>
    %203 = arith.addf %201, %202 : vector<8x32xf32>
    %204 = arith.negf %203 : vector<8x32xf32>
    %205 = math.exp %204 : vector<8x32xf32>
    %cst_39 = arith.constant 1.000000e+00 : f32
    %206 = vector.broadcast %cst_39 : f32 to vector<8x32xf32>
    %207 = arith.addf %206, %205 : vector<8x32xf32>
    %208 = arith.divf %206, %207 : vector<8x32xf32>
    %209 = vector.extract_strided_slice %190 {offsets = [0, 64], sizes = [8, 32], strides = [1, 1]} : vector<8x96xf32> to vector<8x32xf32>
    %210 = vector.extract_strided_slice %192 {offsets = [0, 64], sizes = [8, 32], strides = [1, 1]} : vector<8x96xf32> to vector<8x32xf32>
    %211 = arith.mulf %200, %210 : vector<8x32xf32>
    %212 = arith.addf %209, %211 : vector<8x32xf32>
    %213 = math.tanh %212 : vector<8x32xf32>
    %cst_40 = arith.constant 1.000000e+00 : f32
    %214 = vector.broadcast %cst_40 : f32 to vector<8x32xf32>
    %215 = arith.subf %214, %208 : vector<8x32xf32>
    %216 = arith.mulf %215, %213 : vector<8x32xf32>
    %217 = arith.mulf %208, %189 : vector<8x32xf32>
    %218 = arith.addf %216, %217 : vector<8x32xf32>
    %219 = vector.extract_strided_slice %8 {offsets = [56, 0], sizes = [8, 96], strides = [1, 1]} : vector<64x96xf32> to vector<8x96xf32>
    %cst_41 = arith.constant dense<0.000000e+00> : vector<8x96xf32>
    %220 = tpu.matmul %218, %10, %cst_41 {dimension_numbers = #tpu.dot_dimension_numbers<[1], [0], [0], [1], [0, 0, 1, 1], [], []>} : vector<8x32xf32>, vector<32x96xf32>, vector<8x96xf32> -> vector<8x96xf32>
    %221 = arith.addf %220, %13 : vector<8x96xf32>
    %222 = vector.extract_strided_slice %219 {offsets = [0, 0], sizes = [8, 32], strides = [1, 1]} : vector<8x96xf32> to vector<8x32xf32>
    %223 = vector.extract_strided_slice %221 {offsets = [0, 0], sizes = [8, 32], strides = [1, 1]} : vector<8x96xf32> to vector<8x32xf32>
    %224 = arith.addf %222, %223 : vector<8x32xf32>
    %225 = arith.negf %224 : vector<8x32xf32>
    %226 = math.exp %225 : vector<8x32xf32>
    %cst_42 = arith.constant 1.000000e+00 : f32
    %227 = vector.broadcast %cst_42 : f32 to vector<8x32xf32>
    %228 = arith.addf %227, %226 : vector<8x32xf32>
    %229 = arith.divf %227, %228 : vector<8x32xf32>
    %230 = vector.extract_strided_slice %219 {offsets = [0, 32], sizes = [8, 32], strides = [1, 1]} : vector<8x96xf32> to vector<8x32xf32>
    %231 = vector.extract_strided_slice %221 {offsets = [0, 32], sizes = [8, 32], strides = [1, 1]} : vector<8x96xf32> to vector<8x32xf32>
    %232 = arith.addf %230, %231 : vector<8x32xf32>
    %233 = arith.negf %232 : vector<8x32xf32>
    %234 = math.exp %233 : vector<8x32xf32>
    %cst_43 = arith.constant 1.000000e+00 : f32
    %235 = vector.broadcast %cst_43 : f32 to vector<8x32xf32>
    %236 = arith.addf %235, %234 : vector<8x32xf32>
    %237 = arith.divf %235, %236 : vector<8x32xf32>
    %238 = vector.extract_strided_slice %219 {offsets = [0, 64], sizes = [8, 32], strides = [1, 1]} : vector<8x96xf32> to vector<8x32xf32>
    %239 = vector.extract_strided_slice %221 {offsets = [0, 64], sizes = [8, 32], strides = [1, 1]} : vector<8x96xf32> to vector<8x32xf32>
    %240 = arith.mulf %229, %239 : vector<8x32xf32>
    %241 = arith.addf %238, %240 : vector<8x32xf32>
    %242 = math.tanh %241 : vector<8x32xf32>
    %cst_44 = arith.constant 1.000000e+00 : f32
    %243 = vector.broadcast %cst_44 : f32 to vector<8x32xf32>
    %244 = arith.subf %243, %237 : vector<8x32xf32>
    %245 = arith.mulf %244, %242 : vector<8x32xf32>
    %246 = arith.mulf %237, %218 : vector<8x32xf32>
    %247 = arith.addf %245, %246 : vector<8x32xf32>
    %c0_45 = arith.constant 0 : index
    %c0_46 = arith.constant 0 : index
    %c0_47 = arith.constant 0 : index
    %248 = vector.load %arg8[%c0_45, %c0_46, %c0_47] : memref<3x8x32xf32, #tpu.memory_space<vmem>>, vector<1x8x32xf32>
    %249 = vector.shape_cast %248 : vector<1x8x32xf32> to vector<8x32xf32>
    %250 = vector.shape_cast %247 : vector<8x32xf32> to vector<1x8x32xf32>
    tpu.vector_store %arg8[%c0_45, %c0_46, %c0_47], %250 {strides = array<i32>} : memref<3x8x32xf32, #tpu.memory_space<vmem>>, vector<1x8x32xf32>,
    %251 = tpu.concatenate %44, %73, %102, %131, %160, %189, %218, %247 in 0 : vector<8x32xf32>, vector<8x32xf32>, vector<8x32xf32>, vector<8x32xf32>, vector<8x32xf32>, vector<8x32xf32>, vector<8x32xf32>, vector<8x32xf32> -> vector<64x32xf32>
    %c1 = arith.constant 1 : index
    %c0_48 = arith.constant 0 : index
    %c0_49 = arith.constant 0 : index
    %252 = vector.load %arg4[%c1, %c0_48, %c0_49] : memref<3x2x96xf32, #tpu.memory_space<vmem>>, vector<1x2x96xf32>
    %253 = vector.shape_cast %252 : vector<1x2x96xf32> to vector<2x96xf32>
    %c1_50 = arith.constant 1 : index
    %c0_51 = arith.constant 0 : index
    %c0_52 = arith.constant 0 : index
    %254 = vector.load %arg2[%c1_50, %c0_51, %c0_52] : memref<3x32x96xf32, #tpu.memory_space<vmem>>, vector<1x32x96xf32>
    %255 = vector.shape_cast %254 : vector<1x32x96xf32> to vector<32x96xf32>
    %cst_53 = arith.constant dense<0.000000e+00> : vector<64x96xf32>
    %256 = tpu.matmul %251, %255, %cst_53 {dimension_numbers = #tpu.dot_dimension_numbers<[1], [0], [0], [1], [0, 0, 1, 1], [], []>} : vector<64x32xf32>, vector<32x96xf32>, vector<64x96xf32> -> vector<64x96xf32>
    %257 = vector.extract_strided_slice %253 {offsets = [0, 0], sizes = [1, 96], strides = [1, 1]} : vector<2x96xf32> to vector<1x96xf32>
    %258 = vector.broadcast %257 : vector<1x96xf32> to vector<64x96xf32>
    %259 = arith.addf %256, %258 : vector<64x96xf32>
    %c1_54 = arith.constant 1 : index
    %c0_55 = arith.constant 0 : index
    %c0_56 = arith.constant 0 : index
    %260 = vector.load %arg3[%c1_54, %c0_55, %c0_56] : memref<3x32x96xf32, #tpu.memory_space<vmem>>, vector<1x32x96xf32>
    %261 = vector.shape_cast %260 : vector<1x32x96xf32> to vector<32x96xf32>
    %262 = vector.extract_strided_slice %253 {offsets = [1, 0], sizes = [1, 96], strides = [1, 1]} : vector<2x96xf32> to vector<1x96xf32>
    %263 = vector.shape_cast %262 : vector<1x96xf32> to vector<1x96xf32>
    %264 = vector.broadcast %263 : vector<1x96xf32> to vector<8x96xf32>
    %c1_57 = arith.constant 1 : index
    %c0_58 = arith.constant 0 : index
    %c0_59 = arith.constant 0 : index
    %265 = vector.load %arg1[%c1_57, %c0_58, %c0_59] : memref<3x8x32xf32, #tpu.memory_space<vmem>>, vector<1x8x32xf32>
    %266 = vector.shape_cast %265 : vector<1x8x32xf32> to vector<8x32xf32>
    %267 = vector.extract_strided_slice %259 {offsets = [0, 0], sizes = [8, 96], strides = [1, 1]} : vector<64x96xf32> to vector<8x96xf32>
    %cst_60 = arith.constant dense<0.000000e+00> : vector<8x96xf32>
    %268 = tpu.matmul %266, %261, %cst_60 {dimension_numbers = #tpu.dot_dimension_numbers<[1], [0], [0], [1], [0, 0, 1, 1], [], []>} : vector<8x32xf32>, vector<32x96xf32>, vector<8x96xf32> -> vector<8x96xf32>
    %269 = arith.addf %268, %264 : vector<8x96xf32>
    %270 = vector.extract_strided_slice %267 {offsets = [0, 0], sizes = [8, 32], strides = [1, 1]} : vector<8x96xf32> to vector<8x32xf32>
    %271 = vector.extract_strided_slice %269 {offsets = [0, 0], sizes = [8, 32], strides = [1, 1]} : vector<8x96xf32> to vector<8x32xf32>
    %272 = arith.addf %270, %271 : vector<8x32xf32>
    %273 = arith.negf %272 : vector<8x32xf32>
    %274 = math.exp %273 : vector<8x32xf32>
    %cst_61 = arith.constant 1.000000e+00 : f32
    %275 = vector.broadcast %cst_61 : f32 to vector<8x32xf32>
    %276 = arith.addf %275, %274 : vector<8x32xf32>
    %277 = arith.divf %275, %276 : vector<8x32xf32>
    %278 = vector.extract_strided_slice %267 {offsets = [0, 32], sizes = [8, 32], strides = [1, 1]} : vector<8x96xf32> to vector<8x32xf32>
    %279 = vector.extract_strided_slice %269 {offsets = [0, 32], sizes = [8, 32], strides = [1, 1]} : vector<8x96xf32> to vector<8x32xf32>
    %280 = arith.addf %278, %279 : vector<8x32xf32>
    %281 = arith.negf %280 : vector<8x32xf32>
    %282 = math.exp %281 : vector<8x32xf32>
    %cst_62 = arith.constant 1.000000e+00 : f32
    %283 = vector.broadcast %cst_62 : f32 to vector<8x32xf32>
    %284 = arith.addf %283, %282 : vector<8x32xf32>
    %285 = arith.divf %283, %284 : vector<8x32xf32>
    %286 = vector.extract_strided_slice %267 {offsets = [0, 64], sizes = [8, 32], strides = [1, 1]} : vector<8x96xf32> to vector<8x32xf32>
    %287 = vector.extract_strided_slice %269 {offsets = [0, 64], sizes = [8, 32], strides = [1, 1]} : vector<8x96xf32> to vector<8x32xf32>
    %288 = arith.mulf %277, %287 : vector<8x32xf32>
    %289 = arith.addf %286, %288 : vector<8x32xf32>
    %290 = math.tanh %289 : vector<8x32xf32>
    %cst_63 = arith.constant 1.000000e+00 : f32
    %291 = vector.broadcast %cst_63 : f32 to vector<8x32xf32>
    %292 = arith.subf %291, %285 : vector<8x32xf32>
    %293 = arith.mulf %292, %290 : vector<8x32xf32>
    %294 = arith.mulf %285, %266 : vector<8x32xf32>
    %295 = arith.addf %293, %294 : vector<8x32xf32>
    %296 = vector.extract_strided_slice %259 {offsets = [8, 0], sizes = [8, 96], strides = [1, 1]} : vector<64x96xf32> to vector<8x96xf32>
    %cst_64 = arith.constant dense<0.000000e+00> : vector<8x96xf32>
    %297 = tpu.matmul %295, %261, %cst_64 {dimension_numbers = #tpu.dot_dimension_numbers<[1], [0], [0], [1], [0, 0, 1, 1], [], []>} : vector<8x32xf32>, vector<32x96xf32>, vector<8x96xf32> -> vector<8x96xf32>
    %298 = arith.addf %297, %264 : vector<8x96xf32>
    %299 = vector.extract_strided_slice %296 {offsets = [0, 0], sizes = [8, 32], strides = [1, 1]} : vector<8x96xf32> to vector<8x32xf32>
    %300 = vector.extract_strided_slice %298 {offsets = [0, 0], sizes = [8, 32], strides = [1, 1]} : vector<8x96xf32> to vector<8x32xf32>
    %301 = arith.addf %299, %300 : vector<8x32xf32>
    %302 = arith.negf %301 : vector<8x32xf32>
    %303 = math.exp %302 : vector<8x32xf32>
    %cst_65 = arith.constant 1.000000e+00 : f32
    %304 = vector.broadcast %cst_65 : f32 to vector<8x32xf32>
    %305 = arith.addf %304, %303 : vector<8x32xf32>
    %306 = arith.divf %304, %305 : vector<8x32xf32>
    %307 = vector.extract_strided_slice %296 {offsets = [0, 32], sizes = [8, 32], strides = [1, 1]} : vector<8x96xf32> to vector<8x32xf32>
    %308 = vector.extract_strided_slice %298 {offsets = [0, 32], sizes = [8, 32], strides = [1, 1]} : vector<8x96xf32> to vector<8x32xf32>
    %309 = arith.addf %307, %308 : vector<8x32xf32>
    %310 = arith.negf %309 : vector<8x32xf32>
    %311 = math.exp %310 : vector<8x32xf32>
    %cst_66 = arith.constant 1.000000e+00 : f32
    %312 = vector.broadcast %cst_66 : f32 to vector<8x32xf32>
    %313 = arith.addf %312, %311 : vector<8x32xf32>
    %314 = arith.divf %312, %313 : vector<8x32xf32>
    %315 = vector.extract_strided_slice %296 {offsets = [0, 64], sizes = [8, 32], strides = [1, 1]} : vector<8x96xf32> to vector<8x32xf32>
    %316 = vector.extract_strided_slice %298 {offsets = [0, 64], sizes = [8, 32], strides = [1, 1]} : vector<8x96xf32> to vector<8x32xf32>
    %317 = arith.mulf %306, %316 : vector<8x32xf32>
    %318 = arith.addf %315, %317 : vector<8x32xf32>
    %319 = math.tanh %318 : vector<8x32xf32>
    %cst_67 = arith.constant 1.000000e+00 : f32
    %320 = vector.broadcast %cst_67 : f32 to vector<8x32xf32>
    %321 = arith.subf %320, %314 : vector<8x32xf32>
    %322 = arith.mulf %321, %319 : vector<8x32xf32>
    %323 = arith.mulf %314, %295 : vector<8x32xf32>
    %324 = arith.addf %322, %323 : vector<8x32xf32>
    %325 = vector.extract_strided_slice %259 {offsets = [16, 0], sizes = [8, 96], strides = [1, 1]} : vector<64x96xf32> to vector<8x96xf32>
    %cst_68 = arith.constant dense<0.000000e+00> : vector<8x96xf32>
    %326 = tpu.matmul %324, %261, %cst_68 {dimension_numbers = #tpu.dot_dimension_numbers<[1], [0], [0], [1], [0, 0, 1, 1], [], []>} : vector<8x32xf32>, vector<32x96xf32>, vector<8x96xf32> -> vector<8x96xf32>
    %327 = arith.addf %326, %264 : vector<8x96xf32>
    %328 = vector.extract_strided_slice %325 {offsets = [0, 0], sizes = [8, 32], strides = [1, 1]} : vector<8x96xf32> to vector<8x32xf32>
    %329 = vector.extract_strided_slice %327 {offsets = [0, 0], sizes = [8, 32], strides = [1, 1]} : vector<8x96xf32> to vector<8x32xf32>
    %330 = arith.addf %328, %329 : vector<8x32xf32>
    %331 = arith.negf %330 : vector<8x32xf32>
    %332 = math.exp %331 : vector<8x32xf32>
    %cst_69 = arith.constant 1.000000e+00 : f32
    %333 = vector.broadcast %cst_69 : f32 to vector<8x32xf32>
    %334 = arith.addf %333, %332 : vector<8x32xf32>
    %335 = arith.divf %333, %334 : vector<8x32xf32>
    %336 = vector.extract_strided_slice %325 {offsets = [0, 32], sizes = [8, 32], strides = [1, 1]} : vector<8x96xf32> to vector<8x32xf32>
    %337 = vector.extract_strided_slice %327 {offsets = [0, 32], sizes = [8, 32], strides = [1, 1]} : vector<8x96xf32> to vector<8x32xf32>
    %338 = arith.addf %336, %337 : vector<8x32xf32>
    %339 = arith.negf %338 : vector<8x32xf32>
    %340 = math.exp %339 : vector<8x32xf32>
    %cst_70 = arith.constant 1.000000e+00 : f32
    %341 = vector.broadcast %cst_70 : f32 to vector<8x32xf32>
    %342 = arith.addf %341, %340 : vector<8x32xf32>
    %343 = arith.divf %341, %342 : vector<8x32xf32>
    %344 = vector.extract_strided_slice %325 {offsets = [0, 64], sizes = [8, 32], strides = [1, 1]} : vector<8x96xf32> to vector<8x32xf32>
    %345 = vector.extract_strided_slice %327 {offsets = [0, 64], sizes = [8, 32], strides = [1, 1]} : vector<8x96xf32> to vector<8x32xf32>
    %346 = arith.mulf %335, %345 : vector<8x32xf32>
    %347 = arith.addf %344, %346 : vector<8x32xf32>
    %348 = math.tanh %347 : vector<8x32xf32>
    %cst_71 = arith.constant 1.000000e+00 : f32
    %349 = vector.broadcast %cst_71 : f32 to vector<8x32xf32>
    %350 = arith.subf %349, %343 : vector<8x32xf32>
    %351 = arith.mulf %350, %348 : vector<8x32xf32>
    %352 = arith.mulf %343, %324 : vector<8x32xf32>
    %353 = arith.addf %351, %352 : vector<8x32xf32>
    %354 = vector.extract_strided_slice %259 {offsets = [24, 0], sizes = [8, 96], strides = [1, 1]} : vector<64x96xf32> to vector<8x96xf32>
    %cst_72 = arith.constant dense<0.000000e+00> : vector<8x96xf32>
    %355 = tpu.matmul %353, %261, %cst_72 {dimension_numbers = #tpu.dot_dimension_numbers<[1], [0], [0], [1], [0, 0, 1, 1], [], []>} : vector<8x32xf32>, vector<32x96xf32>, vector<8x96xf32> -> vector<8x96xf32>
    %356 = arith.addf %355, %264 : vector<8x96xf32>
    %357 = vector.extract_strided_slice %354 {offsets = [0, 0], sizes = [8, 32], strides = [1, 1]} : vector<8x96xf32> to vector<8x32xf32>
    %358 = vector.extract_strided_slice %356 {offsets = [0, 0], sizes = [8, 32], strides = [1, 1]} : vector<8x96xf32> to vector<8x32xf32>
    %359 = arith.addf %357, %358 : vector<8x32xf32>
    %360 = arith.negf %359 : vector<8x32xf32>
    %361 = math.exp %360 : vector<8x32xf32>
    %cst_73 = arith.constant 1.000000e+00 : f32
    %362 = vector.broadcast %cst_73 : f32 to vector<8x32xf32>
    %363 = arith.addf %362, %361 : vector<8x32xf32>
    %364 = arith.divf %362, %363 : vector<8x32xf32>
    %365 = vector.extract_strided_slice %354 {offsets = [0, 32], sizes = [8, 32], strides = [1, 1]} : vector<8x96xf32> to vector<8x32xf32>
    %366 = vector.extract_strided_slice %356 {offsets = [0, 32], sizes = [8, 32], strides = [1, 1]} : vector<8x96xf32> to vector<8x32xf32>
    %367 = arith.addf %365, %366 : vector<8x32xf32>
    %368 = arith.negf %367 : vector<8x32xf32>
    %369 = math.exp %368 : vector<8x32xf32>
    %cst_74 = arith.constant 1.000000e+00 : f32
    %370 = vector.broadcast %cst_74 : f32 to vector<8x32xf32>
    %371 = arith.addf %370, %369 : vector<8x32xf32>
    %372 = arith.divf %370, %371 : vector<8x32xf32>
    %373 = vector.extract_strided_slice %354 {offsets = [0, 64], sizes = [8, 32], strides = [1, 1]} : vector<8x96xf32> to vector<8x32xf32>
    %374 = vector.extract_strided_slice %356 {offsets = [0, 64], sizes = [8, 32], strides = [1, 1]} : vector<8x96xf32> to vector<8x32xf32>
    %375 = arith.mulf %364, %374 : vector<8x32xf32>
    %376 = arith.addf %373, %375 : vector<8x32xf32>
    %377 = math.tanh %376 : vector<8x32xf32>
    %cst_75 = arith.constant 1.000000e+00 : f32
    %378 = vector.broadcast %cst_75 : f32 to vector<8x32xf32>
    %379 = arith.subf %378, %372 : vector<8x32xf32>
    %380 = arith.mulf %379, %377 : vector<8x32xf32>
    %381 = arith.mulf %372, %353 : vector<8x32xf32>
    %382 = arith.addf %380, %381 : vector<8x32xf32>
    %383 = vector.extract_strided_slice %259 {offsets = [32, 0], sizes = [8, 96], strides = [1, 1]} : vector<64x96xf32> to vector<8x96xf32>
    %cst_76 = arith.constant dense<0.000000e+00> : vector<8x96xf32>
    %384 = tpu.matmul %382, %261, %cst_76 {dimension_numbers = #tpu.dot_dimension_numbers<[1], [0], [0], [1], [0, 0, 1, 1], [], []>} : vector<8x32xf32>, vector<32x96xf32>, vector<8x96xf32> -> vector<8x96xf32>
    %385 = arith.addf %384, %264 : vector<8x96xf32>
    %386 = vector.extract_strided_slice %383 {offsets = [0, 0], sizes = [8, 32], strides = [1, 1]} : vector<8x96xf32> to vector<8x32xf32>
    %387 = vector.extract_strided_slice %385 {offsets = [0, 0], sizes = [8, 32], strides = [1, 1]} : vector<8x96xf32> to vector<8x32xf32>
    %388 = arith.addf %386, %387 : vector<8x32xf32>
    %389 = arith.negf %388 : vector<8x32xf32>
    %390 = math.exp %389 : vector<8x32xf32>
    %cst_77 = arith.constant 1.000000e+00 : f32
    %391 = vector.broadcast %cst_77 : f32 to vector<8x32xf32>
    %392 = arith.addf %391, %390 : vector<8x32xf32>
    %393 = arith.divf %391, %392 : vector<8x32xf32>
    %394 = vector.extract_strided_slice %383 {offsets = [0, 32], sizes = [8, 32], strides = [1, 1]} : vector<8x96xf32> to vector<8x32xf32>
    %395 = vector.extract_strided_slice %385 {offsets = [0, 32], sizes = [8, 32], strides = [1, 1]} : vector<8x96xf32> to vector<8x32xf32>
    %396 = arith.addf %394, %395 : vector<8x32xf32>
    %397 = arith.negf %396 : vector<8x32xf32>
    %398 = math.exp %397 : vector<8x32xf32>
    %cst_78 = arith.constant 1.000000e+00 : f32
    %399 = vector.broadcast %cst_78 : f32 to vector<8x32xf32>
    %400 = arith.addf %399, %398 : vector<8x32xf32>
    %401 = arith.divf %399, %400 : vector<8x32xf32>
    %402 = vector.extract_strided_slice %383 {offsets = [0, 64], sizes = [8, 32], strides = [1, 1]} : vector<8x96xf32> to vector<8x32xf32>
    %403 = vector.extract_strided_slice %385 {offsets = [0, 64], sizes = [8, 32], strides = [1, 1]} : vector<8x96xf32> to vector<8x32xf32>
    %404 = arith.mulf %393, %403 : vector<8x32xf32>
    %405 = arith.addf %402, %404 : vector<8x32xf32>
    %406 = math.tanh %405 : vector<8x32xf32>
    %cst_79 = arith.constant 1.000000e+00 : f32
    %407 = vector.broadcast %cst_79 : f32 to vector<8x32xf32>
    %408 = arith.subf %407, %401 : vector<8x32xf32>
    %409 = arith.mulf %408, %406 : vector<8x32xf32>
    %410 = arith.mulf %401, %382 : vector<8x32xf32>
    %411 = arith.addf %409, %410 : vector<8x32xf32>
    %412 = vector.extract_strided_slice %259 {offsets = [40, 0], sizes = [8, 96], strides = [1, 1]} : vector<64x96xf32> to vector<8x96xf32>
    %cst_80 = arith.constant dense<0.000000e+00> : vector<8x96xf32>
    %413 = tpu.matmul %411, %261, %cst_80 {dimension_numbers = #tpu.dot_dimension_numbers<[1], [0], [0], [1], [0, 0, 1, 1], [], []>} : vector<8x32xf32>, vector<32x96xf32>, vector<8x96xf32> -> vector<8x96xf32>
    %414 = arith.addf %413, %264 : vector<8x96xf32>
    %415 = vector.extract_strided_slice %412 {offsets = [0, 0], sizes = [8, 32], strides = [1, 1]} : vector<8x96xf32> to vector<8x32xf32>
    %416 = vector.extract_strided_slice %414 {offsets = [0, 0], sizes = [8, 32], strides = [1, 1]} : vector<8x96xf32> to vector<8x32xf32>
    %417 = arith.addf %415, %416 : vector<8x32xf32>
    %418 = arith.negf %417 : vector<8x32xf32>
    %419 = math.exp %418 : vector<8x32xf32>
    %cst_81 = arith.constant 1.000000e+00 : f32
    %420 = vector.broadcast %cst_81 : f32 to vector<8x32xf32>
    %421 = arith.addf %420, %419 : vector<8x32xf32>
    %422 = arith.divf %420, %421 : vector<8x32xf32>
    %423 = vector.extract_strided_slice %412 {offsets = [0, 32], sizes = [8, 32], strides = [1, 1]} : vector<8x96xf32> to vector<8x32xf32>
    %424 = vector.extract_strided_slice %414 {offsets = [0, 32], sizes = [8, 32], strides = [1, 1]} : vector<8x96xf32> to vector<8x32xf32>
    %425 = arith.addf %423, %424 : vector<8x32xf32>
    %426 = arith.negf %425 : vector<8x32xf32>
    %427 = math.exp %426 : vector<8x32xf32>
    %cst_82 = arith.constant 1.000000e+00 : f32
    %428 = vector.broadcast %cst_82 : f32 to vector<8x32xf32>
    %429 = arith.addf %428, %427 : vector<8x32xf32>
    %430 = arith.divf %428, %429 : vector<8x32xf32>
    %431 = vector.extract_strided_slice %412 {offsets = [0, 64], sizes = [8, 32], strides = [1, 1]} : vector<8x96xf32> to vector<8x32xf32>
    %432 = vector.extract_strided_slice %414 {offsets = [0, 64], sizes = [8, 32], strides = [1, 1]} : vector<8x96xf32> to vector<8x32xf32>
    %433 = arith.mulf %422, %432 : vector<8x32xf32>
    %434 = arith.addf %431, %433 : vector<8x32xf32>
    %435 = math.tanh %434 : vector<8x32xf32>
    %cst_83 = arith.constant 1.000000e+00 : f32
    %436 = vector.broadcast %cst_83 : f32 to vector<8x32xf32>
    %437 = arith.subf %436, %430 : vector<8x32xf32>
    %438 = arith.mulf %437, %435 : vector<8x32xf32>
    %439 = arith.mulf %430, %411 : vector<8x32xf32>
    %440 = arith.addf %438, %439 : vector<8x32xf32>
    %441 = vector.extract_strided_slice %259 {offsets = [48, 0], sizes = [8, 96], strides = [1, 1]} : vector<64x96xf32> to vector<8x96xf32>
    %cst_84 = arith.constant dense<0.000000e+00> : vector<8x96xf32>
    %442 = tpu.matmul %440, %261, %cst_84 {dimension_numbers = #tpu.dot_dimension_numbers<[1], [0], [0], [1], [0, 0, 1, 1], [], []>} : vector<8x32xf32>, vector<32x96xf32>, vector<8x96xf32> -> vector<8x96xf32>
    %443 = arith.addf %442, %264 : vector<8x96xf32>
    %444 = vector.extract_strided_slice %441 {offsets = [0, 0], sizes = [8, 32], strides = [1, 1]} : vector<8x96xf32> to vector<8x32xf32>
    %445 = vector.extract_strided_slice %443 {offsets = [0, 0], sizes = [8, 32], strides = [1, 1]} : vector<8x96xf32> to vector<8x32xf32>
    %446 = arith.addf %444, %445 : vector<8x32xf32>
    %447 = arith.negf %446 : vector<8x32xf32>
    %448 = math.exp %447 : vector<8x32xf32>
    %cst_85 = arith.constant 1.000000e+00 : f32
    %449 = vector.broadcast %cst_85 : f32 to vector<8x32xf32>
    %450 = arith.addf %449, %448 : vector<8x32xf32>
    %451 = arith.divf %449, %450 : vector<8x32xf32>
    %452 = vector.extract_strided_slice %441 {offsets = [0, 32], sizes = [8, 32], strides = [1, 1]} : vector<8x96xf32> to vector<8x32xf32>
    %453 = vector.extract_strided_slice %443 {offsets = [0, 32], sizes = [8, 32], strides = [1, 1]} : vector<8x96xf32> to vector<8x32xf32>
    %454 = arith.addf %452, %453 : vector<8x32xf32>
    %455 = arith.negf %454 : vector<8x32xf32>
    %456 = math.exp %455 : vector<8x32xf32>
    %cst_86 = arith.constant 1.000000e+00 : f32
    %457 = vector.broadcast %cst_86 : f32 to vector<8x32xf32>
    %458 = arith.addf %457, %456 : vector<8x32xf32>
    %459 = arith.divf %457, %458 : vector<8x32xf32>
    %460 = vector.extract_strided_slice %441 {offsets = [0, 64], sizes = [8, 32], strides = [1, 1]} : vector<8x96xf32> to vector<8x32xf32>
    %461 = vector.extract_strided_slice %443 {offsets = [0, 64], sizes = [8, 32], strides = [1, 1]} : vector<8x96xf32> to vector<8x32xf32>
    %462 = arith.mulf %451, %461 : vector<8x32xf32>
    %463 = arith.addf %460, %462 : vector<8x32xf32>
    %464 = math.tanh %463 : vector<8x32xf32>
    %cst_87 = arith.constant 1.000000e+00 : f32
    %465 = vector.broadcast %cst_87 : f32 to vector<8x32xf32>
    %466 = arith.subf %465, %459 : vector<8x32xf32>
    %467 = arith.mulf %466, %464 : vector<8x32xf32>
    %468 = arith.mulf %459, %440 : vector<8x32xf32>
    %469 = arith.addf %467, %468 : vector<8x32xf32>
    %470 = vector.extract_strided_slice %259 {offsets = [56, 0], sizes = [8, 96], strides = [1, 1]} : vector<64x96xf32> to vector<8x96xf32>
    %cst_88 = arith.constant dense<0.000000e+00> : vector<8x96xf32>
    %471 = tpu.matmul %469, %261, %cst_88 {dimension_numbers = #tpu.dot_dimension_numbers<[1], [0], [0], [1], [0, 0, 1, 1], [], []>} : vector<8x32xf32>, vector<32x96xf32>, vector<8x96xf32> -> vector<8x96xf32>
    %472 = arith.addf %471, %264 : vector<8x96xf32>
    %473 = vector.extract_strided_slice %470 {offsets = [0, 0], sizes = [8, 32], strides = [1, 1]} : vector<8x96xf32> to vector<8x32xf32>
    %474 = vector.extract_strided_slice %472 {offsets = [0, 0], sizes = [8, 32], strides = [1, 1]} : vector<8x96xf32> to vector<8x32xf32>
    %475 = arith.addf %473, %474 : vector<8x32xf32>
    %476 = arith.negf %475 : vector<8x32xf32>
    %477 = math.exp %476 : vector<8x32xf32>
    %cst_89 = arith.constant 1.000000e+00 : f32
    %478 = vector.broadcast %cst_89 : f32 to vector<8x32xf32>
    %479 = arith.addf %478, %477 : vector<8x32xf32>
    %480 = arith.divf %478, %479 : vector<8x32xf32>
    %481 = vector.extract_strided_slice %470 {offsets = [0, 32], sizes = [8, 32], strides = [1, 1]} : vector<8x96xf32> to vector<8x32xf32>
    %482 = vector.extract_strided_slice %472 {offsets = [0, 32], sizes = [8, 32], strides = [1, 1]} : vector<8x96xf32> to vector<8x32xf32>
    %483 = arith.addf %481, %482 : vector<8x32xf32>
    %484 = arith.negf %483 : vector<8x32xf32>
    %485 = math.exp %484 : vector<8x32xf32>
    %cst_90 = arith.constant 1.000000e+00 : f32
    %486 = vector.broadcast %cst_90 : f32 to vector<8x32xf32>
    %487 = arith.addf %486, %485 : vector<8x32xf32>
    %488 = arith.divf %486, %487 : vector<8x32xf32>
    %489 = vector.extract_strided_slice %470 {offsets = [0, 64], sizes = [8, 32], strides = [1, 1]} : vector<8x96xf32> to vector<8x32xf32>
    %490 = vector.extract_strided_slice %472 {offsets = [0, 64], sizes = [8, 32], strides = [1, 1]} : vector<8x96xf32> to vector<8x32xf32>
    %491 = arith.mulf %480, %490 : vector<8x32xf32>
    %492 = arith.addf %489, %491 : vector<8x32xf32>
    %493 = math.tanh %492 : vector<8x32xf32>
    %cst_91 = arith.constant 1.000000e+00 : f32
    %494 = vector.broadcast %cst_91 : f32 to vector<8x32xf32>
    %495 = arith.subf %494, %488 : vector<8x32xf32>
    %496 = arith.mulf %495, %493 : vector<8x32xf32>
    %497 = arith.mulf %488, %469 : vector<8x32xf32>
    %498 = arith.addf %496, %497 : vector<8x32xf32>
    %c1_92 = arith.constant 1 : index
    %c0_93 = arith.constant 0 : index
    %c0_94 = arith.constant 0 : index
    %499 = vector.load %arg8[%c1_92, %c0_93, %c0_94] : memref<3x8x32xf32, #tpu.memory_space<vmem>>, vector<1x8x32xf32>
    %500 = vector.shape_cast %499 : vector<1x8x32xf32> to vector<8x32xf32>
    %501 = vector.shape_cast %498 : vector<8x32xf32> to vector<1x8x32xf32>
    tpu.vector_store %arg8[%c1_92, %c0_93, %c0_94], %501 {strides = array<i32>} : memref<3x8x32xf32, #tpu.memory_space<vmem>>, vector<1x8x32xf32>,
    %502 = tpu.concatenate %295, %324, %353, %382, %411, %440, %469, %498 in 0 : vector<8x32xf32>, vector<8x32xf32>, vector<8x32xf32>, vector<8x32xf32>, vector<8x32xf32>, vector<8x32xf32>, vector<8x32xf32>, vector<8x32xf32> -> vector<64x32xf32>
    %c2 = arith.constant 2 : index
    %c0_95 = arith.constant 0 : index
    %c0_96 = arith.constant 0 : index
    %503 = vector.load %arg4[%c2, %c0_95, %c0_96] : memref<3x2x96xf32, #tpu.memory_space<vmem>>, vector<1x2x96xf32>
    %504 = vector.shape_cast %503 : vector<1x2x96xf32> to vector<2x96xf32>
    %c2_97 = arith.constant 2 : index
    %c0_98 = arith.constant 0 : index
    %c0_99 = arith.constant 0 : index
    %505 = vector.load %arg2[%c2_97, %c0_98, %c0_99] : memref<3x32x96xf32, #tpu.memory_space<vmem>>, vector<1x32x96xf32>
    %506 = vector.shape_cast %505 : vector<1x32x96xf32> to vector<32x96xf32>
    %cst_100 = arith.constant dense<0.000000e+00> : vector<64x96xf32>
    %507 = tpu.matmul %502, %506, %cst_100 {dimension_numbers = #tpu.dot_dimension_numbers<[1], [0], [0], [1], [0, 0, 1, 1], [], []>} : vector<64x32xf32>, vector<32x96xf32>, vector<64x96xf32> -> vector<64x96xf32>
    %508 = vector.extract_strided_slice %504 {offsets = [0, 0], sizes = [1, 96], strides = [1, 1]} : vector<2x96xf32> to vector<1x96xf32>
    %509 = vector.broadcast %508 : vector<1x96xf32> to vector<64x96xf32>
    %510 = arith.addf %507, %509 : vector<64x96xf32>
    %c2_101 = arith.constant 2 : index
    %c0_102 = arith.constant 0 : index
    %c0_103 = arith.constant 0 : index
    %511 = vector.load %arg3[%c2_101, %c0_102, %c0_103] : memref<3x32x96xf32, #tpu.memory_space<vmem>>, vector<1x32x96xf32>
    %512 = vector.shape_cast %511 : vector<1x32x96xf32> to vector<32x96xf32>
    %513 = vector.extract_strided_slice %504 {offsets = [1, 0], sizes = [1, 96], strides = [1, 1]} : vector<2x96xf32> to vector<1x96xf32>
    %514 = vector.shape_cast %513 : vector<1x96xf32> to vector<1x96xf32>
    %515 = vector.broadcast %514 : vector<1x96xf32> to vector<8x96xf32>
    %c2_104 = arith.constant 2 : index
    %c0_105 = arith.constant 0 : index
    %c0_106 = arith.constant 0 : index
    %516 = vector.load %arg1[%c2_104, %c0_105, %c0_106] : memref<3x8x32xf32, #tpu.memory_space<vmem>>, vector<1x8x32xf32>
    %517 = vector.shape_cast %516 : vector<1x8x32xf32> to vector<8x32xf32>
    %518 = vector.extract_strided_slice %510 {offsets = [0, 0], sizes = [8, 96], strides = [1, 1]} : vector<64x96xf32> to vector<8x96xf32>
    %cst_107 = arith.constant dense<0.000000e+00> : vector<8x96xf32>
    %519 = tpu.matmul %517, %512, %cst_107 {dimension_numbers = #tpu.dot_dimension_numbers<[1], [0], [0], [1], [0, 0, 1, 1], [], []>} : vector<8x32xf32>, vector<32x96xf32>, vector<8x96xf32> -> vector<8x96xf32>
    %520 = arith.addf %519, %515 : vector<8x96xf32>
    %521 = vector.extract_strided_slice %518 {offsets = [0, 0], sizes = [8, 32], strides = [1, 1]} : vector<8x96xf32> to vector<8x32xf32>
    %522 = vector.extract_strided_slice %520 {offsets = [0, 0], sizes = [8, 32], strides = [1, 1]} : vector<8x96xf32> to vector<8x32xf32>
    %523 = arith.addf %521, %522 : vector<8x32xf32>
    %524 = arith.negf %523 : vector<8x32xf32>
    %525 = math.exp %524 : vector<8x32xf32>
    %cst_108 = arith.constant 1.000000e+00 : f32
    %526 = vector.broadcast %cst_108 : f32 to vector<8x32xf32>
    %527 = arith.addf %526, %525 : vector<8x32xf32>
    %528 = arith.divf %526, %527 : vector<8x32xf32>
    %529 = vector.extract_strided_slice %518 {offsets = [0, 32], sizes = [8, 32], strides = [1, 1]} : vector<8x96xf32> to vector<8x32xf32>
    %530 = vector.extract_strided_slice %520 {offsets = [0, 32], sizes = [8, 32], strides = [1, 1]} : vector<8x96xf32> to vector<8x32xf32>
    %531 = arith.addf %529, %530 : vector<8x32xf32>
    %532 = arith.negf %531 : vector<8x32xf32>
    %533 = math.exp %532 : vector<8x32xf32>
    %cst_109 = arith.constant 1.000000e+00 : f32
    %534 = vector.broadcast %cst_109 : f32 to vector<8x32xf32>
    %535 = arith.addf %534, %533 : vector<8x32xf32>
    %536 = arith.divf %534, %535 : vector<8x32xf32>
    %537 = vector.extract_strided_slice %518 {offsets = [0, 64], sizes = [8, 32], strides = [1, 1]} : vector<8x96xf32> to vector<8x32xf32>
    %538 = vector.extract_strided_slice %520 {offsets = [0, 64], sizes = [8, 32], strides = [1, 1]} : vector<8x96xf32> to vector<8x32xf32>
    %539 = arith.mulf %528, %538 : vector<8x32xf32>
    %540 = arith.addf %537, %539 : vector<8x32xf32>
    %541 = math.tanh %540 : vector<8x32xf32>
    %cst_110 = arith.constant 1.000000e+00 : f32
    %542 = vector.broadcast %cst_110 : f32 to vector<8x32xf32>
    %543 = arith.subf %542, %536 : vector<8x32xf32>
    %544 = arith.mulf %543, %541 : vector<8x32xf32>
    %545 = arith.mulf %536, %517 : vector<8x32xf32>
    %546 = arith.addf %544, %545 : vector<8x32xf32>
    %547 = vector.extract_strided_slice %510 {offsets = [8, 0], sizes = [8, 96], strides = [1, 1]} : vector<64x96xf32> to vector<8x96xf32>
    %cst_111 = arith.constant dense<0.000000e+00> : vector<8x96xf32>
    %548 = tpu.matmul %546, %512, %cst_111 {dimension_numbers = #tpu.dot_dimension_numbers<[1], [0], [0], [1], [0, 0, 1, 1], [], []>} : vector<8x32xf32>, vector<32x96xf32>, vector<8x96xf32> -> vector<8x96xf32>
    %549 = arith.addf %548, %515 : vector<8x96xf32>
    %550 = vector.extract_strided_slice %547 {offsets = [0, 0], sizes = [8, 32], strides = [1, 1]} : vector<8x96xf32> to vector<8x32xf32>
    %551 = vector.extract_strided_slice %549 {offsets = [0, 0], sizes = [8, 32], strides = [1, 1]} : vector<8x96xf32> to vector<8x32xf32>
    %552 = arith.addf %550, %551 : vector<8x32xf32>
    %553 = arith.negf %552 : vector<8x32xf32>
    %554 = math.exp %553 : vector<8x32xf32>
    %cst_112 = arith.constant 1.000000e+00 : f32
    %555 = vector.broadcast %cst_112 : f32 to vector<8x32xf32>
    %556 = arith.addf %555, %554 : vector<8x32xf32>
    %557 = arith.divf %555, %556 : vector<8x32xf32>
    %558 = vector.extract_strided_slice %547 {offsets = [0, 32], sizes = [8, 32], strides = [1, 1]} : vector<8x96xf32> to vector<8x32xf32>
    %559 = vector.extract_strided_slice %549 {offsets = [0, 32], sizes = [8, 32], strides = [1, 1]} : vector<8x96xf32> to vector<8x32xf32>
    %560 = arith.addf %558, %559 : vector<8x32xf32>
    %561 = arith.negf %560 : vector<8x32xf32>
    %562 = math.exp %561 : vector<8x32xf32>
    %cst_113 = arith.constant 1.000000e+00 : f32
    %563 = vector.broadcast %cst_113 : f32 to vector<8x32xf32>
    %564 = arith.addf %563, %562 : vector<8x32xf32>
    %565 = arith.divf %563, %564 : vector<8x32xf32>
    %566 = vector.extract_strided_slice %547 {offsets = [0, 64], sizes = [8, 32], strides = [1, 1]} : vector<8x96xf32> to vector<8x32xf32>
    %567 = vector.extract_strided_slice %549 {offsets = [0, 64], sizes = [8, 32], strides = [1, 1]} : vector<8x96xf32> to vector<8x32xf32>
    %568 = arith.mulf %557, %567 : vector<8x32xf32>
    %569 = arith.addf %566, %568 : vector<8x32xf32>
    %570 = math.tanh %569 : vector<8x32xf32>
    %cst_114 = arith.constant 1.000000e+00 : f32
    %571 = vector.broadcast %cst_114 : f32 to vector<8x32xf32>
    %572 = arith.subf %571, %565 : vector<8x32xf32>
    %573 = arith.mulf %572, %570 : vector<8x32xf32>
    %574 = arith.mulf %565, %546 : vector<8x32xf32>
    %575 = arith.addf %573, %574 : vector<8x32xf32>
    %576 = vector.extract_strided_slice %510 {offsets = [16, 0], sizes = [8, 96], strides = [1, 1]} : vector<64x96xf32> to vector<8x96xf32>
    %cst_115 = arith.constant dense<0.000000e+00> : vector<8x96xf32>
    %577 = tpu.matmul %575, %512, %cst_115 {dimension_numbers = #tpu.dot_dimension_numbers<[1], [0], [0], [1], [0, 0, 1, 1], [], []>} : vector<8x32xf32>, vector<32x96xf32>, vector<8x96xf32> -> vector<8x96xf32>
    %578 = arith.addf %577, %515 : vector<8x96xf32>
    %579 = vector.extract_strided_slice %576 {offsets = [0, 0], sizes = [8, 32], strides = [1, 1]} : vector<8x96xf32> to vector<8x32xf32>
    %580 = vector.extract_strided_slice %578 {offsets = [0, 0], sizes = [8, 32], strides = [1, 1]} : vector<8x96xf32> to vector<8x32xf32>
    %581 = arith.addf %579, %580 : vector<8x32xf32>
    %582 = arith.negf %581 : vector<8x32xf32>
    %583 = math.exp %582 : vector<8x32xf32>
    %cst_116 = arith.constant 1.000000e+00 : f32
    %584 = vector.broadcast %cst_116 : f32 to vector<8x32xf32>
    %585 = arith.addf %584, %583 : vector<8x32xf32>
    %586 = arith.divf %584, %585 : vector<8x32xf32>
    %587 = vector.extract_strided_slice %576 {offsets = [0, 32], sizes = [8, 32], strides = [1, 1]} : vector<8x96xf32> to vector<8x32xf32>
    %588 = vector.extract_strided_slice %578 {offsets = [0, 32], sizes = [8, 32], strides = [1, 1]} : vector<8x96xf32> to vector<8x32xf32>
    %589 = arith.addf %587, %588 : vector<8x32xf32>
    %590 = arith.negf %589 : vector<8x32xf32>
    %591 = math.exp %590 : vector<8x32xf32>
    %cst_117 = arith.constant 1.000000e+00 : f32
    %592 = vector.broadcast %cst_117 : f32 to vector<8x32xf32>
    %593 = arith.addf %592, %591 : vector<8x32xf32>
    %594 = arith.divf %592, %593 : vector<8x32xf32>
    %595 = vector.extract_strided_slice %576 {offsets = [0, 64], sizes = [8, 32], strides = [1, 1]} : vector<8x96xf32> to vector<8x32xf32>
    %596 = vector.extract_strided_slice %578 {offsets = [0, 64], sizes = [8, 32], strides = [1, 1]} : vector<8x96xf32> to vector<8x32xf32>
    %597 = arith.mulf %586, %596 : vector<8x32xf32>
    %598 = arith.addf %595, %597 : vector<8x32xf32>
    %599 = math.tanh %598 : vector<8x32xf32>
    %cst_118 = arith.constant 1.000000e+00 : f32
    %600 = vector.broadcast %cst_118 : f32 to vector<8x32xf32>
    %601 = arith.subf %600, %594 : vector<8x32xf32>
    %602 = arith.mulf %601, %599 : vector<8x32xf32>
    %603 = arith.mulf %594, %575 : vector<8x32xf32>
    %604 = arith.addf %602, %603 : vector<8x32xf32>
    %605 = vector.extract_strided_slice %510 {offsets = [24, 0], sizes = [8, 96], strides = [1, 1]} : vector<64x96xf32> to vector<8x96xf32>
    %cst_119 = arith.constant dense<0.000000e+00> : vector<8x96xf32>
    %606 = tpu.matmul %604, %512, %cst_119 {dimension_numbers = #tpu.dot_dimension_numbers<[1], [0], [0], [1], [0, 0, 1, 1], [], []>} : vector<8x32xf32>, vector<32x96xf32>, vector<8x96xf32> -> vector<8x96xf32>
    %607 = arith.addf %606, %515 : vector<8x96xf32>
    %608 = vector.extract_strided_slice %605 {offsets = [0, 0], sizes = [8, 32], strides = [1, 1]} : vector<8x96xf32> to vector<8x32xf32>
    %609 = vector.extract_strided_slice %607 {offsets = [0, 0], sizes = [8, 32], strides = [1, 1]} : vector<8x96xf32> to vector<8x32xf32>
    %610 = arith.addf %608, %609 : vector<8x32xf32>
    %611 = arith.negf %610 : vector<8x32xf32>
    %612 = math.exp %611 : vector<8x32xf32>
    %cst_120 = arith.constant 1.000000e+00 : f32
    %613 = vector.broadcast %cst_120 : f32 to vector<8x32xf32>
    %614 = arith.addf %613, %612 : vector<8x32xf32>
    %615 = arith.divf %613, %614 : vector<8x32xf32>
    %616 = vector.extract_strided_slice %605 {offsets = [0, 32], sizes = [8, 32], strides = [1, 1]} : vector<8x96xf32> to vector<8x32xf32>
    %617 = vector.extract_strided_slice %607 {offsets = [0, 32], sizes = [8, 32], strides = [1, 1]} : vector<8x96xf32> to vector<8x32xf32>
    %618 = arith.addf %616, %617 : vector<8x32xf32>
    %619 = arith.negf %618 : vector<8x32xf32>
    %620 = math.exp %619 : vector<8x32xf32>
    %cst_121 = arith.constant 1.000000e+00 : f32
    %621 = vector.broadcast %cst_121 : f32 to vector<8x32xf32>
    %622 = arith.addf %621, %620 : vector<8x32xf32>
    %623 = arith.divf %621, %622 : vector<8x32xf32>
    %624 = vector.extract_strided_slice %605 {offsets = [0, 64], sizes = [8, 32], strides = [1, 1]} : vector<8x96xf32> to vector<8x32xf32>
    %625 = vector.extract_strided_slice %607 {offsets = [0, 64], sizes = [8, 32], strides = [1, 1]} : vector<8x96xf32> to vector<8x32xf32>
    %626 = arith.mulf %615, %625 : vector<8x32xf32>
    %627 = arith.addf %624, %626 : vector<8x32xf32>
    %628 = math.tanh %627 : vector<8x32xf32>
    %cst_122 = arith.constant 1.000000e+00 : f32
    %629 = vector.broadcast %cst_122 : f32 to vector<8x32xf32>
    %630 = arith.subf %629, %623 : vector<8x32xf32>
    %631 = arith.mulf %630, %628 : vector<8x32xf32>
    %632 = arith.mulf %623, %604 : vector<8x32xf32>
    %633 = arith.addf %631, %632 : vector<8x32xf32>
    %634 = vector.extract_strided_slice %510 {offsets = [32, 0], sizes = [8, 96], strides = [1, 1]} : vector<64x96xf32> to vector<8x96xf32>
    %cst_123 = arith.constant dense<0.000000e+00> : vector<8x96xf32>
    %635 = tpu.matmul %633, %512, %cst_123 {dimension_numbers = #tpu.dot_dimension_numbers<[1], [0], [0], [1], [0, 0, 1, 1], [], []>} : vector<8x32xf32>, vector<32x96xf32>, vector<8x96xf32> -> vector<8x96xf32>
    %636 = arith.addf %635, %515 : vector<8x96xf32>
    %637 = vector.extract_strided_slice %634 {offsets = [0, 0], sizes = [8, 32], strides = [1, 1]} : vector<8x96xf32> to vector<8x32xf32>
    %638 = vector.extract_strided_slice %636 {offsets = [0, 0], sizes = [8, 32], strides = [1, 1]} : vector<8x96xf32> to vector<8x32xf32>
    %639 = arith.addf %637, %638 : vector<8x32xf32>
    %640 = arith.negf %639 : vector<8x32xf32>
    %641 = math.exp %640 : vector<8x32xf32>
    %cst_124 = arith.constant 1.000000e+00 : f32
    %642 = vector.broadcast %cst_124 : f32 to vector<8x32xf32>
    %643 = arith.addf %642, %641 : vector<8x32xf32>
    %644 = arith.divf %642, %643 : vector<8x32xf32>
    %645 = vector.extract_strided_slice %634 {offsets = [0, 32], sizes = [8, 32], strides = [1, 1]} : vector<8x96xf32> to vector<8x32xf32>
    %646 = vector.extract_strided_slice %636 {offsets = [0, 32], sizes = [8, 32], strides = [1, 1]} : vector<8x96xf32> to vector<8x32xf32>
    %647 = arith.addf %645, %646 : vector<8x32xf32>
    %648 = arith.negf %647 : vector<8x32xf32>
    %649 = math.exp %648 : vector<8x32xf32>
    %cst_125 = arith.constant 1.000000e+00 : f32
    %650 = vector.broadcast %cst_125 : f32 to vector<8x32xf32>
    %651 = arith.addf %650, %649 : vector<8x32xf32>
    %652 = arith.divf %650, %651 : vector<8x32xf32>
    %653 = vector.extract_strided_slice %634 {offsets = [0, 64], sizes = [8, 32], strides = [1, 1]} : vector<8x96xf32> to vector<8x32xf32>
    %654 = vector.extract_strided_slice %636 {offsets = [0, 64], sizes = [8, 32], strides = [1, 1]} : vector<8x96xf32> to vector<8x32xf32>
    %655 = arith.mulf %644, %654 : vector<8x32xf32>
    %656 = arith.addf %653, %655 : vector<8x32xf32>
    %657 = math.tanh %656 : vector<8x32xf32>
    %cst_126 = arith.constant 1.000000e+00 : f32
    %658 = vector.broadcast %cst_126 : f32 to vector<8x32xf32>
    %659 = arith.subf %658, %652 : vector<8x32xf32>
    %660 = arith.mulf %659, %657 : vector<8x32xf32>
    %661 = arith.mulf %652, %633 : vector<8x32xf32>
    %662 = arith.addf %660, %661 : vector<8x32xf32>
    %663 = vector.extract_strided_slice %510 {offsets = [40, 0], sizes = [8, 96], strides = [1, 1]} : vector<64x96xf32> to vector<8x96xf32>
    %cst_127 = arith.constant dense<0.000000e+00> : vector<8x96xf32>
    %664 = tpu.matmul %662, %512, %cst_127 {dimension_numbers = #tpu.dot_dimension_numbers<[1], [0], [0], [1], [0, 0, 1, 1], [], []>} : vector<8x32xf32>, vector<32x96xf32>, vector<8x96xf32> -> vector<8x96xf32>
    %665 = arith.addf %664, %515 : vector<8x96xf32>
    %666 = vector.extract_strided_slice %663 {offsets = [0, 0], sizes = [8, 32], strides = [1, 1]} : vector<8x96xf32> to vector<8x32xf32>
    %667 = vector.extract_strided_slice %665 {offsets = [0, 0], sizes = [8, 32], strides = [1, 1]} : vector<8x96xf32> to vector<8x32xf32>
    %668 = arith.addf %666, %667 : vector<8x32xf32>
    %669 = arith.negf %668 : vector<8x32xf32>
    %670 = math.exp %669 : vector<8x32xf32>
    %cst_128 = arith.constant 1.000000e+00 : f32
    %671 = vector.broadcast %cst_128 : f32 to vector<8x32xf32>
    %672 = arith.addf %671, %670 : vector<8x32xf32>
    %673 = arith.divf %671, %672 : vector<8x32xf32>
    %674 = vector.extract_strided_slice %663 {offsets = [0, 32], sizes = [8, 32], strides = [1, 1]} : vector<8x96xf32> to vector<8x32xf32>
    %675 = vector.extract_strided_slice %665 {offsets = [0, 32], sizes = [8, 32], strides = [1, 1]} : vector<8x96xf32> to vector<8x32xf32>
    %676 = arith.addf %674, %675 : vector<8x32xf32>
    %677 = arith.negf %676 : vector<8x32xf32>
    %678 = math.exp %677 : vector<8x32xf32>
    %cst_129 = arith.constant 1.000000e+00 : f32
    %679 = vector.broadcast %cst_129 : f32 to vector<8x32xf32>
    %680 = arith.addf %679, %678 : vector<8x32xf32>
    %681 = arith.divf %679, %680 : vector<8x32xf32>
    %682 = vector.extract_strided_slice %663 {offsets = [0, 64], sizes = [8, 32], strides = [1, 1]} : vector<8x96xf32> to vector<8x32xf32>
    %683 = vector.extract_strided_slice %665 {offsets = [0, 64], sizes = [8, 32], strides = [1, 1]} : vector<8x96xf32> to vector<8x32xf32>
    %684 = arith.mulf %673, %683 : vector<8x32xf32>
    %685 = arith.addf %682, %684 : vector<8x32xf32>
    %686 = math.tanh %685 : vector<8x32xf32>
    %cst_130 = arith.constant 1.000000e+00 : f32
    %687 = vector.broadcast %cst_130 : f32 to vector<8x32xf32>
    %688 = arith.subf %687, %681 : vector<8x32xf32>
    %689 = arith.mulf %688, %686 : vector<8x32xf32>
    %690 = arith.mulf %681, %662 : vector<8x32xf32>
    %691 = arith.addf %689, %690 : vector<8x32xf32>
    %692 = vector.extract_strided_slice %510 {offsets = [48, 0], sizes = [8, 96], strides = [1, 1]} : vector<64x96xf32> to vector<8x96xf32>
    %cst_131 = arith.constant dense<0.000000e+00> : vector<8x96xf32>
    %693 = tpu.matmul %691, %512, %cst_131 {dimension_numbers = #tpu.dot_dimension_numbers<[1], [0], [0], [1], [0, 0, 1, 1], [], []>} : vector<8x32xf32>, vector<32x96xf32>, vector<8x96xf32> -> vector<8x96xf32>
    %694 = arith.addf %693, %515 : vector<8x96xf32>
    %695 = vector.extract_strided_slice %692 {offsets = [0, 0], sizes = [8, 32], strides = [1, 1]} : vector<8x96xf32> to vector<8x32xf32>
    %696 = vector.extract_strided_slice %694 {offsets = [0, 0], sizes = [8, 32], strides = [1, 1]} : vector<8x96xf32> to vector<8x32xf32>
    %697 = arith.addf %695, %696 : vector<8x32xf32>
    %698 = arith.negf %697 : vector<8x32xf32>
    %699 = math.exp %698 : vector<8x32xf32>
    %cst_132 = arith.constant 1.000000e+00 : f32
    %700 = vector.broadcast %cst_132 : f32 to vector<8x32xf32>
    %701 = arith.addf %700, %699 : vector<8x32xf32>
    %702 = arith.divf %700, %701 : vector<8x32xf32>
    %703 = vector.extract_strided_slice %692 {offsets = [0, 32], sizes = [8, 32], strides = [1, 1]} : vector<8x96xf32> to vector<8x32xf32>
    %704 = vector.extract_strided_slice %694 {offsets = [0, 32], sizes = [8, 32], strides = [1, 1]} : vector<8x96xf32> to vector<8x32xf32>
    %705 = arith.addf %703, %704 : vector<8x32xf32>
    %706 = arith.negf %705 : vector<8x32xf32>
    %707 = math.exp %706 : vector<8x32xf32>
    %cst_133 = arith.constant 1.000000e+00 : f32
    %708 = vector.broadcast %cst_133 : f32 to vector<8x32xf32>
    %709 = arith.addf %708, %707 : vector<8x32xf32>
    %710 = arith.divf %708, %709 : vector<8x32xf32>
    %711 = vector.extract_strided_slice %692 {offsets = [0, 64], sizes = [8, 32], strides = [1, 1]} : vector<8x96xf32> to vector<8x32xf32>
    %712 = vector.extract_strided_slice %694 {offsets = [0, 64], sizes = [8, 32], strides = [1, 1]} : vector<8x96xf32> to vector<8x32xf32>
    %713 = arith.mulf %702, %712 : vector<8x32xf32>
    %714 = arith.addf %711, %713 : vector<8x32xf32>
    %715 = math.tanh %714 : vector<8x32xf32>
    %cst_134 = arith.constant 1.000000e+00 : f32
    %716 = vector.broadcast %cst_134 : f32 to vector<8x32xf32>
    %717 = arith.subf %716, %710 : vector<8x32xf32>
    %718 = arith.mulf %717, %715 : vector<8x32xf32>
    %719 = arith.mulf %710, %691 : vector<8x32xf32>
    %720 = arith.addf %718, %719 : vector<8x32xf32>
    %721 = vector.extract_strided_slice %510 {offsets = [56, 0], sizes = [8, 96], strides = [1, 1]} : vector<64x96xf32> to vector<8x96xf32>
    %cst_135 = arith.constant dense<0.000000e+00> : vector<8x96xf32>
    %722 = tpu.matmul %720, %512, %cst_135 {dimension_numbers = #tpu.dot_dimension_numbers<[1], [0], [0], [1], [0, 0, 1, 1], [], []>} : vector<8x32xf32>, vector<32x96xf32>, vector<8x96xf32> -> vector<8x96xf32>
    %723 = arith.addf %722, %515 : vector<8x96xf32>
    %724 = vector.extract_strided_slice %721 {offsets = [0, 0], sizes = [8, 32], strides = [1, 1]} : vector<8x96xf32> to vector<8x32xf32>
    %725 = vector.extract_strided_slice %723 {offsets = [0, 0], sizes = [8, 32], strides = [1, 1]} : vector<8x96xf32> to vector<8x32xf32>
    %726 = arith.addf %724, %725 : vector<8x32xf32>
    %727 = arith.negf %726 : vector<8x32xf32>
    %728 = math.exp %727 : vector<8x32xf32>
    %cst_136 = arith.constant 1.000000e+00 : f32
    %729 = vector.broadcast %cst_136 : f32 to vector<8x32xf32>
    %730 = arith.addf %729, %728 : vector<8x32xf32>
    %731 = arith.divf %729, %730 : vector<8x32xf32>
    %732 = vector.extract_strided_slice %721 {offsets = [0, 32], sizes = [8, 32], strides = [1, 1]} : vector<8x96xf32> to vector<8x32xf32>
    %733 = vector.extract_strided_slice %723 {offsets = [0, 32], sizes = [8, 32], strides = [1, 1]} : vector<8x96xf32> to vector<8x32xf32>
    %734 = arith.addf %732, %733 : vector<8x32xf32>
    %735 = arith.negf %734 : vector<8x32xf32>
    %736 = math.exp %735 : vector<8x32xf32>
    %cst_137 = arith.constant 1.000000e+00 : f32
    %737 = vector.broadcast %cst_137 : f32 to vector<8x32xf32>
    %738 = arith.addf %737, %736 : vector<8x32xf32>
    %739 = arith.divf %737, %738 : vector<8x32xf32>
    %740 = vector.extract_strided_slice %721 {offsets = [0, 64], sizes = [8, 32], strides = [1, 1]} : vector<8x96xf32> to vector<8x32xf32>
    %741 = vector.extract_strided_slice %723 {offsets = [0, 64], sizes = [8, 32], strides = [1, 1]} : vector<8x96xf32> to vector<8x32xf32>
    %742 = arith.mulf %731, %741 : vector<8x32xf32>
    %743 = arith.addf %740, %742 : vector<8x32xf32>
    %744 = math.tanh %743 : vector<8x32xf32>
    %cst_138 = arith.constant 1.000000e+00 : f32
    %745 = vector.broadcast %cst_138 : f32 to vector<8x32xf32>
    %746 = arith.subf %745, %739 : vector<8x32xf32>
    %747 = arith.mulf %746, %744 : vector<8x32xf32>
    %748 = arith.mulf %739, %720 : vector<8x32xf32>
    %749 = arith.addf %747, %748 : vector<8x32xf32>
    %c2_139 = arith.constant 2 : index
    %c0_140 = arith.constant 0 : index
    %c0_141 = arith.constant 0 : index
    %750 = vector.load %arg8[%c2_139, %c0_140, %c0_141] : memref<3x8x32xf32, #tpu.memory_space<vmem>>, vector<1x8x32xf32>
    %751 = vector.shape_cast %750 : vector<1x8x32xf32> to vector<8x32xf32>
    %752 = vector.shape_cast %749 : vector<8x32xf32> to vector<1x8x32xf32>
    tpu.vector_store %arg8[%c2_139, %c0_140, %c0_141], %752 {strides = array<i32>} : memref<3x8x32xf32, #tpu.memory_space<vmem>>, vector<1x8x32xf32>,
    %753 = tpu.concatenate %546, %575, %604, %633, %662, %691, %720, %749 in 0 : vector<8x32xf32>, vector<8x32xf32>, vector<8x32xf32>, vector<8x32xf32>, vector<8x32xf32>, vector<8x32xf32>, vector<8x32xf32>, vector<8x32xf32> -> vector<64x32xf32>
    %c0_142 = arith.constant 0 : index
    %c0_143 = arith.constant 0 : index
    %754 = vector.load %arg5[%c0_142, %c0_143] : memref<32x128xf32, #tpu.memory_space<vmem>>, vector<32x128xf32>
    %cst_144 = arith.constant dense<0.000000e+00> : vector<64x128xf32>
    %755 = tpu.matmul %753, %754, %cst_144 {dimension_numbers = #tpu.dot_dimension_numbers<[1], [0], [0], [1], [0, 0, 1, 1], [], []>} : vector<64x32xf32>, vector<32x128xf32>, vector<64x128xf32> -> vector<64x128xf32>
    %c0_145 = arith.constant 0 : index
    %c0_146 = arith.constant 0 : index
    %756 = vector.load %arg6[%c0_145, %c0_146] : memref<1x128xf32, #tpu.memory_space<vmem>>, vector<1x128xf32>
    %757 = vector.broadcast %756 : vector<1x128xf32> to vector<64x128xf32>
    %758 = arith.addf %755, %757 : vector<64x128xf32>
    %759 = arith.negf %758 : vector<64x128xf32>
    %760 = math.exp %759 : vector<64x128xf32>
    %cst_147 = arith.constant 1.000000e+00 : f32
    %761 = vector.broadcast %cst_147 : f32 to vector<64x128xf32>
    %762 = arith.addf %761, %760 : vector<64x128xf32>
    %763 = arith.divf %761, %762 : vector<64x128xf32>
    %cst_148 = arith.constant 5.000000e-01 : f32
    %764 = vector.broadcast %cst_148 : f32 to vector<64x128xf32>
    %765 = arith.subf %763, %764 : vector<64x128xf32>
    %cst_149 = arith.constant 2.000000e-01 : f32
    %766 = vector.broadcast %cst_149 : f32 to vector<64x128xf32>
    %767 = arith.mulf %765, %766 : vector<64x128xf32>
    %c0_150 = arith.constant 0 : index
    %c0_151 = arith.constant 0 : index
    %768 = vector.load %arg7[%c0_150, %c0_151] : memref<64x128xf32, #tpu.memory_space<vmem>>, vector<64x128xf32>
    tpu.vector_store %arg7[%c0_150, %c0_151], %767 {strides = array<i32>} : memref<64x128xf32, #tpu.memory_space<vmem>>, vector<64x128xf32>,
    return
  }
}

</mosaic_0001>

<llo_original>
// kernel: tpu_custom_call.1
$region0: #{tpu_custom_call.1}
  #allocation0 [shape = 'u32[]', space=smem, size = 0x4, offset = 0x4, fixed_abs, tag = 'smem constant byte address 0x4 - core index']
  #allocation1 [shape = 'u32[144,128]{1,0:T(1,128)}', space=vmem, size = 0x12000, scoped, tag = 'internal scratch']
  %s0 = inlined_call_operand.vmem [shape: f32[64,32], index: 0, kind: input, shape index: {}]
  %s1 = inlined_call_operand.hbm [shape: f32[3,8,32], index: 1, kind: input, shape index: {}]
  %s2 = inlined_call_operand.vmem [shape: f32[3,32,96], index: 2, kind: input, shape index: {}]
  %s3 = inlined_call_operand.hbm [shape: f32[3,32,96], index: 3, kind: input, shape index: {}]
  %s4 = inlined_call_operand.vmem [shape: f32[3,2,96], index: 4, kind: input, shape index: {}]
  %s5 = inlined_call_operand.hbm [shape: f32[32,128], index: 5, kind: input, shape index: {}]
  %s6 = inlined_call_operand.vmem [shape: f32[1,128], index: 6, kind: input, shape index: {}]
  %s7 = inlined_call_operand.hbm [shape: f32[64,128], index: 7, kind: output, shape index: {0}]
  %s8 = inlined_call_operand.hbm [shape: f32[3,8,32], index: 8, kind: output, shape index: {1}]
  %9 = xla_tuple %s7, %s8
  %s10 = sld [smem:[#allocation0]]
  $region58: #{tpu_custom_call.1} parent=0
    _
  %s12 = ssub.s32 1, %s10
  %s13 = scalar_select 0, %s12, %s10
  $region1: #{tpu_custom_call.1} parent=0
    #allocation2 [shape = 'u8[12288]{0}', space=vmem, size = 0x3000, scoped, tag = 'input window, operand 1, single buffered']
    #allocation3 [shape = 's32[1]{0}', space=sflag, size = 0x4, scoped, tag = 'scoped memory for tpu_custom_call.1']
    #allocation4 [shape = 's32[1]{0}', space=sflag, size = 0x4, scoped, tag = 'scoped memory for tpu_custom_call.1']
    #allocation5 [shape = 'u8[49152]{0}', space=vmem, size = 0xc000, scoped, tag = 'input window, operand 3, single buffered']
    #allocation6 [shape = 's32[1]{0}', space=sflag, size = 0x4, scoped, tag = 'scoped memory for tpu_custom_call.1']
    #allocation7 [shape = 'u8[16384]{0}', space=vmem, size = 0x4000, scoped, tag = 'input window, operand 5, single buffered']
    #allocation8 [shape = 'u8[32768]{0}', space=vmem, size = 0x8000, scoped, tag = 'output window, operand 0, single buffered']
    #allocation9 [shape = 'u8[12288]{0}', space=vmem, size = 0x3000, scoped, tag = 'output window, operand 1, single buffered']
    #allocation10 [shape = 's32[1]{0}', space=sflag, size = 0x4, scoped, tag = 'scoped memory for tpu_custom_call.1']
    %14 = vsyncpa [#allocation3], 0
    %15 = vsyncpa [#allocation6], 0
    %16 = vsyncpa [#allocation4], 0
    %17 = vsyncpa [#allocation10], 0
    // Predicated region
    $region2: #{tpu_custom_call.1} parent=1 // pred_check
      _
    $region3: #{tpu_custom_call.1} parent=1 // pred_check_branch
      %19 = sbr.rel (0) target = $region5
    $region4: #{tpu_custom_call.1} parent=1 // pred_region
      _
    $region5: #{tpu_custom_call.1} parent=1 // pred_fallthru
      _
    // Predicated region
    $region6: #{tpu_custom_call.1} parent=1 // pred_check
      _
    $region7: #{tpu_custom_call.1} parent=1 // pred_check_branch
      %21 = sbr.rel (0) target = $region9
    $region8: #{tpu_custom_call.1} parent=1 // pred_region
      %s23 = ssub.s32 384, 384
      %24 = vsyncadd [#allocation3], %s23
      %s25 = sshll.u32 [#allocation2], 4
      %s26 = int_to_ptr.vmem [resolvable:$true] %s25
      %31 = dma.hbm_to_vmem [thread:$0]  %s1, 384, %s26, [#allocation3], 128, 128, 8
    $region9: #{tpu_custom_call.1} parent=1 // pred_fallthru
      _
    // Predicated region
    $region10: #{tpu_custom_call.1} parent=1 // pred_check
      _
    $region11: #{tpu_custom_call.1} parent=1 // pred_check_branch
      %33 = sbr.rel (0) target = $region13
    $region12: #{tpu_custom_call.1} parent=1 // pred_region
      _
    $region13: #{tpu_custom_call.1} parent=1 // pred_fallthru
      _
    // Predicated region
    $region14: #{tpu_custom_call.1} parent=1 // pred_check
      _
    $region15: #{tpu_custom_call.1} parent=1 // pred_check_branch
      %35 = sbr.rel (0) target = $region17
    $region16: #{tpu_custom_call.1} parent=1 // pred_region
      %s37 = ssub.s32 1536, 1536
      %38 = vsyncadd [#allocation6], %s37
      %s39 = sshll.u32 [#allocation5], 4
      %s40 = int_to_ptr.vmem [resolvable:$true] %s39
      %45 = dma.hbm_to_vmem [thread:$0]  %s3, 1536, %s40, [#allocation6], 128, 128, 8
    $region17: #{tpu_custom_call.1} parent=1 // pred_fallthru
      _
    // Predicated region
    $region18: #{tpu_custom_call.1} parent=1 // pred_check
      _
    $region19: #{tpu_custom_call.1} parent=1 // pred_check_branch
      %47 = sbr.rel (0) target = $region21
    $region20: #{tpu_custom_call.1} parent=1 // pred_region
      _
    $region21: #{tpu_custom_call.1} parent=1 // pred_fallthru
      _
    // Predicated region
    $region22: #{tpu_custom_call.1} parent=1 // pred_check
      _
    $region23: #{tpu_custom_call.1} parent=1 // pred_check_branch
      %49 = sbr.rel (0) target = $region25
    $region24: #{tpu_custom_call.1} parent=1 // pred_region
      %s51 = ssub.s32 512, 512
      %52 = vsyncadd [#allocation6], %s51
      %s53 = sshll.u32 [#allocation7], 4
      %s54 = int_to_ptr.vmem [resolvable:$true] %s53
      %59 = dma.hbm_to_vmem [thread:$0]  %s5, 512, %s54, [#allocation6], 128, 128, 8
    $region25: #{tpu_custom_call.1} parent=1 // pred_fallthru
      _
    // Predicated region
    $region26: #{tpu_custom_call.1} parent=1 // pred_check
      _
    $region27: #{tpu_custom_call.1} parent=1 // pred_check_branch
      %61 = sbr.rel (0) target = $region29
    $region28: #{tpu_custom_call.1} parent=1 // pred_region
      _
    $region29: #{tpu_custom_call.1} parent=1 // pred_fallthru
      _
    // Predicated region
    $region30: #{tpu_custom_call.1} parent=1 // pred_check
      _
    $region31: #{tpu_custom_call.1} parent=1 // pred_check_branch
      %63 = sbr.rel (0) target = $region33
    $region32: #{tpu_custom_call.1} parent=1 // pred_region
      %64 = dma.done [#allocation3], 384
    $region33: #{tpu_custom_call.1} parent=1 // pred_fallthru
      _
    // Predicated region
    $region34: #{tpu_custom_call.1} parent=1 // pred_check
      _
    $region35: #{tpu_custom_call.1} parent=1 // pred_check_branch
      %66 = sbr.rel (0) target = $region37
    $region36: #{tpu_custom_call.1} parent=1 // pred_region
      %67 = dma.done [#allocation6], 1536
    $region37: #{tpu_custom_call.1} parent=1 // pred_fallthru
      _
    // Predicated region
    $region38: #{tpu_custom_call.1} parent=1 // pred_check
      _
    $region39: #{tpu_custom_call.1} parent=1 // pred_check_branch
      %69 = sbr.rel (0) target = $region41
    $region40: #{tpu_custom_call.1} parent=1 // pred_region
      %70 = dma.done [#allocation6], 512
    $region41: #{tpu_custom_call.1} parent=1 // pred_fallthru
      _
    %v71 = vld [vmem:[%s0] sm:$0xff]
    %v72 = vld [vmem:[%s0 + $0x8] sm:$0xff]
    %v73 = vld [vmem:[%s0 + $0x10] sm:$0xff]
    %v74 = vld [vmem:[%s0 + $0x18] sm:$0xff]
    %v75 = vld [vmem:[%s0 + $0x20] sm:$0xff]
    %v76 = vld [vmem:[%s0 + $0x28] sm:$0xff]
    %v77 = vld [vmem:[%s0 + $0x30] sm:$0xff]
    %v78 = vld [vmem:[%s0 + $0x38] sm:$0xff]
    %v79 = vld [vmem:[%s4] sm:$0x3]
    %v80 = vld [vmem:[%s2] sm:$0xff]
    %v81 = vld [vmem:[%s2 + $0x8] sm:$0xff]
    %v82 = vld [vmem:[%s2 + $0x10] sm:$0xff]
    %v83 = vld [vmem:[%s2 + $0x18] sm:$0xff]
    %v84 = vlaneseq
    %v85 = vshrl.u32 %v84, 7
    %v86 = vsub.s32 0, %v85
    %v87 = vrot.slane %v79, %v86
    %vm88 = vcmask 261120
    %v90 = vsel %vm88, %v71, 0
    %v93 = vsel %vm88, %v72, 0
    %v96 = vsel %vm88, %v73, 0
    %v99 = vsel %vm88, %v74, 0
    %v102 = vsel %vm88, %v75, 0
    %v105 = vsel %vm88, %v76, 0
    %v108 = vsel %vm88, %v77, 0
    %v111 = vsel %vm88, %v78, 0
    %113 = vmatprep.subr.mxu0 0.0
    %114 = vmatpush1.msra.mxu0 %v80
    %115 = vmatprep.subr.mxu0 0.0
    %116 = vmatpush1.msra.mxu0 %v81
    %117 = vmatprep.subr.mxu0 0.0
    %118 = vmatpush1.msra.mxu0 %v82
    %119 = vmatprep.subr.mxu0 0.0
    %120 = vmatpush1.msra.mxu0 %v83
    %121 = vmatprep.subr.mxu0 0.0
    %122 = vmatpush1.msra.mxu0 0.0
    %123 = vmatprep.subr.mxu0 0.0
    %124 = vmatpush1.msra.mxu0 0.0
    %125 = vmatprep.subr.mxu0 0.0
    %126 = vmatpush1.msra.mxu0 0.0
    %127 = vmatprep.subr.mxu0 0.0
    %128 = vmatpush1.msra.mxu0 0.0
    %129 = vmatprep.subr.mxu0 0.0
    %130 = vmatpush1.msra.mxu0 0.0
    %131 = vmatprep.subr.mxu0 0.0
    %132 = vmatpush1.msra.mxu0 0.0
    %133 = vmatprep.subr.mxu0 0.0
    %134 = vmatpush1.msra.mxu0 0.0
    %135 = vmatprep.subr.mxu0 0.0
    %136 = vmatpush1.msra.mxu0 0.0
    %137 = vmatprep.subr.mxu0 0.0
    %138 = vmatpush1.msra.mxu0 0.0
    %139 = vmatprep.subr.mxu0 0.0
    %140 = vmatpush1.msra.mxu0 0.0
    %141 = vmatprep.subr.mxu0 0.0
    %142 = vmatpush1.msra.mxu0 0.0
    %143 = vmatprep.subr.mxu0 0.0
    %144 = vmatpush1.msra.mxu0 0.0
    %145 = vmatprep.subr.mxu0 0.0
    %146 = vmatpush1.msra.mxu0 0.0
    %147 = vmatprep.subr.mxu0 0.0
    %148 = vmatpush1.msra.mxu0 0.0
    %149 = vmatprep.subr.mxu0 0.0
    %150 = vmatpush1.msra.mxu0 0.0
    %151 = vmatprep.subr.mxu0 0.0
    %152 = vmatpush1.msra.mxu0 0.0
    %153 = vmatprep.subr.mxu0 0.0
    %154 = vmatpush1.msra.mxu0 0.0
    %155 = vmatprep.subr.mxu0 0.0
    %156 = vmatpush1.msra.mxu0 0.0
    %157 = vmatprep.subr.mxu0 0.0
    %158 = vmatpush1.msra.mxu0 0.0
    %159 = vmatprep.subr.mxu0 0.0
    %160 = vmatpush1.msra.mxu0 0.0
    %161 = vmatprep.subr.mxu0 0.0
    %162 = vmatpush1.msra.mxu0 0.0
    %163 = vmatprep.subr.mxu0 0.0
    %164 = vmatpush1.msra.mxu0 0.0
    %165 = vmatprep.subr.mxu0 0.0
    %166 = vmatpush1.msra.mxu0 0.0
    %167 = vmatprep.subr.mxu0 0.0
    %168 = vmatpush1.msra.mxu0 0.0
    %169 = vmatprep.subr.mxu0 0.0
    %170 = vmatpush1.msra.mxu0 0.0
    %171 = vmatprep.subr.mxu0 0.0
    %172 = vmatpush1.msra.mxu0 0.0
    %173 = vmatprep.subr.mxu0 0.0
    %174 = vmatpush1.msra.mxu0 0.0
    %175 = vmatprep.subr.mxu0 0.0
    %176 = vmatpush1.msra.mxu0 0.0
    %177 = vmatprep.mubr.f32.mxu0 0.0
    %178 = vmatmul.mubr.f32.gmra.mrb[0].mxu0 %v90
    %v179 = vpop.f32.mrb[0].mxu0
    %v180 = vadd.f32 %v87, %v179
    %v181 = vpop.f32.mrb[0].mxu0
    %182 = vmatprep.mubr.f32.mxu0 0.0
    %183 = vmatmul.mubr.f32.gmra.mrb[0].mxu0 %v93
    %v184 = vpop.f32.mrb[0].mxu0
    %v185 = vadd.f32 %v87, %v184
    %v186 = vpop.f32.mrb[0].mxu0
    %187 = vmatprep.mubr.f32.mxu0 0.0
    %188 = vmatmul.mubr.f32.gmra.mrb[0].mxu0 %v96
    %v189 = vpop.f32.mrb[0].mxu0
    %v190 = vadd.f32 %v87, %v189
    %v191 = vpop.f32.mrb[0].mxu0
    %192 = vmatprep.mubr.f32.mxu0 0.0
    %193 = vmatmul.mubr.f32.gmra.mrb[0].mxu0 %v99
    %v194 = vpop.f32.mrb[0].mxu0
    %v195 = vadd.f32 %v87, %v194
    %v196 = vpop.f32.mrb[0].mxu0
    %197 = vmatprep.mubr.f32.mxu0 0.0
    %198 = vmatmul.mubr.f32.gmra.mrb[0].mxu0 %v102
    %v199 = vpop.f32.mrb[0].mxu0
    %v200 = vadd.f32 %v87, %v199
    %v201 = vpop.f32.mrb[0].mxu0
    %202 = vmatprep.mubr.f32.mxu0 0.0
    %203 = vmatmul.mubr.f32.gmra.mrb[0].mxu0 %v105
    %v204 = vpop.f32.mrb[0].mxu0
    %v205 = vadd.f32 %v87, %v204
    %v206 = vpop.f32.mrb[0].mxu0
    %207 = vmatprep.mubr.f32.mxu0 0.0
    %208 = vmatmul.mubr.f32.gmra.mrb[0].mxu0 %v108
    %v209 = vpop.f32.mrb[0].mxu0
    %v210 = vadd.f32 %v87, %v209
    %v211 = vpop.f32.mrb[0].mxu0
    %212 = vmatprep.mubr.f32.mxu0 0.0
    %213 = vmatmul.mubr.f32.gmra.mrb[0].mxu0 %v111
    %v214 = vpop.f32.mrb[0].mxu0
    %v215 = vadd.f32 %v87, %v214
    %v216 = vpop.f32.mrb[0].mxu0
    %217 = vdwg.mxu0
    %v218 = vld [vmem:[#allocation5] sm:$0xff]
    %v219 = vld [vmem:[#allocation5 + $0x8] sm:$0xff]
    %v220 = vld [vmem:[#allocation5 + $0x10] sm:$0xff]
    %v221 = vld [vmem:[#allocation5 + $0x18] sm:$0xff]
    %v222 = vlaneseq
    %v223 = vshrl.u32 %v222, 7
    %v224 = vsub.s32 1, %v223
    %v225 = vrot.slane %v79, %v224
    %v226 = vld [vmem:[#allocation2] sm:$0xff]
    %v228 = vsel %vm88, %v226, 0
    %230 = vmatprep.subr.mxu0 0.0
    %231 = vmatpush1.msra.mxu0 %v218
    %232 = vmatprep.subr.mxu0 0.0
    %233 = vmatpush1.msra.mxu0 %v219
    %234 = vmatprep.subr.mxu0 0.0
    %235 = vmatpush1.msra.mxu0 %v220
    %236 = vmatprep.subr.mxu0 0.0
    %237 = vmatpush1.msra.mxu0 %v221
    %238 = vmatprep.subr.mxu0 0.0
    %239 = vmatpush1.msra.mxu0 0.0
    %240 = vmatprep.subr.mxu0 0.0
    %241 = vmatpush1.msra.mxu0 0.0
    %242 = vmatprep.subr.mxu0 0.0
    %243 = vmatpush1.msra.mxu0 0.0
    %244 = vmatprep.subr.mxu0 0.0
    %245 = vmatpush1.msra.mxu0 0.0
    %246 = vmatprep.subr.mxu0 0.0
    %247 = vmatpush1.msra.mxu0 0.0
    %248 = vmatprep.subr.mxu0 0.0
    %249 = vmatpush1.msra.mxu0 0.0
    %250 = vmatprep.subr.mxu0 0.0
    %251 = vmatpush1.msra.mxu0 0.0
    %252 = vmatprep.subr.mxu0 0.0
    %253 = vmatpush1.msra.mxu0 0.0
    %254 = vmatprep.subr.mxu0 0.0
    %255 = vmatpush1.msra.mxu0 0.0
    %256 = vmatprep.subr.mxu0 0.0
    %257 = vmatpush1.msra.mxu0 0.0
    %258 = vmatprep.subr.mxu0 0.0
    %259 = vmatpush1.msra.mxu0 0.0
    %260 = vmatprep.subr.mxu0 0.0
    %261 = vmatpush1.msra.mxu0 0.0
    %262 = vmatprep.subr.mxu0 0.0
    %263 = vmatpush1.msra.mxu0 0.0
    %264 = vmatprep.subr.mxu0 0.0
    %265 = vmatpush1.msra.mxu0 0.0
    %266 = vmatprep.subr.mxu0 0.0
    %267 = vmatpush1.msra.mxu0 0.0
    %268 = vmatprep.subr.mxu0 0.0
    %269 = vmatpush1.msra.mxu0 0.0
    %270 = vmatprep.subr.mxu0 0.0
    %271 = vmatpush1.msra.mxu0 0.0
    %272 = vmatprep.subr.mxu0 0.0
    %273 = vmatpush1.msra.mxu0 0.0
    %274 = vmatprep.subr.mxu0 0.0
    %275 = vmatpush1.msra.mxu0 0.0
    %276 = vmatprep.subr.mxu0 0.0
    %277 = vmatpush1.msra.mxu0 0.0
    %278 = vmatprep.subr.mxu0 0.0
    %279 = vmatpush1.msra.mxu0 0.0
    %280 = vmatprep.subr.mxu0 0.0
    %281 = vmatpush1.msra.mxu0 0.0
    %282 = vmatprep.subr.mxu0 0.0
    %283 = vmatpush1.msra.mxu0 0.0
    %284 = vmatprep.subr.mxu0 0.0
    %285 = vmatpush1.msra.mxu0 0.0
    %286 = vmatprep.subr.mxu0 0.0
    %287 = vmatpush1.msra.mxu0 0.0
    %288 = vmatprep.subr.mxu0 0.0
    %289 = vmatpush1.msra.mxu0 0.0
    %290 = vmatprep.subr.mxu0 0.0
    %291 = vmatpush1.msra.mxu0 0.0
    %292 = vmatprep.subr.mxu0 0.0
    %293 = vmatpush1.msra.mxu0 0.0
    %294 = vmatprep.mubr.f32.mxu0 0.0
    %295 = vmatmul.mubr.f32.gmra.mrb[0].mxu0 %v228
    %v296 = vpop.f32.mrb[0].mxu0
    %v297 = vadd.f32 %v225, %v296
    %v298 = vpop.f32.mrb[0].mxu0
    %299 = vdwg.mxu0
    %v300 = vadd.f32 %v180, %v297
    %v301 = vxor.u32 %v300, 2147483648
    %v302 = vmul.f32 %v301, 1.442695
    %v303 = vpow.pop %v302
    %v304 = vadd.f32 %v303, 1.0
    %v305 = vrcp.pop %v304
    %v306 = vmul.f32 1.0, %v305
    %308 = vrot.lane.b32.xlu0 %v297, 64
    %v309 = vpop.permute.xlu0 %308
    %v311 = vmul.f32 %v306, %v309
    %313 = vrot.lane.b32.xlu0 %v311, 64
    %v314 = vpop.permute.xlu0 %313
    %v316 = vadd.f32 %v180, %v314
    %v317 = vtanh.pop %v316
    %v318 = vsub.f32 1.0, %v306
    %320 = vrot.lane.b32.xlu0 %v317, 96
    %v321 = vpop.permute.xlu0 %320
    %v323 = vmul.f32 %v318, %v321
    %324 = vrot.lane.b32.xlu0 %v226, 32
    %v325 = vpop.permute.xlu0 %324
    %v327 = vmul.f32 %v306, %v325
    %v328 = vadd.f32 %v323, %v327
    %330 = vrot.lane.b32.xlu0 %v328, 96
    %v331 = vpop.permute.xlu0 %330
    %v332 = vsel %vm88, %v331, 0
    %334 = vmatprep.subr.mxu0 0.0
    %335 = vmatpush1.msra.mxu0 %v218
    %336 = vmatprep.subr.mxu0 0.0
    %337 = vmatpush1.msra.mxu0 %v219
    %338 = vmatprep.subr.mxu0 0.0
    %339 = vmatpush1.msra.mxu0 %v220
    %340 = vmatprep.subr.mxu0 0.0
    %341 = vmatpush1.msra.mxu0 %v221
    %342 = vmatprep.subr.mxu0 0.0
    %343 = vmatpush1.msra.mxu0 0.0
    %344 = vmatprep.subr.mxu0 0.0
    %345 = vmatpush1.msra.mxu0 0.0
    %346 = vmatprep.subr.mxu0 0.0
    %347 = vmatpush1.msra.mxu0 0.0
    %348 = vmatprep.subr.mxu0 0.0
    %349 = vmatpush1.msra.mxu0 0.0
    %350 = vmatprep.subr.mxu0 0.0
    %351 = vmatpush1.msra.mxu0 0.0
    %352 = vmatprep.subr.mxu0 0.0
    %353 = vmatpush1.msra.mxu0 0.0
    %354 = vmatprep.subr.mxu0 0.0
    %355 = vmatpush1.msra.mxu0 0.0
    %356 = vmatprep.subr.mxu0 0.0
    %357 = vmatpush1.msra.mxu0 0.0
    %358 = vmatprep.subr.mxu0 0.0
    %359 = vmatpush1.msra.mxu0 0.0
    %360 = vmatprep.subr.mxu0 0.0
    %361 = vmatpush1.msra.mxu0 0.0
    %362 = vmatprep.subr.mxu0 0.0
    %363 = vmatpush1.msra.mxu0 0.0
    %364 = vmatprep.subr.mxu0 0.0
    %365 = vmatpush1.msra.mxu0 0.0
    %366 = vmatprep.subr.mxu0 0.0
    %367 = vmatpush1.msra.mxu0 0.0
    %368 = vmatprep.subr.mxu0 0.0
    %369 = vmatpush1.msra.mxu0 0.0
    %370 = vmatprep.subr.mxu0 0.0
    %371 = vmatpush1.msra.mxu0 0.0
    %372 = vmatprep.subr.mxu0 0.0
    %373 = vmatpush1.msra.mxu0 0.0
    %374 = vmatprep.subr.mxu0 0.0
    %375 = vmatpush1.msra.mxu0 0.0
    %376 = vmatprep.subr.mxu0 0.0
    %377 = vmatpush1.msra.mxu0 0.0
    %378 = vmatprep.subr.mxu0 0.0
    %379 = vmatpush1.msra.mxu0 0.0
    %380 = vmatprep.subr.mxu0 0.0
    %381 = vmatpush1.msra.mxu0 0.0
    %382 = vmatprep.subr.mxu0 0.0
    %383 = vmatpush1.msra.mxu0 0.0
    %384 = vmatprep.subr.mxu0 0.0
    %385 = vmatpush1.msra.mxu0 0.0
    %386 = vmatprep.subr.mxu0 0.0
    %387 = vmatpush1.msra.mxu0 0.0
    %388 = vmatprep.subr.mxu0 0.0
    %389 = vmatpush1.msra.mxu0 0.0
    %390 = vmatprep.subr.mxu0 0.0
    %391 = vmatpush1.msra.mxu0 0.0
    %392 = vmatprep.subr.mxu0 0.0
    %393 = vmatpush1.msra.mxu0 0.0
    %394 = vmatprep.subr.mxu0 0.0
    %395 = vmatpush1.msra.mxu0 0.0
    %396 = vmatprep.subr.mxu0 0.0
    %397 = vmatpush1.msra.mxu0 0.0
    %398 = vmatprep.mubr.f32.mxu0 0.0
    %399 = vmatmul.mubr.f32.gmra.mrb[0].mxu0 %v332
    %v400 = vpop.f32.mrb[0].mxu0
    %v401 = vadd.f32 %v225, %v400
    %v402 = vpop.f32.mrb[0].mxu0
    %403 = vdwg.mxu0
    %v404 = vadd.f32 %v185, %v401
    %v405 = vxor.u32 %v404, 2147483648
    %v406 = vmul.f32 %v405, 1.442695
    %v407 = vpow.pop %v406
    %v408 = vadd.f32 %v407, 1.0
    %v409 = vrcp.pop %v408
    %v410 = vmul.f32 1.0, %v409
    %412 = vrot.lane.b32.xlu0 %v401, 64
    %v413 = vpop.permute.xlu0 %412
    %v415 = vmul.f32 %v410, %v413
    %417 = vrot.lane.b32.xlu0 %v415, 64
    %v418 = vpop.permute.xlu0 %417
    %v420 = vadd.f32 %v185, %v418
    %v421 = vtanh.pop %v420
    %v422 = vsub.f32 1.0, %v410
    %424 = vrot.lane.b32.xlu0 %v421, 96
    %v425 = vpop.permute.xlu0 %424
    %v427 = vmul.f32 %v422, %v425
    %v428 = vmul.f32 %v410, %v328
    %v429 = vadd.f32 %v427, %v428
    %431 = vrot.lane.b32.xlu0 %v429, 96
    %v432 = vpop.permute.xlu0 %431
    %v433 = vsel %vm88, %v432, 0
    %435 = vmatprep.subr.mxu0 0.0
    %436 = vmatpush1.msra.mxu0 %v218
    %437 = vmatprep.subr.mxu0 0.0
    %438 = vmatpush1.msra.mxu0 %v219
    %439 = vmatprep.subr.mxu0 0.0
    %440 = vmatpush1.msra.mxu0 %v220
    %441 = vmatprep.subr.mxu0 0.0
    %442 = vmatpush1.msra.mxu0 %v221
    %443 = vmatprep.subr.mxu0 0.0
    %444 = vmatpush1.msra.mxu0 0.0
    %445 = vmatprep.subr.mxu0 0.0
    %446 = vmatpush1.msra.mxu0 0.0
    %447 = vmatprep.subr.mxu0 0.0
    %448 = vmatpush1.msra.mxu0 0.0
    %449 = vmatprep.subr.mxu0 0.0
    %450 = vmatpush1.msra.mxu0 0.0
    %451 = vmatprep.subr.mxu0 0.0
    %452 = vmatpush1.msra.mxu0 0.0
    %453 = vmatprep.subr.mxu0 0.0
    %454 = vmatpush1.msra.mxu0 0.0
    %455 = vmatprep.subr.mxu0 0.0
    %456 = vmatpush1.msra.mxu0 0.0
    %457 = vmatprep.subr.mxu0 0.0
    %458 = vmatpush1.msra.mxu0 0.0
    %459 = vmatprep.subr.mxu0 0.0
    %460 = vmatpush1.msra.mxu0 0.0
    %461 = vmatprep.subr.mxu0 0.0
    %462 = vmatpush1.msra.mxu0 0.0
    %463 = vmatprep.subr.mxu0 0.0
    %464 = vmatpush1.msra.mxu0 0.0
    %465 = vmatprep.subr.mxu0 0.0
    %466 = vmatpush1.msra.mxu0 0.0
    %467 = vmatprep.subr.mxu0 0.0
    %468 = vmatpush1.msra.mxu0 0.0
    %469 = vmatprep.subr.mxu0 0.0
    %470 = vmatpush1.msra.mxu0 0.0
    %471 = vmatprep.subr.mxu0 0.0
    %472 = vmatpush1.msra.mxu0 0.0
    %473 = vmatprep.subr.mxu0 0.0
    %474 = vmatpush1.msra.mxu0 0.0
    %475 = vmatprep.subr.mxu0 0.0
    %476 = vmatpush1.msra.mxu0 0.0
    %477 = vmatprep.subr.mxu0 0.0
    %478 = vmatpush1.msra.mxu0 0.0
    %479 = vmatprep.subr.mxu0 0.0
    %480 = vmatpush1.msra.mxu0 0.0
    %481 = vmatprep.subr.mxu0 0.0
    %482 = vmatpush1.msra.mxu0 0.0
    %483 = vmatprep.subr.mxu0 0.0
    %484 = vmatpush1.msra.mxu0 0.0
    %485 = vmatprep.subr.mxu0 0.0
    %486 = vmatpush1.msra.mxu0 0.0
    %487 = vmatprep.subr.mxu0 0.0
    %488 = vmatpush1.msra.mxu0 0.0
    %489 = vmatprep.subr.mxu0 0.0
    %490 = vmatpush1.msra.mxu0 0.0
    %491 = vmatprep.subr.mxu0 0.0
    %492 = vmatpush1.msra.mxu0 0.0
    %493 = vmatprep.subr.mxu0 0.0
    %494 = vmatpush1.msra.mxu0 0.0
    %495 = vmatprep.subr.mxu0 0.0
    %496 = vmatpush1.msra.mxu0 0.0
    %497 = vmatprep.subr.mxu0 0.0
    %498 = vmatpush1.msra.mxu0 0.0
    %499 = vmatprep.mubr.f32.mxu0 0.0
    %500 = vmatmul.mubr.f32.gmra.mrb[0].mxu0 %v433
    %v501 = vpop.f32.mrb[0].mxu0
    %v502 = vadd.f32 %v225, %v501
    %v503 = vpop.f32.mrb[0].mxu0
    %504 = vdwg.mxu0
    %v505 = vadd.f32 %v190, %v502
    %v506 = vxor.u32 %v505, 2147483648
    %v507 = vmul.f32 %v506, 1.442695
    %v508 = vpow.pop %v507
    %v509 = vadd.f32 %v508, 1.0
    %v510 = vrcp.pop %v509
    %v511 = vmul.f32 1.0, %v510
    %513 = vrot.lane.b32.xlu0 %v502, 64
    %v514 = vpop.permute.xlu0 %513
    %v516 = vmul.f32 %v511, %v514
    %518 = vrot.lane.b32.xlu0 %v516, 64
    %v519 = vpop.permute.xlu0 %518
    %v521 = vadd.f32 %v190, %v519
    %v522 = vtanh.pop %v521
    %v523 = vsub.f32 1.0, %v511
    %525 = vrot.lane.b32.xlu0 %v522, 96
    %v526 = vpop.permute.xlu0 %525
    %v528 = vmul.f32 %v523, %v526
    %v529 = vmul.f32 %v511, %v429
    %v530 = vadd.f32 %v528, %v529
    %532 = vrot.lane.b32.xlu0 %v530, 96
    %v533 = vpop.permute.xlu0 %532
    %v534 = vsel %vm88, %v533, 0
    %536 = vmatprep.subr.mxu0 0.0
    %537 = vmatpush1.msra.mxu0 %v218
    %538 = vmatprep.subr.mxu0 0.0
    %539 = vmatpush1.msra.mxu0 %v219
    %540 = vmatprep.subr.mxu0 0.0
    %541 = vmatpush1.msra.mxu0 %v220
    %542 = vmatprep.subr.mxu0 0.0
    %543 = vmatpush1.msra.mxu0 %v221
    %544 = vmatprep.subr.mxu0 0.0
    %545 = vmatpush1.msra.mxu0 0.0
    %546 = vmatprep.subr.mxu0 0.0
    %547 = vmatpush1.msra.mxu0 0.0
    %548 = vmatprep.subr.mxu0 0.0
    %549 = vmatpush1.msra.mxu0 0.0
    %550 = vmatprep.subr.mxu0 0.0
    %551 = vmatpush1.msra.mxu0 0.0
    %552 = vmatprep.subr.mxu0 0.0
    %553 = vmatpush1.msra.mxu0 0.0
    %554 = vmatprep.subr.mxu0 0.0
    %555 = vmatpush1.msra.mxu0 0.0
    %556 = vmatprep.subr.mxu0 0.0
    %557 = vmatpush1.msra.mxu0 0.0
    %558 = vmatprep.subr.mxu0 0.0
    %559 = vmatpush1.msra.mxu0 0.0
    %560 = vmatprep.subr.mxu0 0.0
    %561 = vmatpush1.msra.mxu0 0.0
    %562 = vmatprep.subr.mxu0 0.0
    %563 = vmatpush1.msra.mxu0 0.0
    %564 = vmatprep.subr.mxu0 0.0
    %565 = vmatpush1.msra.mxu0 0.0
    %566 = vmatprep.subr.mxu0 0.0
    %567 = vmatpush1.msra.mxu0 0.0
    %568 = vmatprep.subr.mxu0 0.0
    %569 = vmatpush1.msra.mxu0 0.0
    %570 = vmatprep.subr.mxu0 0.0
    %571 = vmatpush1.msra.mxu0 0.0
    %572 = vmatprep.subr.mxu0 0.0
    %573 = vmatpush1.msra.mxu0 0.0
    %574 = vmatprep.subr.mxu0 0.0
    %575 = vmatpush1.msra.mxu0 0.0
    %576 = vmatprep.subr.mxu0 0.0
    %577 = vmatpush1.msra.mxu0 0.0
    %578 = vmatprep.subr.mxu0 0.0
    %579 = vmatpush1.msra.mxu0 0.0
    %580 = vmatprep.subr.mxu0 0.0
    %581 = vmatpush1.msra.mxu0 0.0
    %582 = vmatprep.subr.mxu0 0.0
    %583 = vmatpush1.msra.mxu0 0.0
    %584 = vmatprep.subr.mxu0 0.0
    %585 = vmatpush1.msra.mxu0 0.0
    %586 = vmatprep.subr.mxu0 0.0
    %587 = vmatpush1.msra.mxu0 0.0
    %588 = vmatprep.subr.mxu0 0.0
    %589 = vmatpush1.msra.mxu0 0.0
    %590 = vmatprep.subr.mxu0 0.0
    %591 = vmatpush1.msra.mxu0 0.0
    %592 = vmatprep.subr.mxu0 0.0
    %593 = vmatpush1.msra.mxu0 0.0
    %594 = vmatprep.subr.mxu0 0.0
    %595 = vmatpush1.msra.mxu0 0.0
    %596 = vmatprep.subr.mxu0 0.0
    %597 = vmatpush1.msra.mxu0 0.0
    %598 = vmatprep.subr.mxu0 0.0
    %599 = vmatpush1.msra.mxu0 0.0
    %600 = vmatprep.mubr.f32.mxu0 0.0
    %601 = vmatmul.mubr.f32.gmra.mrb[0].mxu0 %v534
    %v602 = vpop.f32.mrb[0].mxu0
    %v603 = vadd.f32 %v225, %v602
    %v604 = vpop.f32.mrb[0].mxu0
    %605 = vdwg.mxu0
    %v606 = vadd.f32 %v195, %v603
    %v607 = vxor.u32 %v606, 2147483648
    %v608 = vmul.f32 %v607, 1.442695
    %v609 = vpow.pop %v608
    %v610 = vadd.f32 %v609, 1.0
    %v611 = vrcp.pop %v610
    %v612 = vmul.f32 1.0, %v611
    %614 = vrot.lane.b32.xlu0 %v603, 64
    %v615 = vpop.permute.xlu0 %614
    %v617 = vmul.f32 %v612, %v615
    %619 = vrot.lane.b32.xlu0 %v617, 64
    %v620 = vpop.permute.xlu0 %619
    %v622 = vadd.f32 %v195, %v620
    %v623 = vtanh.pop %v622
    %v624 = vsub.f32 1.0, %v612
    %626 = vrot.lane.b32.xlu0 %v623, 96
    %v627 = vpop.permute.xlu0 %626
    %v629 = vmul.f32 %v624, %v627
    %v630 = vmul.f32 %v612, %v530
    %v631 = vadd.f32 %v629, %v630
    %633 = vrot.lane.b32.xlu0 %v631, 96
    %v634 = vpop.permute.xlu0 %633
    %v635 = vsel %vm88, %v634, 0
    %637 = vmatprep.subr.mxu0 0.0
    %638 = vmatpush1.msra.mxu0 %v218
    %639 = vmatprep.subr.mxu0 0.0
    %640 = vmatpush1.msra.mxu0 %v219
    %641 = vmatprep.subr.mxu0 0.0
    %642 = vmatpush1.msra.mxu0 %v220
    %643 = vmatprep.subr.mxu0 0.0
    %644 = vmatpush1.msra.mxu0 %v221
    %645 = vmatprep.subr.mxu0 0.0
    %646 = vmatpush1.msra.mxu0 0.0
    %647 = vmatprep.subr.mxu0 0.0
    %648 = vmatpush1.msra.mxu0 0.0
    %649 = vmatprep.subr.mxu0 0.0
    %650 = vmatpush1.msra.mxu0 0.0
    %651 = vmatprep.subr.mxu0 0.0
    %652 = vmatpush1.msra.mxu0 0.0
    %653 = vmatprep.subr.mxu0 0.0
    %654 = vmatpush1.msra.mxu0 0.0
    %655 = vmatprep.subr.mxu0 0.0
    %656 = vmatpush1.msra.mxu0 0.0
    %657 = vmatprep.subr.mxu0 0.0
    %658 = vmatpush1.msra.mxu0 0.0
    %659 = vmatprep.subr.mxu0 0.0
    %660 = vmatpush1.msra.mxu0 0.0
    %661 = vmatprep.subr.mxu0 0.0
    %662 = vmatpush1.msra.mxu0 0.0
    %663 = vmatprep.subr.mxu0 0.0
    %664 = vmatpush1.msra.mxu0 0.0
    %665 = vmatprep.subr.mxu0 0.0
    %666 = vmatpush1.msra.mxu0 0.0
    %667 = vmatprep.subr.mxu0 0.0
    %668 = vmatpush1.msra.mxu0 0.0
    %669 = vmatprep.subr.mxu0 0.0
    %670 = vmatpush1.msra.mxu0 0.0
    %671 = vmatprep.subr.mxu0 0.0
    %672 = vmatpush1.msra.mxu0 0.0
    %673 = vmatprep.subr.mxu0 0.0
    %674 = vmatpush1.msra.mxu0 0.0
    %675 = vmatprep.subr.mxu0 0.0
    %676 = vmatpush1.msra.mxu0 0.0
    %677 = vmatprep.subr.mxu0 0.0
    %678 = vmatpush1.msra.mxu0 0.0
    %679 = vmatprep.subr.mxu0 0.0
    %680 = vmatpush1.msra.mxu0 0.0
    %681 = vmatprep.subr.mxu0 0.0
    %682 = vmatpush1.msra.mxu0 0.0
    %683 = vmatprep.subr.mxu0 0.0
    %684 = vmatpush1.msra.mxu0 0.0
    %685 = vmatprep.subr.mxu0 0.0
    %686 = vmatpush1.msra.mxu0 0.0
    %687 = vmatprep.subr.mxu0 0.0
    %688 = vmatpush1.msra.mxu0 0.0
    %689 = vmatprep.subr.mxu0 0.0
    %690 = vmatpush1.msra.mxu0 0.0
    %691 = vmatprep.subr.mxu0 0.0
    %692 = vmatpush1.msra.mxu0 0.0
    %693 = vmatprep.subr.mxu0 0.0
    %694 = vmatpush1.msra.mxu0 0.0
    %695 = vmatprep.subr.mxu0 0.0
    %696 = vmatpush1.msra.mxu0 0.0
    %697 = vmatprep.subr.mxu0 0.0
    %698 = vmatpush1.msra.mxu0 0.0
    %699 = vmatprep.subr.mxu0 0.0
    %700 = vmatpush1.msra.mxu0 0.0
    %701 = vmatprep.mubr.f32.mxu0 0.0
    %702 = vmatmul.mubr.f32.gmra.mrb[0].mxu0 %v635
    %v703 = vpop.f32.mrb[0].mxu0
    %v704 = vadd.f32 %v225, %v703
    %v705 = vpop.f32.mrb[0].mxu0
    %706 = vdwg.mxu0
    %v707 = vadd.f32 %v200, %v704
    %v708 = vxor.u32 %v707, 2147483648
    %v709 = vmul.f32 %v708, 1.442695
    %v710 = vpow.pop %v709
    %v711 = vadd.f32 %v710, 1.0
    %v712 = vrcp.pop %v711
    %v713 = vmul.f32 1.0, %v712
    %715 = vrot.lane.b32.xlu0 %v704, 64
    %v716 = vpop.permute.xlu0 %715
    %v718 = vmul.f32 %v713, %v716
    %720 = vrot.lane.b32.xlu0 %v718, 64
    %v721 = vpop.permute.xlu0 %720
    %v723 = vadd.f32 %v200, %v721
    %v724 = vtanh.pop %v723
    %v725 = vsub.f32 1.0, %v713
    %727 = vrot.lane.b32.xlu0 %v724, 96
    %v728 = vpop.permute.xlu0 %727
    %v730 = vmul.f32 %v725, %v728
    %v731 = vmul.f32 %v713, %v631
    %v732 = vadd.f32 %v730, %v731
    %734 = vrot.lane.b32.xlu0 %v732, 96
    %v735 = vpop.permute.xlu0 %734
    %v736 = vsel %vm88, %v735, 0
    %738 = vmatprep.subr.mxu0 0.0
    %739 = vmatpush1.msra.mxu0 %v218
    %740 = vmatprep.subr.mxu0 0.0
    %741 = vmatpush1.msra.mxu0 %v219
    %742 = vmatprep.subr.mxu0 0.0
    %743 = vmatpush1.msra.mxu0 %v220
    %744 = vmatprep.subr.mxu0 0.0
    %745 = vmatpush1.msra.mxu0 %v221
    %746 = vmatprep.subr.mxu0 0.0
    %747 = vmatpush1.msra.mxu0 0.0
    %748 = vmatprep.subr.mxu0 0.0
    %749 = vmatpush1.msra.mxu0 0.0
    %750 = vmatprep.subr.mxu0 0.0
    %751 = vmatpush1.msra.mxu0 0.0
    %752 = vmatprep.subr.mxu0 0.0
    %753 = vmatpush1.msra.mxu0 0.0
    %754 = vmatprep.subr.mxu0 0.0
    %755 = vmatpush1.msra.mxu0 0.0
    %756 = vmatprep.subr.mxu0 0.0
    %757 = vmatpush1.msra.mxu0 0.0
    %758 = vmatprep.subr.mxu0 0.0
    %759 = vmatpush1.msra.mxu0 0.0
    %760 = vmatprep.subr.mxu0 0.0
    %761 = vmatpush1.msra.mxu0 0.0
    %762 = vmatprep.subr.mxu0 0.0
    %763 = vmatpush1.msra.mxu0 0.0
    %764 = vmatprep.subr.mxu0 0.0
    %765 = vmatpush1.msra.mxu0 0.0
    %766 = vmatprep.subr.mxu0 0.0
    %767 = vmatpush1.msra.mxu0 0.0
    %768 = vmatprep.subr.mxu0 0.0
    %769 = vmatpush1.msra.mxu0 0.0
    %770 = vmatprep.subr.mxu0 0.0
    %771 = vmatpush1.msra.mxu0 0.0
    %772 = vmatprep.subr.mxu0 0.0
    %773 = vmatpush1.msra.mxu0 0.0
    %774 = vmatprep.subr.mxu0 0.0
    %775 = vmatpush1.msra.mxu0 0.0
    %776 = vmatprep.subr.mxu0 0.0
    %777 = vmatpush1.msra.mxu0 0.0
    %778 = vmatprep.subr.mxu0 0.0
    %779 = vmatpush1.msra.mxu0 0.0
    %780 = vmatprep.subr.mxu0 0.0
    %781 = vmatpush1.msra.mxu0 0.0
    %782 = vmatprep.subr.mxu0 0.0
    %783 = vmatpush1.msra.mxu0 0.0
    %784 = vmatprep.subr.mxu0 0.0
    %785 = vmatpush1.msra.mxu0 0.0
    %786 = vmatprep.subr.mxu0 0.0
    %787 = vmatpush1.msra.mxu0 0.0
    %788 = vmatprep.subr.mxu0 0.0
    %789 = vmatpush1.msra.mxu0 0.0
    %790 = vmatprep.subr.mxu0 0.0
    %791 = vmatpush1.msra.mxu0 0.0
    %792 = vmatprep.subr.mxu0 0.0
    %793 = vmatpush1.msra.mxu0 0.0
    %794 = vmatprep.subr.mxu0 0.0
    %795 = vmatpush1.msra.mxu0 0.0
    %796 = vmatprep.subr.mxu0 0.0
    %797 = vmatpush1.msra.mxu0 0.0
    %798 = vmatprep.subr.mxu0 0.0
    %799 = vmatpush1.msra.mxu0 0.0
    %800 = vmatprep.subr.mxu0 0.0
    %801 = vmatpush1.msra.mxu0 0.0
    %802 = vmatprep.mubr.f32.mxu0 0.0
    %803 = vmatmul.mubr.f32.gmra.mrb[0].mxu0 %v736
    %v804 = vpop.f32.mrb[0].mxu0
    %v805 = vadd.f32 %v225, %v804
    %v806 = vpop.f32.mrb[0].mxu0
    %807 = vdwg.mxu0
    %v808 = vadd.f32 %v205, %v805
    %v809 = vxor.u32 %v808, 2147483648
    %v810 = vmul.f32 %v809, 1.442695
    %v811 = vpow.pop %v810
    %v812 = vadd.f32 %v811, 1.0
    %v813 = vrcp.pop %v812
    %v814 = vmul.f32 1.0, %v813
    %816 = vrot.lane.b32.xlu0 %v805, 64
    %v817 = vpop.permute.xlu0 %816
    %v819 = vmul.f32 %v814, %v817
    %821 = vrot.lane.b32.xlu0 %v819, 64
    %v822 = vpop.permute.xlu0 %821
    %v824 = vadd.f32 %v205, %v822
    %v825 = vtanh.pop %v824
    %v826 = vsub.f32 1.0, %v814
    %828 = vrot.lane.b32.xlu0 %v825, 96
    %v829 = vpop.permute.xlu0 %828
    %v831 = vmul.f32 %v826, %v829
    %v832 = vmul.f32 %v814, %v732
    %v833 = vadd.f32 %v831, %v832
    %835 = vrot.lane.b32.xlu0 %v833, 96
    %v836 = vpop.permute.xlu0 %835
    %v837 = vsel %vm88, %v836, 0
    %839 = vmatprep.subr.mxu0 0.0
    %840 = vmatpush1.msra.mxu0 %v218
    %841 = vmatprep.subr.mxu0 0.0
    %842 = vmatpush1.msra.mxu0 %v219
    %843 = vmatprep.subr.mxu0 0.0
    %844 = vmatpush1.msra.mxu0 %v220
    %845 = vmatprep.subr.mxu0 0.0
    %846 = vmatpush1.msra.mxu0 %v221
    %847 = vmatprep.subr.mxu0 0.0
    %848 = vmatpush1.msra.mxu0 0.0
    %849 = vmatprep.subr.mxu0 0.0
    %850 = vmatpush1.msra.mxu0 0.0
    %851 = vmatprep.subr.mxu0 0.0
    %852 = vmatpush1.msra.mxu0 0.0
    %853 = vmatprep.subr.mxu0 0.0
    %854 = vmatpush1.msra.mxu0 0.0
    %855 = vmatprep.subr.mxu0 0.0
    %856 = vmatpush1.msra.mxu0 0.0
    %857 = vmatprep.subr.mxu0 0.0
    %858 = vmatpush1.msra.mxu0 0.0
    %859 = vmatprep.subr.mxu0 0.0
    %860 = vmatpush1.msra.mxu0 0.0
    %861 = vmatprep.subr.mxu0 0.0
    %862 = vmatpush1.msra.mxu0 0.0
    %863 = vmatprep.subr.mxu0 0.0
    %864 = vmatpush1.msra.mxu0 0.0
    %865 = vmatprep.subr.mxu0 0.0
    %866 = vmatpush1.msra.mxu0 0.0
    %867 = vmatprep.subr.mxu0 0.0
    %868 = vmatpush1.msra.mxu0 0.0
    %869 = vmatprep.subr.mxu0 0.0
    %870 = vmatpush1.msra.mxu0 0.0
    %871 = vmatprep.subr.mxu0 0.0
    %872 = vmatpush1.msra.mxu0 0.0
    %873 = vmatprep.subr.mxu0 0.0
    %874 = vmatpush1.msra.mxu0 0.0
    %875 = vmatprep.subr.mxu0 0.0
    %876 = vmatpush1.msra.mxu0 0.0
    %877 = vmatprep.subr.mxu0 0.0
    %878 = vmatpush1.msra.mxu0 0.0
    %879 = vmatprep.subr.mxu0 0.0
    %880 = vmatpush1.msra.mxu0 0.0
    %881 = vmatprep.subr.mxu0 0.0
    %882 = vmatpush1.msra.mxu0 0.0
    %883 = vmatprep.subr.mxu0 0.0
    %884 = vmatpush1.msra.mxu0 0.0
    %885 = vmatprep.subr.mxu0 0.0
    %886 = vmatpush1.msra.mxu0 0.0
    %887 = vmatprep.subr.mxu0 0.0
    %888 = vmatpush1.msra.mxu0 0.0
    %889 = vmatprep.subr.mxu0 0.0
    %890 = vmatpush1.msra.mxu0 0.0
    %891 = vmatprep.subr.mxu0 0.0
    %892 = vmatpush1.msra.mxu0 0.0
    %893 = vmatprep.subr.mxu0 0.0
    %894 = vmatpush1.msra.mxu0 0.0
    %895 = vmatprep.subr.mxu0 0.0
    %896 = vmatpush1.msra.mxu0 0.0
    %897 = vmatprep.subr.mxu0 0.0
    %898 = vmatpush1.msra.mxu0 0.0
    %899 = vmatprep.subr.mxu0 0.0
    %900 = vmatpush1.msra.mxu0 0.0
    %901 = vmatprep.subr.mxu0 0.0
    %902 = vmatpush1.msra.mxu0 0.0
    %903 = vmatprep.mubr.f32.mxu0 0.0
    %904 = vmatmul.mubr.f32.gmra.mrb[0].mxu0 %v837
    %v905 = vpop.f32.mrb[0].mxu0
    %v906 = vadd.f32 %v225, %v905
    %v907 = vpop.f32.mrb[0].mxu0
    %908 = vdwg.mxu0
    %v909 = vadd.f32 %v210, %v906
    %v910 = vxor.u32 %v909, 2147483648
    %v911 = vmul.f32 %v910, 1.442695
    %v912 = vpow.pop %v911
    %v913 = vadd.f32 %v912, 1.0
    %v914 = vrcp.pop %v913
    %v915 = vmul.f32 1.0, %v914
    %917 = vrot.lane.b32.xlu0 %v906, 64
    %v918 = vpop.permute.xlu0 %917
    %v920 = vmul.f32 %v915, %v918
    %922 = vrot.lane.b32.xlu0 %v920, 64
    %v923 = vpop.permute.xlu0 %922
    %v925 = vadd.f32 %v210, %v923
    %v926 = vtanh.pop %v925
    %v927 = vsub.f32 1.0, %v915
    %929 = vrot.lane.b32.xlu0 %v926, 96
    %v930 = vpop.permute.xlu0 %929
    %v932 = vmul.f32 %v927, %v930
    %v933 = vmul.f32 %v915, %v833
    %v934 = vadd.f32 %v932, %v933
    %936 = vrot.lane.b32.xlu0 %v934, 96
    %v937 = vpop.permute.xlu0 %936
    %v938 = vsel %vm88, %v937, 0
    %940 = vmatprep.subr.mxu0 0.0
    %941 = vmatpush1.msra.mxu0 %v218
    %942 = vmatprep.subr.mxu0 0.0
    %943 = vmatpush1.msra.mxu0 %v219
    %944 = vmatprep.subr.mxu0 0.0
    %945 = vmatpush1.msra.mxu0 %v220
    %946 = vmatprep.subr.mxu0 0.0
    %947 = vmatpush1.msra.mxu0 %v221
    %948 = vmatprep.subr.mxu0 0.0
    %949 = vmatpush1.msra.mxu0 0.0
    %950 = vmatprep.subr.mxu0 0.0
    %951 = vmatpush1.msra.mxu0 0.0
    %952 = vmatprep.subr.mxu0 0.0
    %953 = vmatpush1.msra.mxu0 0.0
    %954 = vmatprep.subr.mxu0 0.0
    %955 = vmatpush1.msra.mxu0 0.0
    %956 = vmatprep.subr.mxu0 0.0
    %957 = vmatpush1.msra.mxu0 0.0
    %958 = vmatprep.subr.mxu0 0.0
    %959 = vmatpush1.msra.mxu0 0.0
    %960 = vmatprep.subr.mxu0 0.0
    %961 = vmatpush1.msra.mxu0 0.0
    %962 = vmatprep.subr.mxu0 0.0
    %963 = vmatpush1.msra.mxu0 0.0
    %964 = vmatprep.subr.mxu0 0.0
    %965 = vmatpush1.msra.mxu0 0.0
    %966 = vmatprep.subr.mxu0 0.0
    %967 = vmatpush1.msra.mxu0 0.0
    %968 = vmatprep.subr.mxu0 0.0
    %969 = vmatpush1.msra.mxu0 0.0
    %970 = vmatprep.subr.mxu0 0.0
    %971 = vmatpush1.msra.mxu0 0.0
    %972 = vmatprep.subr.mxu0 0.0
    %973 = vmatpush1.msra.mxu0 0.0
    %974 = vmatprep.subr.mxu0 0.0
    %975 = vmatpush1.msra.mxu0 0.0
    %976 = vmatprep.subr.mxu0 0.0
    %977 = vmatpush1.msra.mxu0 0.0
    %978 = vmatprep.subr.mxu0 0.0
    %979 = vmatpush1.msra.mxu0 0.0
    %980 = vmatprep.subr.mxu0 0.0
    %981 = vmatpush1.msra.mxu0 0.0
    %982 = vmatprep.subr.mxu0 0.0
    %983 = vmatpush1.msra.mxu0 0.0
    %984 = vmatprep.subr.mxu0 0.0
    %985 = vmatpush1.msra.mxu0 0.0
    %986 = vmatprep.subr.mxu0 0.0
    %987 = vmatpush1.msra.mxu0 0.0
    %988 = vmatprep.subr.mxu0 0.0
    %989 = vmatpush1.msra.mxu0 0.0
    %990 = vmatprep.subr.mxu0 0.0
    %991 = vmatpush1.msra.mxu0 0.0
    %992 = vmatprep.subr.mxu0 0.0
    %993 = vmatpush1.msra.mxu0 0.0
    %994 = vmatprep.subr.mxu0 0.0
    %995 = vmatpush1.msra.mxu0 0.0
    %996 = vmatprep.subr.mxu0 0.0
    %997 = vmatpush1.msra.mxu0 0.0
    %998 = vmatprep.subr.mxu0 0.0
    %999 = vmatpush1.msra.mxu0 0.0
    %1000 = vmatprep.subr.mxu0 0.0
    %1001 = vmatpush1.msra.mxu0 0.0
    %1002 = vmatprep.subr.mxu0 0.0
    %1003 = vmatpush1.msra.mxu0 0.0
    %1004 = vmatprep.mubr.f32.mxu0 0.0
    %1005 = vmatmul.mubr.f32.gmra.mrb[0].mxu0 %v938
    %v1006 = vpop.f32.mrb[0].mxu0
    %v1007 = vadd.f32 %v225, %v1006
    %v1008 = vpop.f32.mrb[0].mxu0
    %1009 = vdwg.mxu0
    %v1010 = vadd.f32 %v215, %v1007
    %v1011 = vxor.u32 %v1010, 2147483648
    %v1012 = vmul.f32 %v1011, 1.442695
    %v1013 = vpow.pop %v1012
    %v1014 = vadd.f32 %v1013, 1.0
    %v1015 = vrcp.pop %v1014
    %v1016 = vmul.f32 1.0, %v1015
    %1018 = vrot.lane.b32.xlu0 %v1007, 64
    %v1019 = vpop.permute.xlu0 %1018
    %v1021 = vmul.f32 %v1016, %v1019
    %1023 = vrot.lane.b32.xlu0 %v1021, 64
    %v1024 = vpop.permute.xlu0 %1023
    %v1026 = vadd.f32 %v215, %v1024
    %v1027 = vtanh.pop %v1026
    %v1028 = vsub.f32 1.0, %v1016
    %1030 = vrot.lane.b32.xlu0 %v1027, 96
    %v1031 = vpop.permute.xlu0 %1030
    %v1033 = vmul.f32 %v1028, %v1031
    %v1034 = vmul.f32 %v1016, %v934
    %v1035 = vadd.f32 %v1033, %v1034
    %1037 = vrot.lane.b32.xlu0 %v1035, 96
    %v1038 = vpop.permute.xlu0 %1037
    %1040 = vst.msk [vmem:[#allocation9] sm:$0xff] %vm88, %v1038
    %s1041 = scalar_lea.vmem %s4, 2
    %v1042 = vld [vmem:[%s1041] sm:$0x3]
    %s1043 = scalar_lea.vmem %s2, 32
    %v1044 = vld [vmem:[%s1043] sm:$0xff]
    %v1045 = vld [vmem:[%s1043 + $0x8] sm:$0xff]
    %v1046 = vld [vmem:[%s1043 + $0x10] sm:$0xff]
    %v1047 = vld [vmem:[%s1043 + $0x18] sm:$0xff]
    %v1048 = vlaneseq
    %v1049 = vshrl.u32 %v1048, 7
    %v1050 = vsub.s32 0, %v1049
    %v1051 = vrot.slane %v1042, %v1050
    %v1052 = vsel %vm88, %v1038, 0
    %1054 = vmatprep.subr.mxu0 0.0
    %1055 = vmatpush1.msra.mxu0 %v1044
    %1056 = vmatprep.subr.mxu0 0.0
    %1057 = vmatpush1.msra.mxu0 %v1045
    %1058 = vmatprep.subr.mxu0 0.0
    %1059 = vmatpush1.msra.mxu0 %v1046
    %1060 = vmatprep.subr.mxu0 0.0
    %1061 = vmatpush1.msra.mxu0 %v1047
    %1062 = vmatprep.subr.mxu0 0.0
    %1063 = vmatpush1.msra.mxu0 0.0
    %1064 = vmatprep.subr.mxu0 0.0
    %1065 = vmatpush1.msra.mxu0 0.0
    %1066 = vmatprep.subr.mxu0 0.0
    %1067 = vmatpush1.msra.mxu0 0.0
    %1068 = vmatprep.subr.mxu0 0.0
    %1069 = vmatpush1.msra.mxu0 0.0
    %1070 = vmatprep.subr.mxu0 0.0
    %1071 = vmatpush1.msra.mxu0 0.0
    %1072 = vmatprep.subr.mxu0 0.0
    %1073 = vmatpush1.msra.mxu0 0.0
    %1074 = vmatprep.subr.mxu0 0.0
    %1075 = vmatpush1.msra.mxu0 0.0
    %1076 = vmatprep.subr.mxu0 0.0
    %1077 = vmatpush1.msra.mxu0 0.0
    %1078 = vmatprep.subr.mxu0 0.0
    %1079 = vmatpush1.msra.mxu0 0.0
    %1080 = vmatprep.subr.mxu0 0.0
    %1081 = vmatpush1.msra.mxu0 0.0
    %1082 = vmatprep.subr.mxu0 0.0
    %1083 = vmatpush1.msra.mxu0 0.0
    %1084 = vmatprep.subr.mxu0 0.0
    %1085 = vmatpush1.msra.mxu0 0.0
    %1086 = vmatprep.subr.mxu0 0.0
    %1087 = vmatpush1.msra.mxu0 0.0
    %1088 = vmatprep.subr.mxu0 0.0
    %1089 = vmatpush1.msra.mxu0 0.0
    %1090 = vmatprep.subr.mxu0 0.0
    %1091 = vmatpush1.msra.mxu0 0.0
    %1092 = vmatprep.subr.mxu0 0.0
    %1093 = vmatpush1.msra.mxu0 0.0
    %1094 = vmatprep.subr.mxu0 0.0
    %1095 = vmatpush1.msra.mxu0 0.0
    %1096 = vmatprep.subr.mxu0 0.0
    %1097 = vmatpush1.msra.mxu0 0.0
    %1098 = vmatprep.subr.mxu0 0.0
    %1099 = vmatpush1.msra.mxu0 0.0
    %1100 = vmatprep.subr.mxu0 0.0
    %1101 = vmatpush1.msra.mxu0 0.0
    %1102 = vmatprep.subr.mxu0 0.0
    %1103 = vmatpush1.msra.mxu0 0.0
    %1104 = vmatprep.subr.mxu0 0.0
    %1105 = vmatpush1.msra.mxu0 0.0
    %1106 = vmatprep.subr.mxu0 0.0
    %1107 = vmatpush1.msra.mxu0 0.0
    %1108 = vmatprep.subr.mxu0 0.0
    %1109 = vmatpush1.msra.mxu0 0.0
    %1110 = vmatprep.subr.mxu0 0.0
    %1111 = vmatpush1.msra.mxu0 0.0
    %1112 = vmatprep.subr.mxu0 0.0
    %1113 = vmatpush1.msra.mxu0 0.0
    %1114 = vmatprep.subr.mxu0 0.0
    %1115 = vmatpush1.msra.mxu0 0.0
    %1116 = vmatprep.subr.mxu0 0.0
    %1117 = vmatpush1.msra.mxu0 0.0
    %1118 = vmatprep.mubr.f32.mxu0 0.0
    %1119 = vmatmul.mubr.f32.gmra.mrb[0].mxu0 %v332
    %v1120 = vpop.f32.mrb[0].mxu0
    %v1121 = vadd.f32 %v1051, %v1120
    %v1122 = vpop.f32.mrb[0].mxu0
    %1123 = vmatprep.mubr.f32.mxu0 0.0
    %1124 = vmatmul.mubr.f32.gmra.mrb[0].mxu0 %v433
    %v1125 = vpop.f32.mrb[0].mxu0
    %v1126 = vadd.f32 %v1051, %v1125
    %v1127 = vpop.f32.mrb[0].mxu0
    %1128 = vmatprep.mubr.f32.mxu0 0.0
    %1129 = vmatmul.mubr.f32.gmra.mrb[0].mxu0 %v534
    %v1130 = vpop.f32.mrb[0].mxu0
    %v1131 = vadd.f32 %v1051, %v1130
    %v1132 = vpop.f32.mrb[0].mxu0
    %1133 = vmatprep.mubr.f32.mxu0 0.0
    %1134 = vmatmul.mubr.f32.gmra.mrb[0].mxu0 %v635
    %v1135 = vpop.f32.mrb[0].mxu0
    %v1136 = vadd.f32 %v1051, %v1135
    %v1137 = vpop.f32.mrb[0].mxu0
    %1138 = vmatprep.mubr.f32.mxu0 0.0
    %1139 = vmatmul.mubr.f32.gmra.mrb[0].mxu0 %v736
    %v1140 = vpop.f32.mrb[0].mxu0
    %v1141 = vadd.f32 %v1051, %v1140
    %v1142 = vpop.f32.mrb[0].mxu0
    %1143 = vmatprep.mubr.f32.mxu0 0.0
    %1144 = vmatmul.mubr.f32.gmra.mrb[0].mxu0 %v837
    %v1145 = vpop.f32.mrb[0].mxu0
    %v1146 = vadd.f32 %v1051, %v1145
    %v1147 = vpop.f32.mrb[0].mxu0
    %1148 = vmatprep.mubr.f32.mxu0 0.0
    %1149 = vmatmul.mubr.f32.gmra.mrb[0].mxu0 %v938
    %v1150 = vpop.f32.mrb[0].mxu0
    %v1151 = vadd.f32 %v1051, %v1150
    %v1152 = vpop.f32.mrb[0].mxu0
    %1153 = vmatprep.mubr.f32.mxu0 0.0
    %1154 = vmatmul.mubr.f32.gmra.mrb[0].mxu0 %v1052
    %v1155 = vpop.f32.mrb[0].mxu0
    %v1156 = vadd.f32 %v1051, %v1155
    %v1157 = vpop.f32.mrb[0].mxu0
    %1158 = vdwg.mxu0
    %s1159 = scalar_lea.vmem [#allocation5], 32
    %v1160 = vld [vmem:[%s1159] sm:$0xff]
    %v1161 = vld [vmem:[%s1159 + $0x8] sm:$0xff]
    %v1162 = vld [vmem:[%s1159 + $0x10] sm:$0xff]
    %v1163 = vld [vmem:[%s1159 + $0x18] sm:$0xff]
    %v1164 = vlaneseq
    %v1165 = vshrl.u32 %v1164, 7
    %v1166 = vsub.s32 1, %v1165
    %v1167 = vrot.slane %v1042, %v1166
    %s1168 = scalar_lea.vmem [#allocation2], 8
    %v1169 = vld [vmem:[%s1168] sm:$0xff]
    %v1171 = vsel %vm88, %v1169, 0
    %1173 = vmatprep.subr.mxu0 0.0
    %1174 = vmatpush1.msra.mxu0 %v1160
    %1175 = vmatprep.subr.mxu0 0.0
    %1176 = vmatpush1.msra.mxu0 %v1161
    %1177 = vmatprep.subr.mxu0 0.0
    %1178 = vmatpush1.msra.mxu0 %v1162
    %1179 = vmatprep.subr.mxu0 0.0
    %1180 = vmatpush1.msra.mxu0 %v1163
    %1181 = vmatprep.subr.mxu0 0.0
    %1182 = vmatpush1.msra.mxu0 0.0
    %1183 = vmatprep.subr.mxu0 0.0
    %1184 = vmatpush1.msra.mxu0 0.0
    %1185 = vmatprep.subr.mxu0 0.0
    %1186 = vmatpush1.msra.mxu0 0.0
    %1187 = vmatprep.subr.mxu0 0.0
    %1188 = vmatpush1.msra.mxu0 0.0
    %1189 = vmatprep.subr.mxu0 0.0
    %1190 = vmatpush1.msra.mxu0 0.0
    %1191 = vmatprep.subr.mxu0 0.0
    %1192 = vmatpush1.msra.mxu0 0.0
    %1193 = vmatprep.subr.mxu0 0.0
    %1194 = vmatpush1.msra.mxu0 0.0
    %1195 = vmatprep.subr.mxu0 0.0
    %1196 = vmatpush1.msra.mxu0 0.0
    %1197 = vmatprep.subr.mxu0 0.0
    %1198 = vmatpush1.msra.mxu0 0.0
    %1199 = vmatprep.subr.mxu0 0.0
    %1200 = vmatpush1.msra.mxu0 0.0
    %1201 = vmatprep.subr.mxu0 0.0
    %1202 = vmatpush1.msra.mxu0 0.0
    %1203 = vmatprep.subr.mxu0 0.0
    %1204 = vmatpush1.msra.mxu0 0.0
    %1205 = vmatprep.subr.mxu0 0.0
    %1206 = vmatpush1.msra.mxu0 0.0
    %1207 = vmatprep.subr.mxu0 0.0
    %1208 = vmatpush1.msra.mxu0 0.0
    %1209 = vmatprep.subr.mxu0 0.0
    %1210 = vmatpush1.msra.mxu0 0.0
    %1211 = vmatprep.subr.mxu0 0.0
    %1212 = vmatpush1.msra.mxu0 0.0
    %1213 = vmatprep.subr.mxu0 0.0
    %1214 = vmatpush1.msra.mxu0 0.0
    %1215 = vmatprep.subr.mxu0 0.0
    %1216 = vmatpush1.msra.mxu0 0.0
    %1217 = vmatprep.subr.mxu0 0.0
    %1218 = vmatpush1.msra.mxu0 0.0
    %1219 = vmatprep.subr.mxu0 0.0
    %1220 = vmatpush1.msra.mxu0 0.0
    %1221 = vmatprep.subr.mxu0 0.0
    %1222 = vmatpush1.msra.mxu0 0.0
    %1223 = vmatprep.subr.mxu0 0.0
    %1224 = vmatpush1.msra.mxu0 0.0
    %1225 = vmatprep.subr.mxu0 0.0
    %1226 = vmatpush1.msra.mxu0 0.0
    %1227 = vmatprep.subr.mxu0 0.0
    %1228 = vmatpush1.msra.mxu0 0.0
    %1229 = vmatprep.subr.mxu0 0.0
    %1230 = vmatpush1.msra.mxu0 0.0
    %1231 = vmatprep.subr.mxu0 0.0
    %1232 = vmatpush1.msra.mxu0 0.0
    %1233 = vmatprep.subr.mxu0 0.0
    %1234 = vmatpush1.msra.mxu0 0.0
    %1235 = vmatprep.subr.mxu0 0.0
    %1236 = vmatpush1.msra.mxu0 0.0
    %1237 = vmatprep.mubr.f32.mxu0 0.0
    %1238 = vmatmul.mubr.f32.gmra.mrb[0].mxu0 %v1171
    %v1239 = vpop.f32.mrb[0].mxu0
    %v1240 = vadd.f32 %v1167, %v1239
    %v1241 = vpop.f32.mrb[0].mxu0
    %1242 = vdwg.mxu0
    %v1243 = vadd.f32 %v1121, %v1240
    %v1244 = vxor.u32 %v1243, 2147483648
    %v1245 = vmul.f32 %v1244, 1.442695
    %v1246 = vpow.pop %v1245
    %v1247 = vadd.f32 %v1246, 1.0
    %v1248 = vrcp.pop %v1247
    %v1249 = vmul.f32 1.0, %v1248
    %1251 = vrot.lane.b32.xlu0 %v1240, 64
    %v1252 = vpop.permute.xlu0 %1251
    %v1254 = vmul.f32 %v1249, %v1252
    %1256 = vrot.lane.b32.xlu0 %v1254, 64
    %v1257 = vpop.permute.xlu0 %1256
    %v1259 = vadd.f32 %v1121, %v1257
    %v1260 = vtanh.pop %v1259
    %v1261 = vsub.f32 1.0, %v1249
    %1263 = vrot.lane.b32.xlu0 %v1260, 96
    %v1264 = vpop.permute.xlu0 %1263
    %v1266 = vmul.f32 %v1261, %v1264
    %1267 = vrot.lane.b32.xlu0 %v1169, 32
    %v1268 = vpop.permute.xlu0 %1267
    %v1270 = vmul.f32 %v1249, %v1268
    %v1271 = vadd.f32 %v1266, %v1270
    %1273 = vrot.lane.b32.xlu0 %v1271, 96
    %v1274 = vpop.permute.xlu0 %1273
    %v1275 = vsel %vm88, %v1274, 0
    %1277 = vmatprep.subr.mxu0 0.0
    %1278 = vmatpush1.msra.mxu0 %v1160
    %1279 = vmatprep.subr.mxu0 0.0
    %1280 = vmatpush1.msra.mxu0 %v1161
    %1281 = vmatprep.subr.mxu0 0.0
    %1282 = vmatpush1.msra.mxu0 %v1162
    %1283 = vmatprep.subr.mxu0 0.0
    %1284 = vmatpush1.msra.mxu0 %v1163
    %1285 = vmatprep.subr.mxu0 0.0
    %1286 = vmatpush1.msra.mxu0 0.0
    %1287 = vmatprep.subr.mxu0 0.0
    %1288 = vmatpush1.msra.mxu0 0.0
    %1289 = vmatprep.subr.mxu0 0.0
    %1290 = vmatpush1.msra.mxu0 0.0
    %1291 = vmatprep.subr.mxu0 0.0
    %1292 = vmatpush1.msra.mxu0 0.0
    %1293 = vmatprep.subr.mxu0 0.0
    %1294 = vmatpush1.msra.mxu0 0.0
    %1295 = vmatprep.subr.mxu0 0.0
    %1296 = vmatpush1.msra.mxu0 0.0
    %1297 = vmatprep.subr.mxu0 0.0
    %1298 = vmatpush1.msra.mxu0 0.0
    %1299 = vmatprep.subr.mxu0 0.0
    %1300 = vmatpush1.msra.mxu0 0.0
    %1301 = vmatprep.subr.mxu0 0.0
    %1302 = vmatpush1.msra.mxu0 0.0
    %1303 = vmatprep.subr.mxu0 0.0
    %1304 = vmatpush1.msra.mxu0 0.0
    %1305 = vmatprep.subr.mxu0 0.0
    %1306 = vmatpush1.msra.mxu0 0.0
    %1307 = vmatprep.subr.mxu0 0.0
    %1308 = vmatpush1.msra.mxu0 0.0
    %1309 = vmatprep.subr.mxu0 0.0
    %1310 = vmatpush1.msra.mxu0 0.0
    %1311 = vmatprep.subr.mxu0 0.0
    %1312 = vmatpush1.msra.mxu0 0.0
    %1313 = vmatprep.subr.mxu0 0.0
    %1314 = vmatpush1.msra.mxu0 0.0
    %1315 = vmatprep.subr.mxu0 0.0
    %1316 = vmatpush1.msra.mxu0 0.0
    %1317 = vmatprep.subr.mxu0 0.0
    %1318 = vmatpush1.msra.mxu0 0.0
    %1319 = vmatprep.subr.mxu0 0.0
    %1320 = vmatpush1.msra.mxu0 0.0
    %1321 = vmatprep.subr.mxu0 0.0
    %1322 = vmatpush1.msra.mxu0 0.0
    %1323 = vmatprep.subr.mxu0 0.0
    %1324 = vmatpush1.msra.mxu0 0.0
    %1325 = vmatprep.subr.mxu0 0.0
    %1326 = vmatpush1.msra.mxu0 0.0
    %1327 = vmatprep.subr.mxu0 0.0
    %1328 = vmatpush1.msra.mxu0 0.0
    %1329 = vmatprep.subr.mxu0 0.0
    %1330 = vmatpush1.msra.mxu0 0.0
    %1331 = vmatprep.subr.mxu0 0.0
    %1332 = vmatpush1.msra.mxu0 0.0
    %1333 = vmatprep.subr.mxu0 0.0
    %1334 = vmatpush1.msra.mxu0 0.0
    %1335 = vmatprep.subr.mxu0 0.0
    %1336 = vmatpush1.msra.mxu0 0.0
    %1337 = vmatprep.subr.mxu0 0.0
    %1338 = vmatpush1.msra.mxu0 0.0
    %1339 = vmatprep.subr.mxu0 0.0
    %1340 = vmatpush1.msra.mxu0 0.0
    %1341 = vmatprep.mubr.f32.mxu0 0.0
    %1342 = vmatmul.mubr.f32.gmra.mrb[0].mxu0 %v1275
    %v1343 = vpop.f32.mrb[0].mxu0
    %v1344 = vadd.f32 %v1167, %v1343
    %v1345 = vpop.f32.mrb[0].mxu0
    %1346 = vdwg.mxu0
    %v1347 = vadd.f32 %v1126, %v1344
    %v1348 = vxor.u32 %v1347, 2147483648
    %v1349 = vmul.f32 %v1348, 1.442695
    %v1350 = vpow.pop %v1349
    %v1351 = vadd.f32 %v1350, 1.0
    %v1352 = vrcp.pop %v1351
    %v1353 = vmul.f32 1.0, %v1352
    %1355 = vrot.lane.b32.xlu0 %v1344, 64
    %v1356 = vpop.permute.xlu0 %1355
    %v1358 = vmul.f32 %v1353, %v1356
    %1360 = vrot.lane.b32.xlu0 %v1358, 64
    %v1361 = vpop.permute.xlu0 %1360
    %v1363 = vadd.f32 %v1126, %v1361
    %v1364 = vtanh.pop %v1363
    %v1365 = vsub.f32 1.0, %v1353
    %1367 = vrot.lane.b32.xlu0 %v1364, 96
    %v1368 = vpop.permute.xlu0 %1367
    %v1370 = vmul.f32 %v1365, %v1368
    %v1371 = vmul.f32 %v1353, %v1271
    %v1372 = vadd.f32 %v1370, %v1371
    %1374 = vrot.lane.b32.xlu0 %v1372, 96
    %v1375 = vpop.permute.xlu0 %1374
    %v1376 = vsel %vm88, %v1375, 0
    %1378 = vmatprep.subr.mxu0 0.0
    %1379 = vmatpush1.msra.mxu0 %v1160
    %1380 = vmatprep.subr.mxu0 0.0
    %1381 = vmatpush1.msra.mxu0 %v1161
    %1382 = vmatprep.subr.mxu0 0.0
    %1383 = vmatpush1.msra.mxu0 %v1162
    %1384 = vmatprep.subr.mxu0 0.0
    %1385 = vmatpush1.msra.mxu0 %v1163
    %1386 = vmatprep.subr.mxu0 0.0
    %1387 = vmatpush1.msra.mxu0 0.0
    %1388 = vmatprep.subr.mxu0 0.0
    %1389 = vmatpush1.msra.mxu0 0.0
    %1390 = vmatprep.subr.mxu0 0.0
    %1391 = vmatpush1.msra.mxu0 0.0
    %1392 = vmatprep.subr.mxu0 0.0
    %1393 = vmatpush1.msra.mxu0 0.0
    %1394 = vmatprep.subr.mxu0 0.0
    %1395 = vmatpush1.msra.mxu0 0.0
    %1396 = vmatprep.subr.mxu0 0.0
    %1397 = vmatpush1.msra.mxu0 0.0
    %1398 = vmatprep.subr.mxu0 0.0
    %1399 = vmatpush1.msra.mxu0 0.0
    %1400 = vmatprep.subr.mxu0 0.0
    %1401 = vmatpush1.msra.mxu0 0.0
    %1402 = vmatprep.subr.mxu0 0.0
    %1403 = vmatpush1.msra.mxu0 0.0
    %1404 = vmatprep.subr.mxu0 0.0
    %1405 = vmatpush1.msra.mxu0 0.0
    %1406 = vmatprep.subr.mxu0 0.0
    %1407 = vmatpush1.msra.mxu0 0.0
    %1408 = vmatprep.subr.mxu0 0.0
    %1409 = vmatpush1.msra.mxu0 0.0
    %1410 = vmatprep.subr.mxu0 0.0
    %1411 = vmatpush1.msra.mxu0 0.0
    %1412 = vmatprep.subr.mxu0 0.0
    %1413 = vmatpush1.msra.mxu0 0.0
    %1414 = vmatprep.subr.mxu0 0.0
    %1415 = vmatpush1.msra.mxu0 0.0
    %1416 = vmatprep.subr.mxu0 0.0
    %1417 = vmatpush1.msra.mxu0 0.0
    %1418 = vmatprep.subr.mxu0 0.0
    %1419 = vmatpush1.msra.mxu0 0.0
    %1420 = vmatprep.subr.mxu0 0.0
    %1421 = vmatpush1.msra.mxu0 0.0
    %1422 = vmatprep.subr.mxu0 0.0
    %1423 = vmatpush1.msra.mxu0 0.0
    %1424 = vmatprep.subr.mxu0 0.0
    %1425 = vmatpush1.msra.mxu0 0.0
    %1426 = vmatprep.subr.mxu0 0.0
    %1427 = vmatpush1.msra.mxu0 0.0
    %1428 = vmatprep.subr.mxu0 0.0
    %1429 = vmatpush1.msra.mxu0 0.0
    %1430 = vmatprep.subr.mxu0 0.0
    %1431 = vmatpush1.msra.mxu0 0.0
    %1432 = vmatprep.subr.mxu0 0.0
    %1433 = vmatpush1.msra.mxu0 0.0
    %1434 = vmatprep.subr.mxu0 0.0
    %1435 = vmatpush1.msra.mxu0 0.0
    %1436 = vmatprep.subr.mxu0 0.0
    %1437 = vmatpush1.msra.mxu0 0.0
    %1438 = vmatprep.subr.mxu0 0.0
    %1439 = vmatpush1.msra.mxu0 0.0
    %1440 = vmatprep.subr.mxu0 0.0
    %1441 = vmatpush1.msra.mxu0 0.0
    %1442 = vmatprep.mubr.f32.mxu0 0.0
    %1443 = vmatmul.mubr.f32.gmra.mrb[0].mxu0 %v1376
    %v1444 = vpop.f32.mrb[0].mxu0
    %v1445 = vadd.f32 %v1167, %v1444
    %v1446 = vpop.f32.mrb[0].mxu0
    %1447 = vdwg.mxu0
    %v1448 = vadd.f32 %v1131, %v1445
    %v1449 = vxor.u32 %v1448, 2147483648
    %v1450 = vmul.f32 %v1449, 1.442695
    %v1451 = vpow.pop %v1450
    %v1452 = vadd.f32 %v1451, 1.0
    %v1453 = vrcp.pop %v1452
    %v1454 = vmul.f32 1.0, %v1453
    %1456 = vrot.lane.b32.xlu0 %v1445, 64
    %v1457 = vpop.permute.xlu0 %1456
    %v1459 = vmul.f32 %v1454, %v1457
    %1461 = vrot.lane.b32.xlu0 %v1459, 64
    %v1462 = vpop.permute.xlu0 %1461
    %v1464 = vadd.f32 %v1131, %v1462
    %v1465 = vtanh.pop %v1464
    %v1466 = vsub.f32 1.0, %v1454
    %1468 = vrot.lane.b32.xlu0 %v1465, 96
    %v1469 = vpop.permute.xlu0 %1468
    %v1471 = vmul.f32 %v1466, %v1469
    %v1472 = vmul.f32 %v1454, %v1372
    %v1473 = vadd.f32 %v1471, %v1472
    %1475 = vrot.lane.b32.xlu0 %v1473, 96
    %v1476 = vpop.permute.xlu0 %1475
    %v1477 = vsel %vm88, %v1476, 0
    %1479 = vmatprep.subr.mxu0 0.0
    %1480 = vmatpush1.msra.mxu0 %v1160
    %1481 = vmatprep.subr.mxu0 0.0
    %1482 = vmatpush1.msra.mxu0 %v1161
    %1483 = vmatprep.subr.mxu0 0.0
    %1484 = vmatpush1.msra.mxu0 %v1162
    %1485 = vmatprep.subr.mxu0 0.0
    %1486 = vmatpush1.msra.mxu0 %v1163
    %1487 = vmatprep.subr.mxu0 0.0
    %1488 = vmatpush1.msra.mxu0 0.0
    %1489 = vmatprep.subr.mxu0 0.0
    %1490 = vmatpush1.msra.mxu0 0.0
    %1491 = vmatprep.subr.mxu0 0.0
    %1492 = vmatpush1.msra.mxu0 0.0
    %1493 = vmatprep.subr.mxu0 0.0
    %1494 = vmatpush1.msra.mxu0 0.0
    %1495 = vmatprep.subr.mxu0 0.0
    %1496 = vmatpush1.msra.mxu0 0.0
    %1497 = vmatprep.subr.mxu0 0.0
    %1498 = vmatpush1.msra.mxu0 0.0
    %1499 = vmatprep.subr.mxu0 0.0
    %1500 = vmatpush1.msra.mxu0 0.0
    %1501 = vmatprep.subr.mxu0 0.0
    %1502 = vmatpush1.msra.mxu0 0.0
    %1503 = vmatprep.subr.mxu0 0.0
    %1504 = vmatpush1.msra.mxu0 0.0
    %1505 = vmatprep.subr.mxu0 0.0
    %1506 = vmatpush1.msra.mxu0 0.0
    %1507 = vmatprep.subr.mxu0 0.0
    %1508 = vmatpush1.msra.mxu0 0.0
    %1509 = vmatprep.subr.mxu0 0.0
    %1510 = vmatpush1.msra.mxu0 0.0
    %1511 = vmatprep.subr.mxu0 0.0
    %1512 = vmatpush1.msra.mxu0 0.0
    %1513 = vmatprep.subr.mxu0 0.0
    %1514 = vmatpush1.msra.mxu0 0.0
    %1515 = vmatprep.subr.mxu0 0.0
    %1516 = vmatpush1.msra.mxu0 0.0
    %1517 = vmatprep.subr.mxu0 0.0
    %1518 = vmatpush1.msra.mxu0 0.0
    %1519 = vmatprep.subr.mxu0 0.0
    %1520 = vmatpush1.msra.mxu0 0.0
    %1521 = vmatprep.subr.mxu0 0.0
    %1522 = vmatpush1.msra.mxu0 0.0
    %1523 = vmatprep.subr.mxu0 0.0
    %1524 = vmatpush1.msra.mxu0 0.0
    %1525 = vmatprep.subr.mxu0 0.0
    %1526 = vmatpush1.msra.mxu0 0.0
    %1527 = vmatprep.subr.mxu0 0.0
    %1528 = vmatpush1.msra.mxu0 0.0
    %1529 = vmatprep.subr.mxu0 0.0
    %1530 = vmatpush1.msra.mxu0 0.0
    %1531 = vmatprep.subr.mxu0 0.0
    %1532 = vmatpush1.msra.mxu0 0.0
    %1533 = vmatprep.subr.mxu0 0.0
    %1534 = vmatpush1.msra.mxu0 0.0
    %1535 = vmatprep.subr.mxu0 0.0
    %1536 = vmatpush1.msra.mxu0 0.0
    %1537 = vmatprep.subr.mxu0 0.0
    %1538 = vmatpush1.msra.mxu0 0.0
    %1539 = vmatprep.subr.mxu0 0.0
    %1540 = vmatpush1.msra.mxu0 0.0
    %1541 = vmatprep.subr.mxu0 0.0
    %1542 = vmatpush1.msra.mxu0 0.0
    %1543 = vmatprep.mubr.f32.mxu0 0.0
    %1544 = vmatmul.mubr.f32.gmra.mrb[0].mxu0 %v1477
    %v1545 = vpop.f32.mrb[0].mxu0
    %v1546 = vadd.f32 %v1167, %v1545
    %v1547 = vpop.f32.mrb[0].mxu0
    %1548 = vdwg.mxu0
    %v1549 = vadd.f32 %v1136, %v1546
    %v1550 = vxor.u32 %v1549, 2147483648
    %v1551 = vmul.f32 %v1550, 1.442695
    %v1552 = vpow.pop %v1551
    %v1553 = vadd.f32 %v1552, 1.0
    %v1554 = vrcp.pop %v1553
    %v1555 = vmul.f32 1.0, %v1554
    %1557 = vrot.lane.b32.xlu0 %v1546, 64
    %v1558 = vpop.permute.xlu0 %1557
    %v1560 = vmul.f32 %v1555, %v1558
    %1562 = vrot.lane.b32.xlu0 %v1560, 64
    %v1563 = vpop.permute.xlu0 %1562
    %v1565 = vadd.f32 %v1136, %v1563
    %v1566 = vtanh.pop %v1565
    %v1567 = vsub.f32 1.0, %v1555
    %1569 = vrot.lane.b32.xlu0 %v1566, 96
    %v1570 = vpop.permute.xlu0 %1569
    %v1572 = vmul.f32 %v1567, %v1570
    %v1573 = vmul.f32 %v1555, %v1473
    %v1574 = vadd.f32 %v1572, %v1573
    %1576 = vrot.lane.b32.xlu0 %v1574, 96
    %v1577 = vpop.permute.xlu0 %1576
    %v1578 = vsel %vm88, %v1577, 0
    %1580 = vmatprep.subr.mxu0 0.0
    %1581 = vmatpush1.msra.mxu0 %v1160
    %1582 = vmatprep.subr.mxu0 0.0
    %1583 = vmatpush1.msra.mxu0 %v1161
    %1584 = vmatprep.subr.mxu0 0.0
    %1585 = vmatpush1.msra.mxu0 %v1162
    %1586 = vmatprep.subr.mxu0 0.0
    %1587 = vmatpush1.msra.mxu0 %v1163
    %1588 = vmatprep.subr.mxu0 0.0
    %1589 = vmatpush1.msra.mxu0 0.0
    %1590 = vmatprep.subr.mxu0 0.0
    %1591 = vmatpush1.msra.mxu0 0.0
    %1592 = vmatprep.subr.mxu0 0.0
    %1593 = vmatpush1.msra.mxu0 0.0
    %1594 = vmatprep.subr.mxu0 0.0
    %1595 = vmatpush1.msra.mxu0 0.0
    %1596 = vmatprep.subr.mxu0 0.0
    %1597 = vmatpush1.msra.mxu0 0.0
    %1598 = vmatprep.subr.mxu0 0.0
    %1599 = vmatpush1.msra.mxu0 0.0
    %1600 = vmatprep.subr.mxu0 0.0
    %1601 = vmatpush1.msra.mxu0 0.0
    %1602 = vmatprep.subr.mxu0 0.0
    %1603 = vmatpush1.msra.mxu0 0.0
    %1604 = vmatprep.subr.mxu0 0.0
    %1605 = vmatpush1.msra.mxu0 0.0
    %1606 = vmatprep.subr.mxu0 0.0
    %1607 = vmatpush1.msra.mxu0 0.0
    %1608 = vmatprep.subr.mxu0 0.0
    %1609 = vmatpush1.msra.mxu0 0.0
    %1610 = vmatprep.subr.mxu0 0.0
    %1611 = vmatpush1.msra.mxu0 0.0
    %1612 = vmatprep.subr.mxu0 0.0
    %1613 = vmatpush1.msra.mxu0 0.0
    %1614 = vmatprep.subr.mxu0 0.0
    %1615 = vmatpush1.msra.mxu0 0.0
    %1616 = vmatprep.subr.mxu0 0.0
    %1617 = vmatpush1.msra.mxu0 0.0
    %1618 = vmatprep.subr.mxu0 0.0
    %1619 = vmatpush1.msra.mxu0 0.0
    %1620 = vmatprep.subr.mxu0 0.0
    %1621 = vmatpush1.msra.mxu0 0.0
    %1622 = vmatprep.subr.mxu0 0.0
    %1623 = vmatpush1.msra.mxu0 0.0
    %1624 = vmatprep.subr.mxu0 0.0
    %1625 = vmatpush1.msra.mxu0 0.0
    %1626 = vmatprep.subr.mxu0 0.0
    %1627 = vmatpush1.msra.mxu0 0.0
    %1628 = vmatprep.subr.mxu0 0.0
    %1629 = vmatpush1.msra.mxu0 0.0
    %1630 = vmatprep.subr.mxu0 0.0
    %1631 = vmatpush1.msra.mxu0 0.0
    %1632 = vmatprep.subr.mxu0 0.0
    %1633 = vmatpush1.msra.mxu0 0.0
    %1634 = vmatprep.subr.mxu0 0.0
    %1635 = vmatpush1.msra.mxu0 0.0
    %1636 = vmatprep.subr.mxu0 0.0
    %1637 = vmatpush1.msra.mxu0 0.0
    %1638 = vmatprep.subr.mxu0 0.0
    %1639 = vmatpush1.msra.mxu0 0.0
    %1640 = vmatprep.subr.mxu0 0.0
    %1641 = vmatpush1.msra.mxu0 0.0
    %1642 = vmatprep.subr.mxu0 0.0
    %1643 = vmatpush1.msra.mxu0 0.0
    %1644 = vmatprep.mubr.f32.mxu0 0.0
    %1645 = vmatmul.mubr.f32.gmra.mrb[0].mxu0 %v1578
    %v1646 = vpop.f32.mrb[0].mxu0
    %v1647 = vadd.f32 %v1167, %v1646
    %v1648 = vpop.f32.mrb[0].mxu0
    %1649 = vdwg.mxu0
    %v1650 = vadd.f32 %v1141, %v1647
    %v1651 = vxor.u32 %v1650, 2147483648
    %v1652 = vmul.f32 %v1651, 1.442695
    %v1653 = vpow.pop %v1652
    %v1654 = vadd.f32 %v1653, 1.0
    %v1655 = vrcp.pop %v1654
    %v1656 = vmul.f32 1.0, %v1655
    %1658 = vrot.lane.b32.xlu0 %v1647, 64
    %v1659 = vpop.permute.xlu0 %1658
    %v1661 = vmul.f32 %v1656, %v1659
    %1663 = vrot.lane.b32.xlu0 %v1661, 64
    %v1664 = vpop.permute.xlu0 %1663
    %v1666 = vadd.f32 %v1141, %v1664
    %v1667 = vtanh.pop %v1666
    %v1668 = vsub.f32 1.0, %v1656
    %1670 = vrot.lane.b32.xlu0 %v1667, 96
    %v1671 = vpop.permute.xlu0 %1670
    %v1673 = vmul.f32 %v1668, %v1671
    %v1674 = vmul.f32 %v1656, %v1574
    %v1675 = vadd.f32 %v1673, %v1674
    %1677 = vrot.lane.b32.xlu0 %v1675, 96
    %v1678 = vpop.permute.xlu0 %1677
    %v1679 = vsel %vm88, %v1678, 0
    %1681 = vmatprep.subr.mxu0 0.0
    %1682 = vmatpush1.msra.mxu0 %v1160
    %1683 = vmatprep.subr.mxu0 0.0
    %1684 = vmatpush1.msra.mxu0 %v1161
    %1685 = vmatprep.subr.mxu0 0.0
    %1686 = vmatpush1.msra.mxu0 %v1162
    %1687 = vmatprep.subr.mxu0 0.0
    %1688 = vmatpush1.msra.mxu0 %v1163
    %1689 = vmatprep.subr.mxu0 0.0
    %1690 = vmatpush1.msra.mxu0 0.0
    %1691 = vmatprep.subr.mxu0 0.0
    %1692 = vmatpush1.msra.mxu0 0.0
    %1693 = vmatprep.subr.mxu0 0.0
    %1694 = vmatpush1.msra.mxu0 0.0
    %1695 = vmatprep.subr.mxu0 0.0
    %1696 = vmatpush1.msra.mxu0 0.0
    %1697 = vmatprep.subr.mxu0 0.0
    %1698 = vmatpush1.msra.mxu0 0.0
    %1699 = vmatprep.subr.mxu0 0.0
    %1700 = vmatpush1.msra.mxu0 0.0
    %1701 = vmatprep.subr.mxu0 0.0
    %1702 = vmatpush1.msra.mxu0 0.0
    %1703 = vmatprep.subr.mxu0 0.0
    %1704 = vmatpush1.msra.mxu0 0.0
    %1705 = vmatprep.subr.mxu0 0.0
    %1706 = vmatpush1.msra.mxu0 0.0
    %1707 = vmatprep.subr.mxu0 0.0
    %1708 = vmatpush1.msra.mxu0 0.0
    %1709 = vmatprep.subr.mxu0 0.0
    %1710 = vmatpush1.msra.mxu0 0.0
    %1711 = vmatprep.subr.mxu0 0.0
    %1712 = vmatpush1.msra.mxu0 0.0
    %1713 = vmatprep.subr.mxu0 0.0
    %1714 = vmatpush1.msra.mxu0 0.0
    %1715 = vmatprep.subr.mxu0 0.0
    %1716 = vmatpush1.msra.mxu0 0.0
    %1717 = vmatprep.subr.mxu0 0.0
    %1718 = vmatpush1.msra.mxu0 0.0
    %1719 = vmatprep.subr.mxu0 0.0
    %1720 = vmatpush1.msra.mxu0 0.0
    %1721 = vmatprep.subr.mxu0 0.0
    %1722 = vmatpush1.msra.mxu0 0.0
    %1723 = vmatprep.subr.mxu0 0.0
    %1724 = vmatpush1.msra.mxu0 0.0
    %1725 = vmatprep.subr.mxu0 0.0
    %1726 = vmatpush1.msra.mxu0 0.0
    %1727 = vmatprep.subr.mxu0 0.0
    %1728 = vmatpush1.msra.mxu0 0.0
    %1729 = vmatprep.subr.mxu0 0.0
    %1730 = vmatpush1.msra.mxu0 0.0
    %1731 = vmatprep.subr.mxu0 0.0
    %1732 = vmatpush1.msra.mxu0 0.0
    %1733 = vmatprep.subr.mxu0 0.0
    %1734 = vmatpush1.msra.mxu0 0.0
    %1735 = vmatprep.subr.mxu0 0.0
    %1736 = vmatpush1.msra.mxu0 0.0
    %1737 = vmatprep.subr.mxu0 0.0
    %1738 = vmatpush1.msra.mxu0 0.0
    %1739 = vmatprep.subr.mxu0 0.0
    %1740 = vmatpush1.msra.mxu0 0.0
    %1741 = vmatprep.subr.mxu0 0.0
    %1742 = vmatpush1.msra.mxu0 0.0
    %1743 = vmatprep.subr.mxu0 0.0
    %1744 = vmatpush1.msra.mxu0 0.0
    %1745 = vmatprep.mubr.f32.mxu0 0.0
    %1746 = vmatmul.mubr.f32.gmra.mrb[0].mxu0 %v1679
    %v1747 = vpop.f32.mrb[0].mxu0
    %v1748 = vadd.f32 %v1167, %v1747
    %v1749 = vpop.f32.mrb[0].mxu0
    %1750 = vdwg.mxu0
    %v1751 = vadd.f32 %v1146, %v1748
    %v1752 = vxor.u32 %v1751, 2147483648
    %v1753 = vmul.f32 %v1752, 1.442695
    %v1754 = vpow.pop %v1753
    %v1755 = vadd.f32 %v1754, 1.0
    %v1756 = vrcp.pop %v1755
    %v1757 = vmul.f32 1.0, %v1756
    %1759 = vrot.lane.b32.xlu0 %v1748, 64
    %v1760 = vpop.permute.xlu0 %1759
    %v1762 = vmul.f32 %v1757, %v1760
    %1764 = vrot.lane.b32.xlu0 %v1762, 64
    %v1765 = vpop.permute.xlu0 %1764
    %v1767 = vadd.f32 %v1146, %v1765
    %v1768 = vtanh.pop %v1767
    %v1769 = vsub.f32 1.0, %v1757
    %1771 = vrot.lane.b32.xlu0 %v1768, 96
    %v1772 = vpop.permute.xlu0 %1771
    %v1774 = vmul.f32 %v1769, %v1772
    %v1775 = vmul.f32 %v1757, %v1675
    %v1776 = vadd.f32 %v1774, %v1775
    %1778 = vrot.lane.b32.xlu0 %v1776, 96
    %v1779 = vpop.permute.xlu0 %1778
    %v1780 = vsel %vm88, %v1779, 0
    %1782 = vmatprep.subr.mxu0 0.0
    %1783 = vmatpush1.msra.mxu0 %v1160
    %1784 = vmatprep.subr.mxu0 0.0
    %1785 = vmatpush1.msra.mxu0 %v1161
    %1786 = vmatprep.subr.mxu0 0.0
    %1787 = vmatpush1.msra.mxu0 %v1162
    %1788 = vmatprep.subr.mxu0 0.0
    %1789 = vmatpush1.msra.mxu0 %v1163
    %1790 = vmatprep.subr.mxu0 0.0
    %1791 = vmatpush1.msra.mxu0 0.0
    %1792 = vmatprep.subr.mxu0 0.0
    %1793 = vmatpush1.msra.mxu0 0.0
    %1794 = vmatprep.subr.mxu0 0.0
    %1795 = vmatpush1.msra.mxu0 0.0
    %1796 = vmatprep.subr.mxu0 0.0
    %1797 = vmatpush1.msra.mxu0 0.0
    %1798 = vmatprep.subr.mxu0 0.0
    %1799 = vmatpush1.msra.mxu0 0.0
    %1800 = vmatprep.subr.mxu0 0.0
    %1801 = vmatpush1.msra.mxu0 0.0
    %1802 = vmatprep.subr.mxu0 0.0
    %1803 = vmatpush1.msra.mxu0 0.0
    %1804 = vmatprep.subr.mxu0 0.0
    %1805 = vmatpush1.msra.mxu0 0.0
    %1806 = vmatprep.subr.mxu0 0.0
    %1807 = vmatpush1.msra.mxu0 0.0
    %1808 = vmatprep.subr.mxu0 0.0
    %1809 = vmatpush1.msra.mxu0 0.0
    %1810 = vmatprep.subr.mxu0 0.0
    %1811 = vmatpush1.msra.mxu0 0.0
    %1812 = vmatprep.subr.mxu0 0.0
    %1813 = vmatpush1.msra.mxu0 0.0
    %1814 = vmatprep.subr.mxu0 0.0
    %1815 = vmatpush1.msra.mxu0 0.0
    %1816 = vmatprep.subr.mxu0 0.0
    %1817 = vmatpush1.msra.mxu0 0.0
    %1818 = vmatprep.subr.mxu0 0.0
    %1819 = vmatpush1.msra.mxu0 0.0
    %1820 = vmatprep.subr.mxu0 0.0
    %1821 = vmatpush1.msra.mxu0 0.0
    %1822 = vmatprep.subr.mxu0 0.0
    %1823 = vmatpush1.msra.mxu0 0.0
    %1824 = vmatprep.subr.mxu0 0.0
    %1825 = vmatpush1.msra.mxu0 0.0
    %1826 = vmatprep.subr.mxu0 0.0
    %1827 = vmatpush1.msra.mxu0 0.0
    %1828 = vmatprep.subr.mxu0 0.0
    %1829 = vmatpush1.msra.mxu0 0.0
    %1830 = vmatprep.subr.mxu0 0.0
    %1831 = vmatpush1.msra.mxu0 0.0
    %1832 = vmatprep.subr.mxu0 0.0
    %1833 = vmatpush1.msra.mxu0 0.0
    %1834 = vmatprep.subr.mxu0 0.0
    %1835 = vmatpush1.msra.mxu0 0.0
    %1836 = vmatprep.subr.mxu0 0.0
    %1837 = vmatpush1.msra.mxu0 0.0
    %1838 = vmatprep.subr.mxu0 0.0
    %1839 = vmatpush1.msra.mxu0 0.0
    %1840 = vmatprep.subr.mxu0 0.0
    %1841 = vmatpush1.msra.mxu0 0.0
    %1842 = vmatprep.subr.mxu0 0.0
    %1843 = vmatpush1.msra.mxu0 0.0
    %1844 = vmatprep.subr.mxu0 0.0
    %1845 = vmatpush1.msra.mxu0 0.0
    %1846 = vmatprep.mubr.f32.mxu0 0.0
    %1847 = vmatmul.mubr.f32.gmra.mrb[0].mxu0 %v1780
    %v1848 = vpop.f32.mrb[0].mxu0
    %v1849 = vadd.f32 %v1167, %v1848
    %v1850 = vpop.f32.mrb[0].mxu0
    %1851 = vdwg.mxu0
    %v1852 = vadd.f32 %v1151, %v1849
    %v1853 = vxor.u32 %v1852, 2147483648
    %v1854 = vmul.f32 %v1853, 1.442695
    %v1855 = vpow.pop %v1854
    %v1856 = vadd.f32 %v1855, 1.0
    %v1857 = vrcp.pop %v1856
    %v1858 = vmul.f32 1.0, %v1857
    %1860 = vrot.lane.b32.xlu0 %v1849, 64
    %v1861 = vpop.permute.xlu0 %1860
    %v1863 = vmul.f32 %v1858, %v1861
    %1865 = vrot.lane.b32.xlu0 %v1863, 64
    %v1866 = vpop.permute.xlu0 %1865
    %v1868 = vadd.f32 %v1151, %v1866
    %v1869 = vtanh.pop %v1868
    %v1870 = vsub.f32 1.0, %v1858
    %1872 = vrot.lane.b32.xlu0 %v1869, 96
    %v1873 = vpop.permute.xlu0 %1872
    %v1875 = vmul.f32 %v1870, %v1873
    %v1876 = vmul.f32 %v1858, %v1776
    %v1877 = vadd.f32 %v1875, %v1876
    %1879 = vrot.lane.b32.xlu0 %v1877, 96
    %v1880 = vpop.permute.xlu0 %1879
    %v1881 = vsel %vm88, %v1880, 0
    %1883 = vmatprep.subr.mxu0 0.0
    %1884 = vmatpush1.msra.mxu0 %v1160
    %1885 = vmatprep.subr.mxu0 0.0
    %1886 = vmatpush1.msra.mxu0 %v1161
    %1887 = vmatprep.subr.mxu0 0.0
    %1888 = vmatpush1.msra.mxu0 %v1162
    %1889 = vmatprep.subr.mxu0 0.0
    %1890 = vmatpush1.msra.mxu0 %v1163
    %1891 = vmatprep.subr.mxu0 0.0
    %1892 = vmatpush1.msra.mxu0 0.0
    %1893 = vmatprep.subr.mxu0 0.0
    %1894 = vmatpush1.msra.mxu0 0.0
    %1895 = vmatprep.subr.mxu0 0.0
    %1896 = vmatpush1.msra.mxu0 0.0
    %1897 = vmatprep.subr.mxu0 0.0
    %1898 = vmatpush1.msra.mxu0 0.0
    %1899 = vmatprep.subr.mxu0 0.0
    %1900 = vmatpush1.msra.mxu0 0.0
    %1901 = vmatprep.subr.mxu0 0.0
    %1902 = vmatpush1.msra.mxu0 0.0
    %1903 = vmatprep.subr.mxu0 0.0
    %1904 = vmatpush1.msra.mxu0 0.0
    %1905 = vmatprep.subr.mxu0 0.0
    %1906 = vmatpush1.msra.mxu0 0.0
    %1907 = vmatprep.subr.mxu0 0.0
    %1908 = vmatpush1.msra.mxu0 0.0
    %1909 = vmatprep.subr.mxu0 0.0
    %1910 = vmatpush1.msra.mxu0 0.0
    %1911 = vmatprep.subr.mxu0 0.0
    %1912 = vmatpush1.msra.mxu0 0.0
    %1913 = vmatprep.subr.mxu0 0.0
    %1914 = vmatpush1.msra.mxu0 0.0
    %1915 = vmatprep.subr.mxu0 0.0
    %1916 = vmatpush1.msra.mxu0 0.0
    %1917 = vmatprep.subr.mxu0 0.0
    %1918 = vmatpush1.msra.mxu0 0.0
    %1919 = vmatprep.subr.mxu0 0.0
    %1920 = vmatpush1.msra.mxu0 0.0
    %1921 = vmatprep.subr.mxu0 0.0
    %1922 = vmatpush1.msra.mxu0 0.0
    %1923 = vmatprep.subr.mxu0 0.0
    %1924 = vmatpush1.msra.mxu0 0.0
    %1925 = vmatprep.subr.mxu0 0.0
    %1926 = vmatpush1.msra.mxu0 0.0
    %1927 = vmatprep.subr.mxu0 0.0
    %1928 = vmatpush1.msra.mxu0 0.0
    %1929 = vmatprep.subr.mxu0 0.0
    %1930 = vmatpush1.msra.mxu0 0.0
    %1931 = vmatprep.subr.mxu0 0.0
    %1932 = vmatpush1.msra.mxu0 0.0
    %1933 = vmatprep.subr.mxu0 0.0
    %1934 = vmatpush1.msra.mxu0 0.0
    %1935 = vmatprep.subr.mxu0 0.0
    %1936 = vmatpush1.msra.mxu0 0.0
    %1937 = vmatprep.subr.mxu0 0.0
    %1938 = vmatpush1.msra.mxu0 0.0
    %1939 = vmatprep.subr.mxu0 0.0
    %1940 = vmatpush1.msra.mxu0 0.0
    %1941 = vmatprep.subr.mxu0 0.0
    %1942 = vmatpush1.msra.mxu0 0.0
    %1943 = vmatprep.subr.mxu0 0.0
    %1944 = vmatpush1.msra.mxu0 0.0
    %1945 = vmatprep.subr.mxu0 0.0
    %1946 = vmatpush1.msra.mxu0 0.0
    %1947 = vmatprep.mubr.f32.mxu0 0.0
    %1948 = vmatmul.mubr.f32.gmra.mrb[0].mxu0 %v1881
    %v1949 = vpop.f32.mrb[0].mxu0
    %v1950 = vadd.f32 %v1167, %v1949
    %v1951 = vpop.f32.mrb[0].mxu0
    %1952 = vdwg.mxu0
    %v1953 = vadd.f32 %v1156, %v1950
    %v1954 = vxor.u32 %v1953, 2147483648
    %v1955 = vmul.f32 %v1954, 1.442695
    %v1956 = vpow.pop %v1955
    %v1957 = vadd.f32 %v1956, 1.0
    %v1958 = vrcp.pop %v1957
    %v1959 = vmul.f32 1.0, %v1958
    %1961 = vrot.lane.b32.xlu0 %v1950, 64
    %v1962 = vpop.permute.xlu0 %1961
    %v1964 = vmul.f32 %v1959, %v1962
    %1966 = vrot.lane.b32.xlu0 %v1964, 64
    %v1967 = vpop.permute.xlu0 %1966
    %v1969 = vadd.f32 %v1156, %v1967
    %v1970 = vtanh.pop %v1969
    %v1971 = vsub.f32 1.0, %v1959
    %1973 = vrot.lane.b32.xlu0 %v1970, 96
    %v1974 = vpop.permute.xlu0 %1973
    %v1976 = vmul.f32 %v1971, %v1974
    %v1977 = vmul.f32 %v1959, %v1877
    %v1978 = vadd.f32 %v1976, %v1977
    %1980 = vrot.lane.b32.xlu0 %v1978, 96
    %v1981 = vpop.permute.xlu0 %1980
    %s1983 = scalar_lea.vmem [#allocation9], 8
    %1984 = vst.msk [vmem:[%s1983] sm:$0xff] %vm88, %v1981
    %s1985 = scalar_lea.vmem %s4, 4
    %v1986 = vld [vmem:[%s1985] sm:$0x3]
    %s1987 = scalar_lea.vmem %s2, 64
    %v1988 = vld [vmem:[%s1987] sm:$0xff]
    %v1989 = vld [vmem:[%s1987 + $0x8] sm:$0xff]
    %v1990 = vld [vmem:[%s1987 + $0x10] sm:$0xff]
    %v1991 = vld [vmem:[%s1987 + $0x18] sm:$0xff]
    %v1992 = vlaneseq
    %v1993 = vshrl.u32 %v1992, 7
    %v1994 = vsub.s32 0, %v1993
    %v1995 = vrot.slane %v1986, %v1994
    %v1996 = vsel %vm88, %v1981, 0
    %1998 = vmatprep.subr.mxu0 0.0
    %1999 = vmatpush1.msra.mxu0 %v1988
    %2000 = vmatprep.subr.mxu0 0.0
    %2001 = vmatpush1.msra.mxu0 %v1989
    %2002 = vmatprep.subr.mxu0 0.0
    %2003 = vmatpush1.msra.mxu0 %v1990
    %2004 = vmatprep.subr.mxu0 0.0
    %2005 = vmatpush1.msra.mxu0 %v1991
    %2006 = vmatprep.subr.mxu0 0.0
    %2007 = vmatpush1.msra.mxu0 0.0
    %2008 = vmatprep.subr.mxu0 0.0
    %2009 = vmatpush1.msra.mxu0 0.0
    %2010 = vmatprep.subr.mxu0 0.0
    %2011 = vmatpush1.msra.mxu0 0.0
    %2012 = vmatprep.subr.mxu0 0.0
    %2013 = vmatpush1.msra.mxu0 0.0
    %2014 = vmatprep.subr.mxu0 0.0
    %2015 = vmatpush1.msra.mxu0 0.0
    %2016 = vmatprep.subr.mxu0 0.0
    %2017 = vmatpush1.msra.mxu0 0.0
    %2018 = vmatprep.subr.mxu0 0.0
    %2019 = vmatpush1.msra.mxu0 0.0
    %2020 = vmatprep.subr.mxu0 0.0
    %2021 = vmatpush1.msra.mxu0 0.0
    %2022 = vmatprep.subr.mxu0 0.0
    %2023 = vmatpush1.msra.mxu0 0.0
    %2024 = vmatprep.subr.mxu0 0.0
    %2025 = vmatpush1.msra.mxu0 0.0
    %2026 = vmatprep.subr.mxu0 0.0
    %2027 = vmatpush1.msra.mxu0 0.0
    %2028 = vmatprep.subr.mxu0 0.0
    %2029 = vmatpush1.msra.mxu0 0.0
    %2030 = vmatprep.subr.mxu0 0.0
    %2031 = vmatpush1.msra.mxu0 0.0
    %2032 = vmatprep.subr.mxu0 0.0
    %2033 = vmatpush1.msra.mxu0 0.0
    %2034 = vmatprep.subr.mxu0 0.0
    %2035 = vmatpush1.msra.mxu0 0.0
    %2036 = vmatprep.subr.mxu0 0.0
    %2037 = vmatpush1.msra.mxu0 0.0
    %2038 = vmatprep.subr.mxu0 0.0
    %2039 = vmatpush1.msra.mxu0 0.0
    %2040 = vmatprep.subr.mxu0 0.0
    %2041 = vmatpush1.msra.mxu0 0.0
    %2042 = vmatprep.subr.mxu0 0.0
    %2043 = vmatpush1.msra.mxu0 0.0
    %2044 = vmatprep.subr.mxu0 0.0
    %2045 = vmatpush1.msra.mxu0 0.0
    %2046 = vmatprep.subr.mxu0 0.0
    %2047 = vmatpush1.msra.mxu0 0.0
    %2048 = vmatprep.subr.mxu0 0.0
    %2049 = vmatpush1.msra.mxu0 0.0
    %2050 = vmatprep.subr.mxu0 0.0
    %2051 = vmatpush1.msra.mxu0 0.0
    %2052 = vmatprep.subr.mxu0 0.0
    %2053 = vmatpush1.msra.mxu0 0.0
    %2054 = vmatprep.subr.mxu0 0.0
    %2055 = vmatpush1.msra.mxu0 0.0
    %2056 = vmatprep.subr.mxu0 0.0
    %2057 = vmatpush1.msra.mxu0 0.0
    %2058 = vmatprep.subr.mxu0 0.0
    %2059 = vmatpush1.msra.mxu0 0.0
    %2060 = vmatprep.subr.mxu0 0.0
    %2061 = vmatpush1.msra.mxu0 0.0
    %2062 = vmatprep.mubr.f32.mxu0 0.0
    %2063 = vmatmul.mubr.f32.gmra.mrb[0].mxu0 %v1275
    %v2064 = vpop.f32.mrb[0].mxu0
    %v2065 = vadd.f32 %v1995, %v2064
    %v2066 = vpop.f32.mrb[0].mxu0
    %2067 = vmatprep.mubr.f32.mxu0 0.0
    %2068 = vmatmul.mubr.f32.gmra.mrb[0].mxu0 %v1376
    %v2069 = vpop.f32.mrb[0].mxu0
    %v2070 = vadd.f32 %v1995, %v2069
    %v2071 = vpop.f32.mrb[0].mxu0
    %2072 = vmatprep.mubr.f32.mxu0 0.0
    %2073 = vmatmul.mubr.f32.gmra.mrb[0].mxu0 %v1477
    %v2074 = vpop.f32.mrb[0].mxu0
    %v2075 = vadd.f32 %v1995, %v2074
    %v2076 = vpop.f32.mrb[0].mxu0
    %2077 = vmatprep.mubr.f32.mxu0 0.0
    %2078 = vmatmul.mubr.f32.gmra.mrb[0].mxu0 %v1578
    %v2079 = vpop.f32.mrb[0].mxu0
    %v2080 = vadd.f32 %v1995, %v2079
    %v2081 = vpop.f32.mrb[0].mxu0
    %2082 = vmatprep.mubr.f32.mxu0 0.0
    %2083 = vmatmul.mubr.f32.gmra.mrb[0].mxu0 %v1679
    %v2084 = vpop.f32.mrb[0].mxu0
    %v2085 = vadd.f32 %v1995, %v2084
    %v2086 = vpop.f32.mrb[0].mxu0
    %2087 = vmatprep.mubr.f32.mxu0 0.0
    %2088 = vmatmul.mubr.f32.gmra.mrb[0].mxu0 %v1780
    %v2089 = vpop.f32.mrb[0].mxu0
    %v2090 = vadd.f32 %v1995, %v2089
    %v2091 = vpop.f32.mrb[0].mxu0
    %2092 = vmatprep.mubr.f32.mxu0 0.0
    %2093 = vmatmul.mubr.f32.gmra.mrb[0].mxu0 %v1881
    %v2094 = vpop.f32.mrb[0].mxu0
    %v2095 = vadd.f32 %v1995, %v2094
    %v2096 = vpop.f32.mrb[0].mxu0
    %2097 = vmatprep.mubr.f32.mxu0 0.0
    %2098 = vmatmul.mubr.f32.gmra.mrb[0].mxu0 %v1996
    %v2099 = vpop.f32.mrb[0].mxu0
    %v2100 = vadd.f32 %v1995, %v2099
    %v2101 = vpop.f32.mrb[0].mxu0
    %2102 = vdwg.mxu0
    %s2103 = scalar_lea.vmem [#allocation5], 64
    %v2104 = vld [vmem:[%s2103] sm:$0xff]
    %v2105 = vld [vmem:[%s2103 + $0x8] sm:$0xff]
    %v2106 = vld [vmem:[%s2103 + $0x10] sm:$0xff]
    %v2107 = vld [vmem:[%s2103 + $0x18] sm:$0xff]
    %v2108 = vlaneseq
    %v2109 = vshrl.u32 %v2108, 7
    %v2110 = vsub.s32 1, %v2109
    %v2111 = vrot.slane %v1986, %v2110
    %s2112 = scalar_lea.vmem [#allocation2], 16
    %v2113 = vld [vmem:[%s2112] sm:$0xff]
    %v2115 = vsel %vm88, %v2113, 0
    %2117 = vmatprep.subr.mxu0 0.0
    %2118 = vmatpush1.msra.mxu0 %v2104
    %2119 = vmatprep.subr.mxu0 0.0
    %2120 = vmatpush1.msra.mxu0 %v2105
    %2121 = vmatprep.subr.mxu0 0.0
    %2122 = vmatpush1.msra.mxu0 %v2106
    %2123 = vmatprep.subr.mxu0 0.0
    %2124 = vmatpush1.msra.mxu0 %v2107
    %2125 = vmatprep.subr.mxu0 0.0
    %2126 = vmatpush1.msra.mxu0 0.0
    %2127 = vmatprep.subr.mxu0 0.0
    %2128 = vmatpush1.msra.mxu0 0.0
    %2129 = vmatprep.subr.mxu0 0.0
    %2130 = vmatpush1.msra.mxu0 0.0
    %2131 = vmatprep.subr.mxu0 0.0
    %2132 = vmatpush1.msra.mxu0 0.0
    %2133 = vmatprep.subr.mxu0 0.0
    %2134 = vmatpush1.msra.mxu0 0.0
    %2135 = vmatprep.subr.mxu0 0.0
    %2136 = vmatpush1.msra.mxu0 0.0
    %2137 = vmatprep.subr.mxu0 0.0
    %2138 = vmatpush1.msra.mxu0 0.0
    %2139 = vmatprep.subr.mxu0 0.0
    %2140 = vmatpush1.msra.mxu0 0.0
    %2141 = vmatprep.subr.mxu0 0.0
    %2142 = vmatpush1.msra.mxu0 0.0
    %2143 = vmatprep.subr.mxu0 0.0
    %2144 = vmatpush1.msra.mxu0 0.0
    %2145 = vmatprep.subr.mxu0 0.0
    %2146 = vmatpush1.msra.mxu0 0.0
    %2147 = vmatprep.subr.mxu0 0.0
    %2148 = vmatpush1.msra.mxu0 0.0
    %2149 = vmatprep.subr.mxu0 0.0
    %2150 = vmatpush1.msra.mxu0 0.0
    %2151 = vmatprep.subr.mxu0 0.0
    %2152 = vmatpush1.msra.mxu0 0.0
    %2153 = vmatprep.subr.mxu0 0.0
    %2154 = vmatpush1.msra.mxu0 0.0
    %2155 = vmatprep.subr.mxu0 0.0
    %2156 = vmatpush1.msra.mxu0 0.0
    %2157 = vmatprep.subr.mxu0 0.0
    %2158 = vmatpush1.msra.mxu0 0.0
    %2159 = vmatprep.subr.mxu0 0.0
    %2160 = vmatpush1.msra.mxu0 0.0
    %2161 = vmatprep.subr.mxu0 0.0
    %2162 = vmatpush1.msra.mxu0 0.0
    %2163 = vmatprep.subr.mxu0 0.0
    %2164 = vmatpush1.msra.mxu0 0.0
    %2165 = vmatprep.subr.mxu0 0.0
    %2166 = vmatpush1.msra.mxu0 0.0
    %2167 = vmatprep.subr.mxu0 0.0
    %2168 = vmatpush1.msra.mxu0 0.0
    %2169 = vmatprep.subr.mxu0 0.0
    %2170 = vmatpush1.msra.mxu0 0.0
    %2171 = vmatprep.subr.mxu0 0.0
    %2172 = vmatpush1.msra.mxu0 0.0
    %2173 = vmatprep.subr.mxu0 0.0
    %2174 = vmatpush1.msra.mxu0 0.0
    %2175 = vmatprep.subr.mxu0 0.0
    %2176 = vmatpush1.msra.mxu0 0.0
    %2177 = vmatprep.subr.mxu0 0.0
    %2178 = vmatpush1.msra.mxu0 0.0
    %2179 = vmatprep.subr.mxu0 0.0
    %2180 = vmatpush1.msra.mxu0 0.0
    %2181 = vmatprep.mubr.f32.mxu0 0.0
    %2182 = vmatmul.mubr.f32.gmra.mrb[0].mxu0 %v2115
    %v2183 = vpop.f32.mrb[0].mxu0
    %v2184 = vadd.f32 %v2111, %v2183
    %v2185 = vpop.f32.mrb[0].mxu0
    %2186 = vdwg.mxu0
    %v2187 = vadd.f32 %v2065, %v2184
    %v2188 = vxor.u32 %v2187, 2147483648
    %v2189 = vmul.f32 %v2188, 1.442695
    %v2190 = vpow.pop %v2189
    %v2191 = vadd.f32 %v2190, 1.0
    %v2192 = vrcp.pop %v2191
    %v2193 = vmul.f32 1.0, %v2192
    %2195 = vrot.lane.b32.xlu0 %v2184, 64
    %v2196 = vpop.permute.xlu0 %2195
    %v2198 = vmul.f32 %v2193, %v2196
    %2200 = vrot.lane.b32.xlu0 %v2198, 64
    %v2201 = vpop.permute.xlu0 %2200
    %v2203 = vadd.f32 %v2065, %v2201
    %v2204 = vtanh.pop %v2203
    %v2205 = vsub.f32 1.0, %v2193
    %2207 = vrot.lane.b32.xlu0 %v2204, 96
    %v2208 = vpop.permute.xlu0 %2207
    %v2210 = vmul.f32 %v2205, %v2208
    %2211 = vrot.lane.b32.xlu0 %v2113, 32
    %v2212 = vpop.permute.xlu0 %2211
    %v2214 = vmul.f32 %v2193, %v2212
    %v2215 = vadd.f32 %v2210, %v2214
    %2217 = vrot.lane.b32.xlu0 %v2215, 96
    %v2218 = vpop.permute.xlu0 %2217
    %v2219 = vsel %vm88, %v2218, 0
    %2221 = vmatprep.subr.mxu0 0.0
    %2222 = vmatpush1.msra.mxu0 %v2104
    %2223 = vmatprep.subr.mxu0 0.0
    %2224 = vmatpush1.msra.mxu0 %v2105
    %2225 = vmatprep.subr.mxu0 0.0
    %2226 = vmatpush1.msra.mxu0 %v2106
    %2227 = vmatprep.subr.mxu0 0.0
    %2228 = vmatpush1.msra.mxu0 %v2107
    %2229 = vmatprep.subr.mxu0 0.0
    %2230 = vmatpush1.msra.mxu0 0.0
    %2231 = vmatprep.subr.mxu0 0.0
    %2232 = vmatpush1.msra.mxu0 0.0
    %2233 = vmatprep.subr.mxu0 0.0
    %2234 = vmatpush1.msra.mxu0 0.0
    %2235 = vmatprep.subr.mxu0 0.0
    %2236 = vmatpush1.msra.mxu0 0.0
    %2237 = vmatprep.subr.mxu0 0.0
    %2238 = vmatpush1.msra.mxu0 0.0
    %2239 = vmatprep.subr.mxu0 0.0
    %2240 = vmatpush1.msra.mxu0 0.0
    %2241 = vmatprep.subr.mxu0 0.0
    %2242 = vmatpush1.msra.mxu0 0.0
    %2243 = vmatprep.subr.mxu0 0.0
    %2244 = vmatpush1.msra.mxu0 0.0
    %2245 = vmatprep.subr.mxu0 0.0
    %2246 = vmatpush1.msra.mxu0 0.0
    %2247 = vmatprep.subr.mxu0 0.0
    %2248 = vmatpush1.msra.mxu0 0.0
    %2249 = vmatprep.subr.mxu0 0.0
    %2250 = vmatpush1.msra.mxu0 0.0
    %2251 = vmatprep.subr.mxu0 0.0
    %2252 = vmatpush1.msra.mxu0 0.0
    %2253 = vmatprep.subr.mxu0 0.0
    %2254 = vmatpush1.msra.mxu0 0.0
    %2255 = vmatprep.subr.mxu0 0.0
    %2256 = vmatpush1.msra.mxu0 0.0
    %2257 = vmatprep.subr.mxu0 0.0
    %2258 = vmatpush1.msra.mxu0 0.0
    %2259 = vmatprep.subr.mxu0 0.0
    %2260 = vmatpush1.msra.mxu0 0.0
    %2261 = vmatprep.subr.mxu0 0.0
    %2262 = vmatpush1.msra.mxu0 0.0
    %2263 = vmatprep.subr.mxu0 0.0
    %2264 = vmatpush1.msra.mxu0 0.0
    %2265 = vmatprep.subr.mxu0 0.0
    %2266 = vmatpush1.msra.mxu0 0.0
    %2267 = vmatprep.subr.mxu0 0.0
    %2268 = vmatpush1.msra.mxu0 0.0
    %2269 = vmatprep.subr.mxu0 0.0
    %2270 = vmatpush1.msra.mxu0 0.0
    %2271 = vmatprep.subr.mxu0 0.0
    %2272 = vmatpush1.msra.mxu0 0.0
    %2273 = vmatprep.subr.mxu0 0.0
    %2274 = vmatpush1.msra.mxu0 0.0
    %2275 = vmatprep.subr.mxu0 0.0
    %2276 = vmatpush1.msra.mxu0 0.0
    %2277 = vmatprep.subr.mxu0 0.0
    %2278 = vmatpush1.msra.mxu0 0.0
    %2279 = vmatprep.subr.mxu0 0.0
    %2280 = vmatpush1.msra.mxu0 0.0
    %2281 = vmatprep.subr.mxu0 0.0
    %2282 = vmatpush1.msra.mxu0 0.0
    %2283 = vmatprep.subr.mxu0 0.0
    %2284 = vmatpush1.msra.mxu0 0.0
    %2285 = vmatprep.mubr.f32.mxu0 0.0
    %2286 = vmatmul.mubr.f32.gmra.mrb[0].mxu0 %v2219
    %v2287 = vpop.f32.mrb[0].mxu0
    %v2288 = vadd.f32 %v2111, %v2287
    %v2289 = vpop.f32.mrb[0].mxu0
    %2290 = vdwg.mxu0
    %v2291 = vadd.f32 %v2070, %v2288
    %v2292 = vxor.u32 %v2291, 2147483648
    %v2293 = vmul.f32 %v2292, 1.442695
    %v2294 = vpow.pop %v2293
    %v2295 = vadd.f32 %v2294, 1.0
    %v2296 = vrcp.pop %v2295
    %v2297 = vmul.f32 1.0, %v2296
    %2299 = vrot.lane.b32.xlu0 %v2288, 64
    %v2300 = vpop.permute.xlu0 %2299
    %v2302 = vmul.f32 %v2297, %v2300
    %2304 = vrot.lane.b32.xlu0 %v2302, 64
    %v2305 = vpop.permute.xlu0 %2304
    %v2307 = vadd.f32 %v2070, %v2305
    %v2308 = vtanh.pop %v2307
    %v2309 = vsub.f32 1.0, %v2297
    %2311 = vrot.lane.b32.xlu0 %v2308, 96
    %v2312 = vpop.permute.xlu0 %2311
    %v2314 = vmul.f32 %v2309, %v2312
    %v2315 = vmul.f32 %v2297, %v2215
    %v2316 = vadd.f32 %v2314, %v2315
    %2318 = vrot.lane.b32.xlu0 %v2316, 96
    %v2319 = vpop.permute.xlu0 %2318
    %v2320 = vsel %vm88, %v2319, 0
    %2322 = vmatprep.subr.mxu0 0.0
    %2323 = vmatpush1.msra.mxu0 %v2104
    %2324 = vmatprep.subr.mxu0 0.0
    %2325 = vmatpush1.msra.mxu0 %v2105
    %2326 = vmatprep.subr.mxu0 0.0
    %2327 = vmatpush1.msra.mxu0 %v2106
    %2328 = vmatprep.subr.mxu0 0.0
    %2329 = vmatpush1.msra.mxu0 %v2107
    %2330 = vmatprep.subr.mxu0 0.0
    %2331 = vmatpush1.msra.mxu0 0.0
    %2332 = vmatprep.subr.mxu0 0.0
    %2333 = vmatpush1.msra.mxu0 0.0
    %2334 = vmatprep.subr.mxu0 0.0
    %2335 = vmatpush1.msra.mxu0 0.0
    %2336 = vmatprep.subr.mxu0 0.0
    %2337 = vmatpush1.msra.mxu0 0.0
    %2338 = vmatprep.subr.mxu0 0.0
    %2339 = vmatpush1.msra.mxu0 0.0
    %2340 = vmatprep.subr.mxu0 0.0
    %2341 = vmatpush1.msra.mxu0 0.0
    %2342 = vmatprep.subr.mxu0 0.0
    %2343 = vmatpush1.msra.mxu0 0.0
    %2344 = vmatprep.subr.mxu0 0.0
    %2345 = vmatpush1.msra.mxu0 0.0
    %2346 = vmatprep.subr.mxu0 0.0
    %2347 = vmatpush1.msra.mxu0 0.0
    %2348 = vmatprep.subr.mxu0 0.0
    %2349 = vmatpush1.msra.mxu0 0.0
    %2350 = vmatprep.subr.mxu0 0.0
    %2351 = vmatpush1.msra.mxu0 0.0
    %2352 = vmatprep.subr.mxu0 0.0
    %2353 = vmatpush1.msra.mxu0 0.0
    %2354 = vmatprep.subr.mxu0 0.0
    %2355 = vmatpush1.msra.mxu0 0.0
    %2356 = vmatprep.subr.mxu0 0.0
    %2357 = vmatpush1.msra.mxu0 0.0
    %2358 = vmatprep.subr.mxu0 0.0
    %2359 = vmatpush1.msra.mxu0 0.0
    %2360 = vmatprep.subr.mxu0 0.0
    %2361 = vmatpush1.msra.mxu0 0.0
    %2362 = vmatprep.subr.mxu0 0.0
    %2363 = vmatpush1.msra.mxu0 0.0
    %2364 = vmatprep.subr.mxu0 0.0
    %2365 = vmatpush1.msra.mxu0 0.0
    %2366 = vmatprep.subr.mxu0 0.0
    %2367 = vmatpush1.msra.mxu0 0.0
    %2368 = vmatprep.subr.mxu0 0.0
    %2369 = vmatpush1.msra.mxu0 0.0
    %2370 = vmatprep.subr.mxu0 0.0
    %2371 = vmatpush1.msra.mxu0 0.0
    %2372 = vmatprep.subr.mxu0 0.0
    %2373 = vmatpush1.msra.mxu0 0.0
    %2374 = vmatprep.subr.mxu0 0.0
    %2375 = vmatpush1.msra.mxu0 0.0
    %2376 = vmatprep.subr.mxu0 0.0
    %2377 = vmatpush1.msra.mxu0 0.0
    %2378 = vmatprep.subr.mxu0 0.0
    %2379 = vmatpush1.msra.mxu0 0.0
    %2380 = vmatprep.subr.mxu0 0.0
    %2381 = vmatpush1.msra.mxu0 0.0
    %2382 = vmatprep.subr.mxu0 0.0
    %2383 = vmatpush1.msra.mxu0 0.0
    %2384 = vmatprep.subr.mxu0 0.0
    %2385 = vmatpush1.msra.mxu0 0.0
    %2386 = vmatprep.mubr.f32.mxu0 0.0
    %2387 = vmatmul.mubr.f32.gmra.mrb[0].mxu0 %v2320
    %v2388 = vpop.f32.mrb[0].mxu0
    %v2389 = vadd.f32 %v2111, %v2388
    %v2390 = vpop.f32.mrb[0].mxu0
    %2391 = vdwg.mxu0
    %v2392 = vadd.f32 %v2075, %v2389
    %v2393 = vxor.u32 %v2392, 2147483648
    %v2394 = vmul.f32 %v2393, 1.442695
    %v2395 = vpow.pop %v2394
    %v2396 = vadd.f32 %v2395, 1.0
    %v2397 = vrcp.pop %v2396
    %v2398 = vmul.f32 1.0, %v2397
    %2400 = vrot.lane.b32.xlu0 %v2389, 64
    %v2401 = vpop.permute.xlu0 %2400
    %v2403 = vmul.f32 %v2398, %v2401
    %2405 = vrot.lane.b32.xlu0 %v2403, 64
    %v2406 = vpop.permute.xlu0 %2405
    %v2408 = vadd.f32 %v2075, %v2406
    %v2409 = vtanh.pop %v2408
    %v2410 = vsub.f32 1.0, %v2398
    %2412 = vrot.lane.b32.xlu0 %v2409, 96
    %v2413 = vpop.permute.xlu0 %2412
    %v2415 = vmul.f32 %v2410, %v2413
    %v2416 = vmul.f32 %v2398, %v2316
    %v2417 = vadd.f32 %v2415, %v2416
    %2419 = vrot.lane.b32.xlu0 %v2417, 96
    %v2420 = vpop.permute.xlu0 %2419
    %v2421 = vsel %vm88, %v2420, 0
    %2423 = vmatprep.subr.mxu0 0.0
    %2424 = vmatpush1.msra.mxu0 %v2104
    %2425 = vmatprep.subr.mxu0 0.0
    %2426 = vmatpush1.msra.mxu0 %v2105
    %2427 = vmatprep.subr.mxu0 0.0
    %2428 = vmatpush1.msra.mxu0 %v2106
    %2429 = vmatprep.subr.mxu0 0.0
    %2430 = vmatpush1.msra.mxu0 %v2107
    %2431 = vmatprep.subr.mxu0 0.0
    %2432 = vmatpush1.msra.mxu0 0.0
    %2433 = vmatprep.subr.mxu0 0.0
    %2434 = vmatpush1.msra.mxu0 0.0
    %2435 = vmatprep.subr.mxu0 0.0
    %2436 = vmatpush1.msra.mxu0 0.0
    %2437 = vmatprep.subr.mxu0 0.0
    %2438 = vmatpush1.msra.mxu0 0.0
    %2439 = vmatprep.subr.mxu0 0.0
    %2440 = vmatpush1.msra.mxu0 0.0
    %2441 = vmatprep.subr.mxu0 0.0
    %2442 = vmatpush1.msra.mxu0 0.0
    %2443 = vmatprep.subr.mxu0 0.0
    %2444 = vmatpush1.msra.mxu0 0.0
    %2445 = vmatprep.subr.mxu0 0.0
    %2446 = vmatpush1.msra.mxu0 0.0
    %2447 = vmatprep.subr.mxu0 0.0
    %2448 = vmatpush1.msra.mxu0 0.0
    %2449 = vmatprep.subr.mxu0 0.0
    %2450 = vmatpush1.msra.mxu0 0.0
    %2451 = vmatprep.subr.mxu0 0.0
    %2452 = vmatpush1.msra.mxu0 0.0
    %2453 = vmatprep.subr.mxu0 0.0
    %2454 = vmatpush1.msra.mxu0 0.0
    %2455 = vmatprep.subr.mxu0 0.0
    %2456 = vmatpush1.msra.mxu0 0.0
    %2457 = vmatprep.subr.mxu0 0.0
    %2458 = vmatpush1.msra.mxu0 0.0
    %2459 = vmatprep.subr.mxu0 0.0
    %2460 = vmatpush1.msra.mxu0 0.0
    %2461 = vmatprep.subr.mxu0 0.0
    %2462 = vmatpush1.msra.mxu0 0.0
    %2463 = vmatprep.subr.mxu0 0.0
    %2464 = vmatpush1.msra.mxu0 0.0
    %2465 = vmatprep.subr.mxu0 0.0
    %2466 = vmatpush1.msra.mxu0 0.0
    %2467 = vmatprep.subr.mxu0 0.0
    %2468 = vmatpush1.msra.mxu0 0.0
    %2469 = vmatprep.subr.mxu0 0.0
    %2470 = vmatpush1.msra.mxu0 0.0
    %2471 = vmatprep.subr.mxu0 0.0
    %2472 = vmatpush1.msra.mxu0 0.0
    %2473 = vmatprep.subr.mxu0 0.0
    %2474 = vmatpush1.msra.mxu0 0.0
    %2475 = vmatprep.subr.mxu0 0.0
    %2476 = vmatpush1.msra.mxu0 0.0
    %2477 = vmatprep.subr.mxu0 0.0
    %2478 = vmatpush1.msra.mxu0 0.0
    %2479 = vmatprep.subr.mxu0 0.0
    %2480 = vmatpush1.msra.mxu0 0.0
    %2481 = vmatprep.subr.mxu0 0.0
    %2482 = vmatpush1.msra.mxu0 0.0
    %2483 = vmatprep.subr.mxu0 0.0
    %2484 = vmatpush1.msra.mxu0 0.0
    %2485 = vmatprep.subr.mxu0 0.0
    %2486 = vmatpush1.msra.mxu0 0.0
    %2487 = vmatprep.mubr.f32.mxu0 0.0
    %2488 = vmatmul.mubr.f32.gmra.mrb[0].mxu0 %v2421
    %v2489 = vpop.f32.mrb[0].mxu0
    %v2490 = vadd.f32 %v2111, %v2489
    %v2491 = vpop.f32.mrb[0].mxu0
    %2492 = vdwg.mxu0
    %v2493 = vadd.f32 %v2080, %v2490
    %v2494 = vxor.u32 %v2493, 2147483648
    %v2495 = vmul.f32 %v2494, 1.442695
    %v2496 = vpow.pop %v2495
    %v2497 = vadd.f32 %v2496, 1.0
    %v2498 = vrcp.pop %v2497
    %v2499 = vmul.f32 1.0, %v2498
    %2501 = vrot.lane.b32.xlu0 %v2490, 64
    %v2502 = vpop.permute.xlu0 %2501
    %v2504 = vmul.f32 %v2499, %v2502
    %2506 = vrot.lane.b32.xlu0 %v2504, 64
    %v2507 = vpop.permute.xlu0 %2506
    %v2509 = vadd.f32 %v2080, %v2507
    %v2510 = vtanh.pop %v2509
    %v2511 = vsub.f32 1.0, %v2499
    %2513 = vrot.lane.b32.xlu0 %v2510, 96
    %v2514 = vpop.permute.xlu0 %2513
    %v2516 = vmul.f32 %v2511, %v2514
    %v2517 = vmul.f32 %v2499, %v2417
    %v2518 = vadd.f32 %v2516, %v2517
    %2520 = vrot.lane.b32.xlu0 %v2518, 96
    %v2521 = vpop.permute.xlu0 %2520
    %v2522 = vsel %vm88, %v2521, 0
    %2524 = vmatprep.subr.mxu0 0.0
    %2525 = vmatpush1.msra.mxu0 %v2104
    %2526 = vmatprep.subr.mxu0 0.0
    %2527 = vmatpush1.msra.mxu0 %v2105
    %2528 = vmatprep.subr.mxu0 0.0
    %2529 = vmatpush1.msra.mxu0 %v2106
    %2530 = vmatprep.subr.mxu0 0.0
    %2531 = vmatpush1.msra.mxu0 %v2107
    %2532 = vmatprep.subr.mxu0 0.0
    %2533 = vmatpush1.msra.mxu0 0.0
    %2534 = vmatprep.subr.mxu0 0.0
    %2535 = vmatpush1.msra.mxu0 0.0
    %2536 = vmatprep.subr.mxu0 0.0
    %2537 = vmatpush1.msra.mxu0 0.0
    %2538 = vmatprep.subr.mxu0 0.0
    %2539 = vmatpush1.msra.mxu0 0.0
    %2540 = vmatprep.subr.mxu0 0.0
    %2541 = vmatpush1.msra.mxu0 0.0
    %2542 = vmatprep.subr.mxu0 0.0
    %2543 = vmatpush1.msra.mxu0 0.0
    %2544 = vmatprep.subr.mxu0 0.0
    %2545 = vmatpush1.msra.mxu0 0.0
    %2546 = vmatprep.subr.mxu0 0.0
    %2547 = vmatpush1.msra.mxu0 0.0
    %2548 = vmatprep.subr.mxu0 0.0
    %2549 = vmatpush1.msra.mxu0 0.0
    %2550 = vmatprep.subr.mxu0 0.0
    %2551 = vmatpush1.msra.mxu0 0.0
    %2552 = vmatprep.subr.mxu0 0.0
    %2553 = vmatpush1.msra.mxu0 0.0
    %2554 = vmatprep.subr.mxu0 0.0
    %2555 = vmatpush1.msra.mxu0 0.0
    %2556 = vmatprep.subr.mxu0 0.0
    %2557 = vmatpush1.msra.mxu0 0.0
    %2558 = vmatprep.subr.mxu0 0.0
    %2559 = vmatpush1.msra.mxu0 0.0
    %2560 = vmatprep.subr.mxu0 0.0
    %2561 = vmatpush1.msra.mxu0 0.0
    %2562 = vmatprep.subr.mxu0 0.0
    %2563 = vmatpush1.msra.mxu0 0.0
    %2564 = vmatprep.subr.mxu0 0.0
    %2565 = vmatpush1.msra.mxu0 0.0
    %2566 = vmatprep.subr.mxu0 0.0
    %2567 = vmatpush1.msra.mxu0 0.0
    %2568 = vmatprep.subr.mxu0 0.0
    %2569 = vmatpush1.msra.mxu0 0.0
    %2570 = vmatprep.subr.mxu0 0.0
    %2571 = vmatpush1.msra.mxu0 0.0
    %2572 = vmatprep.subr.mxu0 0.0
    %2573 = vmatpush1.msra.mxu0 0.0
    %2574 = vmatprep.subr.mxu0 0.0
    %2575 = vmatpush1.msra.mxu0 0.0
    %2576 = vmatprep.subr.mxu0 0.0
    %2577 = vmatpush1.msra.mxu0 0.0
    %2578 = vmatprep.subr.mxu0 0.0
    %2579 = vmatpush1.msra.mxu0 0.0
    %2580 = vmatprep.subr.mxu0 0.0
    %2581 = vmatpush1.msra.mxu0 0.0
    %2582 = vmatprep.subr.mxu0 0.0
    %2583 = vmatpush1.msra.mxu0 0.0
    %2584 = vmatprep.subr.mxu0 0.0
    %2585 = vmatpush1.msra.mxu0 0.0
    %2586 = vmatprep.subr.mxu0 0.0
    %2587 = vmatpush1.msra.mxu0 0.0
    %2588 = vmatprep.mubr.f32.mxu0 0.0
    %2589 = vmatmul.mubr.f32.gmra.mrb[0].mxu0 %v2522
    %v2590 = vpop.f32.mrb[0].mxu0
    %v2591 = vadd.f32 %v2111, %v2590
    %v2592 = vpop.f32.mrb[0].mxu0
    %2593 = vdwg.mxu0
    %v2594 = vadd.f32 %v2085, %v2591
    %v2595 = vxor.u32 %v2594, 2147483648
    %v2596 = vmul.f32 %v2595, 1.442695
    %v2597 = vpow.pop %v2596
    %v2598 = vadd.f32 %v2597, 1.0
    %v2599 = vrcp.pop %v2598
    %v2600 = vmul.f32 1.0, %v2599
    %2602 = vrot.lane.b32.xlu0 %v2591, 64
    %v2603 = vpop.permute.xlu0 %2602
    %v2605 = vmul.f32 %v2600, %v2603
    %2607 = vrot.lane.b32.xlu0 %v2605, 64
    %v2608 = vpop.permute.xlu0 %2607
    %v2610 = vadd.f32 %v2085, %v2608
    %v2611 = vtanh.pop %v2610
    %v2612 = vsub.f32 1.0, %v2600
    %2614 = vrot.lane.b32.xlu0 %v2611, 96
    %v2615 = vpop.permute.xlu0 %2614
    %v2617 = vmul.f32 %v2612, %v2615
    %v2618 = vmul.f32 %v2600, %v2518
    %v2619 = vadd.f32 %v2617, %v2618
    %2621 = vrot.lane.b32.xlu0 %v2619, 96
    %v2622 = vpop.permute.xlu0 %2621
    %v2623 = vsel %vm88, %v2622, 0
    %2625 = vmatprep.subr.mxu0 0.0
    %2626 = vmatpush1.msra.mxu0 %v2104
    %2627 = vmatprep.subr.mxu0 0.0
    %2628 = vmatpush1.msra.mxu0 %v2105
    %2629 = vmatprep.subr.mxu0 0.0
    %2630 = vmatpush1.msra.mxu0 %v2106
    %2631 = vmatprep.subr.mxu0 0.0
    %2632 = vmatpush1.msra.mxu0 %v2107
    %2633 = vmatprep.subr.mxu0 0.0
    %2634 = vmatpush1.msra.mxu0 0.0
    %2635 = vmatprep.subr.mxu0 0.0
    %2636 = vmatpush1.msra.mxu0 0.0
    %2637 = vmatprep.subr.mxu0 0.0
    %2638 = vmatpush1.msra.mxu0 0.0
    %2639 = vmatprep.subr.mxu0 0.0
    %2640 = vmatpush1.msra.mxu0 0.0
    %2641 = vmatprep.subr.mxu0 0.0
    %2642 = vmatpush1.msra.mxu0 0.0
    %2643 = vmatprep.subr.mxu0 0.0
    %2644 = vmatpush1.msra.mxu0 0.0
    %2645 = vmatprep.subr.mxu0 0.0
    %2646 = vmatpush1.msra.mxu0 0.0
    %2647 = vmatprep.subr.mxu0 0.0
    %2648 = vmatpush1.msra.mxu0 0.0
    %2649 = vmatprep.subr.mxu0 0.0
    %2650 = vmatpush1.msra.mxu0 0.0
    %2651 = vmatprep.subr.mxu0 0.0
    %2652 = vmatpush1.msra.mxu0 0.0
    %2653 = vmatprep.subr.mxu0 0.0
    %2654 = vmatpush1.msra.mxu0 0.0
    %2655 = vmatprep.subr.mxu0 0.0
    %2656 = vmatpush1.msra.mxu0 0.0
    %2657 = vmatprep.subr.mxu0 0.0
    %2658 = vmatpush1.msra.mxu0 0.0
    %2659 = vmatprep.subr.mxu0 0.0
    %2660 = vmatpush1.msra.mxu0 0.0
    %2661 = vmatprep.subr.mxu0 0.0
    %2662 = vmatpush1.msra.mxu0 0.0
    %2663 = vmatprep.subr.mxu0 0.0
    %2664 = vmatpush1.msra.mxu0 0.0
    %2665 = vmatprep.subr.mxu0 0.0
    %2666 = vmatpush1.msra.mxu0 0.0
    %2667 = vmatprep.subr.mxu0 0.0
    %2668 = vmatpush1.msra.mxu0 0.0
    %2669 = vmatprep.subr.mxu0 0.0
    %2670 = vmatpush1.msra.mxu0 0.0
    %2671 = vmatprep.subr.mxu0 0.0
    %2672 = vmatpush1.msra.mxu0 0.0
    %2673 = vmatprep.subr.mxu0 0.0
    %2674 = vmatpush1.msra.mxu0 0.0
    %2675 = vmatprep.subr.mxu0 0.0
    %2676 = vmatpush1.msra.mxu0 0.0
    %2677 = vmatprep.subr.mxu0 0.0
    %2678 = vmatpush1.msra.mxu0 0.0
    %2679 = vmatprep.subr.mxu0 0.0
    %2680 = vmatpush1.msra.mxu0 0.0
    %2681 = vmatprep.subr.mxu0 0.0
    %2682 = vmatpush1.msra.mxu0 0.0
    %2683 = vmatprep.subr.mxu0 0.0
    %2684 = vmatpush1.msra.mxu0 0.0
    %2685 = vmatprep.subr.mxu0 0.0
    %2686 = vmatpush1.msra.mxu0 0.0
    %2687 = vmatprep.subr.mxu0 0.0
    %2688 = vmatpush1.msra.mxu0 0.0
    %2689 = vmatprep.mubr.f32.mxu0 0.0
    %2690 = vmatmul.mubr.f32.gmra.mrb[0].mxu0 %v2623
    %v2691 = vpop.f32.mrb[0].mxu0
    %v2692 = vadd.f32 %v2111, %v2691
    %v2693 = vpop.f32.mrb[0].mxu0
    %2694 = vdwg.mxu0
    %v2695 = vadd.f32 %v2090, %v2692
    %v2696 = vxor.u32 %v2695, 2147483648
    %v2697 = vmul.f32 %v2696, 1.442695
    %v2698 = vpow.pop %v2697
    %v2699 = vadd.f32 %v2698, 1.0
    %v2700 = vrcp.pop %v2699
    %v2701 = vmul.f32 1.0, %v2700
    %2703 = vrot.lane.b32.xlu0 %v2692, 64
    %v2704 = vpop.permute.xlu0 %2703
    %v2706 = vmul.f32 %v2701, %v2704
    %2708 = vrot.lane.b32.xlu0 %v2706, 64
    %v2709 = vpop.permute.xlu0 %2708
    %v2711 = vadd.f32 %v2090, %v2709
    %v2712 = vtanh.pop %v2711
    %v2713 = vsub.f32 1.0, %v2701
    %2715 = vrot.lane.b32.xlu0 %v2712, 96
    %v2716 = vpop.permute.xlu0 %2715
    %v2718 = vmul.f32 %v2713, %v2716
    %v2719 = vmul.f32 %v2701, %v2619
    %v2720 = vadd.f32 %v2718, %v2719
    %2722 = vrot.lane.b32.xlu0 %v2720, 96
    %v2723 = vpop.permute.xlu0 %2722
    %v2724 = vsel %vm88, %v2723, 0
    %2726 = vmatprep.subr.mxu0 0.0
    %2727 = vmatpush1.msra.mxu0 %v2104
    %2728 = vmatprep.subr.mxu0 0.0
    %2729 = vmatpush1.msra.mxu0 %v2105
    %2730 = vmatprep.subr.mxu0 0.0
    %2731 = vmatpush1.msra.mxu0 %v2106
    %2732 = vmatprep.subr.mxu0 0.0
    %2733 = vmatpush1.msra.mxu0 %v2107
    %2734 = vmatprep.subr.mxu0 0.0
    %2735 = vmatpush1.msra.mxu0 0.0
    %2736 = vmatprep.subr.mxu0 0.0
    %2737 = vmatpush1.msra.mxu0 0.0
    %2738 = vmatprep.subr.mxu0 0.0
    %2739 = vmatpush1.msra.mxu0 0.0
    %2740 = vmatprep.subr.mxu0 0.0
    %2741 = vmatpush1.msra.mxu0 0.0
    %2742 = vmatprep.subr.mxu0 0.0
    %2743 = vmatpush1.msra.mxu0 0.0
    %2744 = vmatprep.subr.mxu0 0.0
    %2745 = vmatpush1.msra.mxu0 0.0
    %2746 = vmatprep.subr.mxu0 0.0
    %2747 = vmatpush1.msra.mxu0 0.0
    %2748 = vmatprep.subr.mxu0 0.0
    %2749 = vmatpush1.msra.mxu0 0.0
    %2750 = vmatprep.subr.mxu0 0.0
    %2751 = vmatpush1.msra.mxu0 0.0
    %2752 = vmatprep.subr.mxu0 0.0
    %2753 = vmatpush1.msra.mxu0 0.0
    %2754 = vmatprep.subr.mxu0 0.0
    %2755 = vmatpush1.msra.mxu0 0.0
    %2756 = vmatprep.subr.mxu0 0.0
    %2757 = vmatpush1.msra.mxu0 0.0
    %2758 = vmatprep.subr.mxu0 0.0
    %2759 = vmatpush1.msra.mxu0 0.0
    %2760 = vmatprep.subr.mxu0 0.0
    %2761 = vmatpush1.msra.mxu0 0.0
    %2762 = vmatprep.subr.mxu0 0.0
    %2763 = vmatpush1.msra.mxu0 0.0
    %2764 = vmatprep.subr.mxu0 0.0
    %2765 = vmatpush1.msra.mxu0 0.0
    %2766 = vmatprep.subr.mxu0 0.0
    %2767 = vmatpush1.msra.mxu0 0.0
    %2768 = vmatprep.subr.mxu0 0.0
    %2769 = vmatpush1.msra.mxu0 0.0
    %2770 = vmatprep.subr.mxu0 0.0
    %2771 = vmatpush1.msra.mxu0 0.0
    %2772 = vmatprep.subr.mxu0 0.0
    %2773 = vmatpush1.msra.mxu0 0.0
    %2774 = vmatprep.subr.mxu0 0.0
    %2775 = vmatpush1.msra.mxu0 0.0
    %2776 = vmatprep.subr.mxu0 0.0
    %2777 = vmatpush1.msra.mxu0 0.0
    %2778 = vmatprep.subr.mxu0 0.0
    %2779 = vmatpush1.msra.mxu0 0.0
    %2780 = vmatprep.subr.mxu0 0.0
    %2781 = vmatpush1.msra.mxu0 0.0
    %2782 = vmatprep.subr.mxu0 0.0
    %2783 = vmatpush1.msra.mxu0 0.0
    %2784 = vmatprep.subr.mxu0 0.0
    %2785 = vmatpush1.msra.mxu0 0.0
    %2786 = vmatprep.subr.mxu0 0.0
    %2787 = vmatpush1.msra.mxu0 0.0
    %2788 = vmatprep.subr.mxu0 0.0
    %2789 = vmatpush1.msra.mxu0 0.0
    %2790 = vmatprep.mubr.f32.mxu0 0.0
    %2791 = vmatmul.mubr.f32.gmra.mrb[0].mxu0 %v2724
    %v2792 = vpop.f32.mrb[0].mxu0
    %v2793 = vadd.f32 %v2111, %v2792
    %v2794 = vpop.f32.mrb[0].mxu0
    %2795 = vdwg.mxu0
    %v2796 = vadd.f32 %v2095, %v2793
    %v2797 = vxor.u32 %v2796, 2147483648
    %v2798 = vmul.f32 %v2797, 1.442695
    %v2799 = vpow.pop %v2798
    %v2800 = vadd.f32 %v2799, 1.0
    %v2801 = vrcp.pop %v2800
    %v2802 = vmul.f32 1.0, %v2801
    %2804 = vrot.lane.b32.xlu0 %v2793, 64
    %v2805 = vpop.permute.xlu0 %2804
    %v2807 = vmul.f32 %v2802, %v2805
    %2809 = vrot.lane.b32.xlu0 %v2807, 64
    %v2810 = vpop.permute.xlu0 %2809
    %v2812 = vadd.f32 %v2095, %v2810
    %v2813 = vtanh.pop %v2812
    %v2814 = vsub.f32 1.0, %v2802
    %2816 = vrot.lane.b32.xlu0 %v2813, 96
    %v2817 = vpop.permute.xlu0 %2816
    %v2819 = vmul.f32 %v2814, %v2817
    %v2820 = vmul.f32 %v2802, %v2720
    %v2821 = vadd.f32 %v2819, %v2820
    %2823 = vrot.lane.b32.xlu0 %v2821, 96
    %v2824 = vpop.permute.xlu0 %2823
    %v2825 = vsel %vm88, %v2824, 0
    %2827 = vmatprep.subr.mxu0 0.0
    %2828 = vmatpush1.msra.mxu0 %v2104
    %2829 = vmatprep.subr.mxu0 0.0
    %2830 = vmatpush1.msra.mxu0 %v2105
    %2831 = vmatprep.subr.mxu0 0.0
    %2832 = vmatpush1.msra.mxu0 %v2106
    %2833 = vmatprep.subr.mxu0 0.0
    %2834 = vmatpush1.msra.mxu0 %v2107
    %2835 = vmatprep.subr.mxu0 0.0
    %2836 = vmatpush1.msra.mxu0 0.0
    %2837 = vmatprep.subr.mxu0 0.0
    %2838 = vmatpush1.msra.mxu0 0.0
    %2839 = vmatprep.subr.mxu0 0.0
    %2840 = vmatpush1.msra.mxu0 0.0
    %2841 = vmatprep.subr.mxu0 0.0
    %2842 = vmatpush1.msra.mxu0 0.0
    %2843 = vmatprep.subr.mxu0 0.0
    %2844 = vmatpush1.msra.mxu0 0.0
    %2845 = vmatprep.subr.mxu0 0.0
    %2846 = vmatpush1.msra.mxu0 0.0
    %2847 = vmatprep.subr.mxu0 0.0
    %2848 = vmatpush1.msra.mxu0 0.0
    %2849 = vmatprep.subr.mxu0 0.0
    %2850 = vmatpush1.msra.mxu0 0.0
    %2851 = vmatprep.subr.mxu0 0.0
    %2852 = vmatpush1.msra.mxu0 0.0
    %2853 = vmatprep.subr.mxu0 0.0
    %2854 = vmatpush1.msra.mxu0 0.0
    %2855 = vmatprep.subr.mxu0 0.0
    %2856 = vmatpush1.msra.mxu0 0.0
    %2857 = vmatprep.subr.mxu0 0.0
    %2858 = vmatpush1.msra.mxu0 0.0
    %2859 = vmatprep.subr.mxu0 0.0
    %2860 = vmatpush1.msra.mxu0 0.0
    %2861 = vmatprep.subr.mxu0 0.0
    %2862 = vmatpush1.msra.mxu0 0.0
    %2863 = vmatprep.subr.mxu0 0.0
    %2864 = vmatpush1.msra.mxu0 0.0
    %2865 = vmatprep.subr.mxu0 0.0
    %2866 = vmatpush1.msra.mxu0 0.0
    %2867 = vmatprep.subr.mxu0 0.0
    %2868 = vmatpush1.msra.mxu0 0.0
    %2869 = vmatprep.subr.mxu0 0.0
    %2870 = vmatpush1.msra.mxu0 0.0
    %2871 = vmatprep.subr.mxu0 0.0
    %2872 = vmatpush1.msra.mxu0 0.0
    %2873 = vmatprep.subr.mxu0 0.0
    %2874 = vmatpush1.msra.mxu0 0.0
    %2875 = vmatprep.subr.mxu0 0.0
    %2876 = vmatpush1.msra.mxu0 0.0
    %2877 = vmatprep.subr.mxu0 0.0
    %2878 = vmatpush1.msra.mxu0 0.0
    %2879 = vmatprep.subr.mxu0 0.0
    %2880 = vmatpush1.msra.mxu0 0.0
    %2881 = vmatprep.subr.mxu0 0.0
    %2882 = vmatpush1.msra.mxu0 0.0
    %2883 = vmatprep.subr.mxu0 0.0
    %2884 = vmatpush1.msra.mxu0 0.0
    %2885 = vmatprep.subr.mxu0 0.0
    %2886 = vmatpush1.msra.mxu0 0.0
    %2887 = vmatprep.subr.mxu0 0.0
    %2888 = vmatpush1.msra.mxu0 0.0
    %2889 = vmatprep.subr.mxu0 0.0
    %2890 = vmatpush1.msra.mxu0 0.0
    %2891 = vmatprep.mubr.f32.mxu0 0.0
    %2892 = vmatmul.mubr.f32.gmra.mrb[0].mxu0 %v2825
    %v2893 = vpop.f32.mrb[0].mxu0
    %v2894 = vadd.f32 %v2111, %v2893
    %v2895 = vpop.f32.mrb[0].mxu0
    %2896 = vdwg.mxu0
    %v2897 = vadd.f32 %v2100, %v2894
    %v2898 = vxor.u32 %v2897, 2147483648
    %v2899 = vmul.f32 %v2898, 1.442695
    %v2900 = vpow.pop %v2899
    %v2901 = vadd.f32 %v2900, 1.0
    %v2902 = vrcp.pop %v2901
    %v2903 = vmul.f32 1.0, %v2902
    %2905 = vrot.lane.b32.xlu0 %v2894, 64
    %v2906 = vpop.permute.xlu0 %2905
    %v2908 = vmul.f32 %v2903, %v2906
    %2910 = vrot.lane.b32.xlu0 %v2908, 64
    %v2911 = vpop.permute.xlu0 %2910
    %v2913 = vadd.f32 %v2100, %v2911
    %v2914 = vtanh.pop %v2913
    %v2915 = vsub.f32 1.0, %v2903
    %2917 = vrot.lane.b32.xlu0 %v2914, 96
    %v2918 = vpop.permute.xlu0 %2917
    %v2920 = vmul.f32 %v2915, %v2918
    %v2921 = vmul.f32 %v2903, %v2821
    %v2922 = vadd.f32 %v2920, %v2921
    %2924 = vrot.lane.b32.xlu0 %v2922, 96
    %v2925 = vpop.permute.xlu0 %2924
    %s2927 = scalar_lea.vmem [#allocation9], 16
    %2928 = vst.msk [vmem:[%s2927] sm:$0xff] %vm88, %v2925
    %v2929 = vld [vmem:[#allocation7] sm:$0xff]
    %v2930 = vld [vmem:[#allocation7 + $0x8] sm:$0xff]
    %v2931 = vld [vmem:[#allocation7 + $0x10] sm:$0xff]
    %v2932 = vld [vmem:[#allocation7 + $0x18] sm:$0xff]
    %v2933 = vld [vmem:[%s6] sm:$0x1]
    %v2935 = vlaneseq
    %v2936 = vshrl.u32 %v2935, 7
    %v2937 = vsub.s32 0, %v2936
    %v2938 = vrot.slane %v2933, %v2937
    %v2940 = vsel %vm88, %v2925, 0
    %2942 = vmatprep.subr.mxu0 0.0
    %2943 = vmatpush1.msra.mxu0 %v2929
    %2944 = vmatprep.subr.mxu0 0.0
    %2945 = vmatpush1.msra.mxu0 %v2930
    %2946 = vmatprep.subr.mxu0 0.0
    %2947 = vmatpush1.msra.mxu0 %v2931
    %2948 = vmatprep.subr.mxu0 0.0
    %2949 = vmatpush1.msra.mxu0 %v2932
    %2950 = vmatprep.subr.mxu0 0.0
    %2951 = vmatpush1.msra.mxu0 0.0
    %2952 = vmatprep.subr.mxu0 0.0
    %2953 = vmatpush1.msra.mxu0 0.0
    %2954 = vmatprep.subr.mxu0 0.0
    %2955 = vmatpush1.msra.mxu0 0.0
    %2956 = vmatprep.subr.mxu0 0.0
    %2957 = vmatpush1.msra.mxu0 0.0
    %2958 = vmatprep.subr.mxu0 0.0
    %2959 = vmatpush1.msra.mxu0 0.0
    %2960 = vmatprep.subr.mxu0 0.0
    %2961 = vmatpush1.msra.mxu0 0.0
    %2962 = vmatprep.subr.mxu0 0.0
    %2963 = vmatpush1.msra.mxu0 0.0
    %2964 = vmatprep.subr.mxu0 0.0
    %2965 = vmatpush1.msra.mxu0 0.0
    %2966 = vmatprep.subr.mxu0 0.0
    %2967 = vmatpush1.msra.mxu0 0.0
    %2968 = vmatprep.subr.mxu0 0.0
    %2969 = vmatpush1.msra.mxu0 0.0
    %2970 = vmatprep.subr.mxu0 0.0
    %2971 = vmatpush1.msra.mxu0 0.0
    %2972 = vmatprep.subr.mxu0 0.0
    %2973 = vmatpush1.msra.mxu0 0.0
    %2974 = vmatprep.subr.mxu0 0.0
    %2975 = vmatpush1.msra.mxu0 0.0
    %2976 = vmatprep.subr.mxu0 0.0
    %2977 = vmatpush1.msra.mxu0 0.0
    %2978 = vmatprep.subr.mxu0 0.0
    %2979 = vmatpush1.msra.mxu0 0.0
    %2980 = vmatprep.subr.mxu0 0.0
    %2981 = vmatpush1.msra.mxu0 0.0
    %2982 = vmatprep.subr.mxu0 0.0
    %2983 = vmatpush1.msra.mxu0 0.0
    %2984 = vmatprep.subr.mxu0 0.0
    %2985 = vmatpush1.msra.mxu0 0.0
    %2986 = vmatprep.subr.mxu0 0.0
    %2987 = vmatpush1.msra.mxu0 0.0
    %2988 = vmatprep.subr.mxu0 0.0
    %2989 = vmatpush1.msra.mxu0 0.0
    %2990 = vmatprep.subr.mxu0 0.0
    %2991 = vmatpush1.msra.mxu0 0.0
    %2992 = vmatprep.subr.mxu0 0.0
    %2993 = vmatpush1.msra.mxu0 0.0
    %2994 = vmatprep.subr.mxu0 0.0
    %2995 = vmatpush1.msra.mxu0 0.0
    %2996 = vmatprep.subr.mxu0 0.0
    %2997 = vmatpush1.msra.mxu0 0.0
    %2998 = vmatprep.subr.mxu0 0.0
    %2999 = vmatpush1.msra.mxu0 0.0
    %3000 = vmatprep.subr.mxu0 0.0
    %3001 = vmatpush1.msra.mxu0 0.0
    %3002 = vmatprep.subr.mxu0 0.0
    %3003 = vmatpush1.msra.mxu0 0.0
    %3004 = vmatprep.subr.mxu0 0.0
    %3005 = vmatpush1.msra.mxu0 0.0
    %3006 = vmatprep.mubr.f32.mxu0 0.0
    %3007 = vmatmul.mubr.f32.gmra.mrb[0].mxu0 %v2219
    %v3008 = vpop.f32.mrb[0].mxu0
    %v3009 = vadd.f32 %v2938, %v3008
    %v3010 = vpop.f32.mrb[0].mxu0
    %3011 = vmatprep.mubr.f32.mxu0 0.0
    %3012 = vmatmul.mubr.f32.gmra.mrb[0].mxu0 %v2320
    %v3013 = vpop.f32.mrb[0].mxu0
    %v3014 = vadd.f32 %v2938, %v3013
    %v3015 = vpop.f32.mrb[0].mxu0
    %3016 = vmatprep.mubr.f32.mxu0 0.0
    %3017 = vmatmul.mubr.f32.gmra.mrb[0].mxu0 %v2421
    %v3018 = vpop.f32.mrb[0].mxu0
    %v3019 = vadd.f32 %v2938, %v3018
    %v3020 = vpop.f32.mrb[0].mxu0
    %3021 = vmatprep.mubr.f32.mxu0 0.0
    %3022 = vmatmul.mubr.f32.gmra.mrb[0].mxu0 %v2522
    %v3023 = vpop.f32.mrb[0].mxu0
    %v3024 = vadd.f32 %v2938, %v3023
    %v3025 = vpop.f32.mrb[0].mxu0
    %3026 = vmatprep.mubr.f32.mxu0 0.0
    %3027 = vmatmul.mubr.f32.gmra.mrb[0].mxu0 %v2623
    %v3028 = vpop.f32.mrb[0].mxu0
    %v3029 = vadd.f32 %v2938, %v3028
    %v3030 = vpop.f32.mrb[0].mxu0
    %3031 = vmatprep.mubr.f32.mxu0 0.0
    %3032 = vmatmul.mubr.f32.gmra.mrb[0].mxu0 %v2724
    %v3033 = vpop.f32.mrb[0].mxu0
    %v3034 = vadd.f32 %v2938, %v3033
    %v3035 = vpop.f32.mrb[0].mxu0
    %3036 = vmatprep.mubr.f32.mxu0 0.0
    %3037 = vmatmul.mubr.f32.gmra.mrb[0].mxu0 %v2825
    %v3038 = vpop.f32.mrb[0].mxu0
    %v3039 = vadd.f32 %v2938, %v3038
    %v3040 = vpop.f32.mrb[0].mxu0
    %3041 = vmatprep.mubr.f32.mxu0 0.0
    %3042 = vmatmul.mubr.f32.gmra.mrb[0].mxu0 %v2940
    %v3043 = vpop.f32.mrb[0].mxu0
    %v3044 = vadd.f32 %v2938, %v3043
    %v3045 = vpop.f32.mrb[0].mxu0
    %3046 = vdwg.mxu0
    %v3047 = vxor.u32 %v3009, 2147483648
    %v3048 = vxor.u32 %v3014, 2147483648
    %v3049 = vxor.u32 %v3019, 2147483648
    %v3050 = vxor.u32 %v3024, 2147483648
    %v3051 = vxor.u32 %v3029, 2147483648
    %v3052 = vxor.u32 %v3034, 2147483648
    %v3053 = vxor.u32 %v3039, 2147483648
    %v3054 = vxor.u32 %v3044, 2147483648
    %v3055 = vmul.f32 %v3047, 1.442695
    %v3056 = vpow.pop %v3055
    %v3057 = vmul.f32 %v3048, 1.442695
    %v3058 = vpow.pop %v3057
    %v3059 = vmul.f32 %v3049, 1.442695
    %v3060 = vpow.pop %v3059
    %v3061 = vmul.f32 %v3050, 1.442695
    %v3062 = vpow.pop %v3061
    %v3063 = vmul.f32 %v3051, 1.442695
    %v3064 = vpow.pop %v3063
    %v3065 = vmul.f32 %v3052, 1.442695
    %v3066 = vpow.pop %v3065
    %v3067 = vmul.f32 %v3053, 1.442695
    %v3068 = vpow.pop %v3067
    %v3069 = vmul.f32 %v3054, 1.442695
    %v3070 = vpow.pop %v3069
    %v3071 = vadd.f32 %v3056, 1.0
    %v3072 = vadd.f32 %v3058, 1.0
    %v3073 = vadd.f32 %v3060, 1.0
    %v3074 = vadd.f32 %v3062, 1.0
    %v3075 = vadd.f32 %v3064, 1.0
    %v3076 = vadd.f32 %v3066, 1.0
    %v3077 = vadd.f32 %v3068, 1.0
    %v3078 = vadd.f32 %v3070, 1.0
    %v3079 = vrcp.pop %v3071
    %v3080 = vmul.f32 1.0, %v3079
    %v3081 = vrcp.pop %v3072
    %v3082 = vmul.f32 1.0, %v3081
    %v3083 = vrcp.pop %v3073
    %v3084 = vmul.f32 1.0, %v3083
    %v3085 = vrcp.pop %v3074
    %v3086 = vmul.f32 1.0, %v3085
    %v3087 = vrcp.pop %v3075
    %v3088 = vmul.f32 1.0, %v3087
    %v3089 = vrcp.pop %v3076
    %v3090 = vmul.f32 1.0, %v3089
    %v3091 = vrcp.pop %v3077
    %v3092 = vmul.f32 1.0, %v3091
    %v3093 = vrcp.pop %v3078
    %v3094 = vmul.f32 1.0, %v3093
    %v3095 = vsub.f32 %v3080, 0.5
    %v3096 = vsub.f32 %v3082, 0.5
    %v3097 = vsub.f32 %v3084, 0.5
    %v3098 = vsub.f32 %v3086, 0.5
    %v3099 = vsub.f32 %v3088, 0.5
    %v3100 = vsub.f32 %v3090, 0.5
    %v3101 = vsub.f32 %v3092, 0.5
    %v3102 = vsub.f32 %v3094, 0.5
    %v3103 = vmul.f32 %v3095, 0.2
    %v3104 = vmul.f32 %v3096, 0.2
    %v3105 = vmul.f32 %v3097, 0.2
    %v3106 = vmul.f32 %v3098, 0.2
    %v3107 = vmul.f32 %v3099, 0.2
    %v3108 = vmul.f32 %v3100, 0.2
    %v3109 = vmul.f32 %v3101, 0.2
    %v3110 = vmul.f32 %v3102, 0.2
    %3111 = vst [vmem:[#allocation8] sm:$0xff] %v3103
    %3112 = vst [vmem:[#allocation8 + $0x8] sm:$0xff] %v3104
    %3113 = vst [vmem:[#allocation8 + $0x10] sm:$0xff] %v3105
    %3114 = vst [vmem:[#allocation8 + $0x18] sm:$0xff] %v3106
    %3115 = vst [vmem:[#allocation8 + $0x20] sm:$0xff] %v3107
    %3116 = vst [vmem:[#allocation8 + $0x28] sm:$0xff] %v3108
    %3117 = vst [vmem:[#allocation8 + $0x30] sm:$0xff] %v3109
    %3118 = vst [vmem:[#allocation8 + $0x38] sm:$0xff] %v3110
    // Predicated region
    $region42: #{tpu_custom_call.1} parent=1 // pred_check
      _
    $region43: #{tpu_custom_call.1} parent=1 // pred_check_branch
      %3120 = sbr.rel (0) target = $region45
    $region44: #{tpu_custom_call.1} parent=1 // pred_region
      %s3122 = ssub.s32 1024, 1024
      %3123 = vsyncadd [#allocation4], %s3122
      %s3124 = sshll.u32 [#allocation8], 4
      %s3125 = int_to_ptr.vmem [resolvable:$true] %s3124
      %3130 = dma.vmem_to_hbm [thread:$0]  %s3125, 1024, %s7, [#allocation4], 128, 128, 8
    $region45: #{tpu_custom_call.1} parent=1 // pred_fallthru
      _
    // Predicated region
    $region46: #{tpu_custom_call.1} parent=1 // pred_check
      _
    $region47: #{tpu_custom_call.1} parent=1 // pred_check_branch
      %3132 = sbr.rel (0) target = $region49
    $region48: #{tpu_custom_call.1} parent=1 // pred_region
      %s3134 = ssub.s32 384, 384
      %3135 = vsyncadd [#allocation10], %s3134
      %s3136 = sshll.u32 [#allocation9], 4
      %s3137 = int_to_ptr.vmem [resolvable:$true] %s3136
      %3142 = dma.vmem_to_hbm [thread:$0]  %s3137, 384, %s8, [#allocation10], 128, 128, 8
    $region49: #{tpu_custom_call.1} parent=1 // pred_fallthru
      _
    // Predicated region
    $region50: #{tpu_custom_call.1} parent=1 // pred_check
      _
    $region51: #{tpu_custom_call.1} parent=1 // pred_check_branch
      %3144 = sbr.rel (0) target = $region53
    $region52: #{tpu_custom_call.1} parent=1 // pred_region
      %3145 = dma.done [#allocation4], 1024
    $region53: #{tpu_custom_call.1} parent=1 // pred_fallthru
      _
    // Predicated region
    $region54: #{tpu_custom_call.1} parent=1 // pred_check
      _
    $region55: #{tpu_custom_call.1} parent=1 // pred_check_branch
      %3147 = sbr.rel (0) target = $region57
    $region56: #{tpu_custom_call.1} parent=1 // pred_region
      %3148 = dma.done [#allocation10], 384
    $region57: #{tpu_custom_call.1} parent=1 // pred_fallthru
      _
    %3149 = vsyncpa [#allocation3], 1
    %3150 = vsyncpa [#allocation6], 1
    %3151 = vsyncpa [#allocation4], 1
    %3152 = vsyncpa [#allocation10], 1

</llo_original>
